<compile_context>
chip_gen: v7x
topology: tpu7x:2x2x1
jax: 0.10.0
libtpu: 0.0.40
codegen_flags: <defaults>
</compile_context>

<pallas_src>
import functools

import jax
import jax.numpy as jnp
import numpy as np
from jax.experimental import pallas as pl
from jax.experimental.pallas import tpu as pltpu


def _feature_kernel(x_ref, w_ref, b_ref, o_ref, *, ksize, spatial):
    """Fused conv(SAME) + bias + ReLU + global average pool for ONE image.

    x_ref: (1, ROWS_PAD, C) f32  zero-halo NHWC image, flattened over (H, W)
    w_ref: (KH*KW, C, CP)   bf16 per-tap weight slabs, Cout padded to CP (=128k)
    b_ref: (1, CP)          f32  bias row (zero-padded columns)
    o_ref: (1, 1, CP)       f32  pooled feature row for this image
    """
    KH, KW = ksize
    H, W = spatial
    WP = W + (KW - 1)          # padded row width (wrapper pads W by KW//2 each side)
    ROWS = H * WP              # output rows incl. halo columns (masked below)
    CP = w_ref.shape[-1]

    # In-kernel im2col: each conv tap is a contiguous shifted slice of the
    # flattened padded image (unaligned VMEM load, no gather / reshape).
    # K stays at C*KH*KW (no HBM-side padding); bf16 operands, f32 MXU acc.
    acc = jnp.zeros((ROWS, CP), jnp.float32)
    for kh in range(KH):
        for kw in range(KW):
            off = kh * WP + kw
            tap = x_ref[0, pl.ds(off, ROWS), :].astype(jnp.bfloat16)   # (ROWS, C)
            acc = acc + jnp.dot(tap, w_ref[kh * KW + kw],
                                preferred_element_type=jnp.float32)

    y = jnp.maximum(acc + b_ref[...], 0.0)                  # bias + ReLU (f32 VPU)

    # Mask the (WP - W) halo columns, then global-average-pool with a
    # cross-sublane XLU reduce: no pooling matrix, no extra MXU matmul.
    col = jax.lax.broadcasted_iota(jnp.int32, (ROWS, CP), 0) % WP
    y = jnp.where(col < W, y, 0.0)
    o_ref[0] = jnp.sum(y, axis=0, keepdims=True) * (1.0 / (H * W))


@jax.jit
def feature_model_forward(x, conv_w, conv_b):
    """FeatureModel.forward: backbone features (conv3x3+ReLU) -> mean over H, W.

    x: (N, C, H, W) f32.  conv_w: (Cout, Cin, KH, KW).  conv_b: (Cout,).
    Returns (N, Cout) f32 pooled features.
    """
    N, C, H, W = x.shape
    Cout, Cin, KH, KW = conv_w.shape
    assert C == Cin and KH % 2 == 1 and KW % 2 == 1
    ph, pw = KH // 2, KW // 2
    WP = W + 2 * pw
    ROWS_PAD = (H + KH) * WP          # one extra zero row keeps every tap's
                                      # contiguous slice in bounds
    CP = max(128, -(-Cout // 128) * 128)   # lane-dense out-channel dim

    # Only layout glue stays in the wrapper (~raw activation bytes): NHWC,
    # 1px zero halo, flatten (H, W).  The im2col itself is fused in-kernel.
    xp = jnp.pad(jnp.transpose(x, (0, 2, 3, 1)),
                 ((0, 0), (ph, ph + 1), (pw, pw), (0, 0)))
    xp = xp.reshape(N, ROWS_PAD, C)

    # Per-tap weight slabs (KH*KW, Cin, CP), bf16 for the MXU; zero columns pad
    # Cout to a lane-dense multiple of 128 (sliced off after the call).
    w_taps = jnp.transpose(conv_w, (2, 3, 1, 0)).reshape(KH * KW, Cin, Cout)
    w_taps = jnp.pad(w_taps, ((0, 0), (0, 0), (0, CP - Cout))).astype(jnp.bfloat16)
    b_row = jnp.pad(conv_b, (0, CP - Cout)).reshape(1, CP).astype(jnp.float32)

    kernel = functools.partial(_feature_kernel, ksize=(KH, KW), spatial=(H, W))

    # Grid over images, marked "parallel": pipelines the next image's DMA under
    # the current matmuls and lets v7x spread images over both TensorCores.
    # Per-step VMEM here is < 1 MiB; for large H*W / Cin, tile the row axis
    # (>=512 rows/step) with an accumulator output (pl.when init/finalize) and
    # size tiles against v7x's 64 MiB physical / 32 MiB scoped VMEM.
    out = pl.pallas_call(
        kernel,
        out_shape=jax.ShapeDtypeStruct((N, 1, CP), jnp.float32),
        grid=(N,),
        in_specs=[
            pl.BlockSpec((1, ROWS_PAD, C), lambda n: (n, 0, 0)),
            pl.BlockSpec((KH * KW, Cin, CP), lambda n: (0, 0, 0)),   # resident
            pl.BlockSpec((1, CP), lambda n: (0, 0)),                 # resident
        ],
        out_specs=pl.BlockSpec((1, 1, CP), lambda n: (n, 0, 0)),
        compiler_params=pltpu.CompilerParams(
            dimension_semantics=("parallel",),
            vmem_limit_bytes=32 * 1024 * 1024),
    )(xp, w_taps, b_row)
    return out.reshape(N, CP)[:, :Cout]


def reference_forward(x, conv_w, conv_b):
    """Pure-JAX reference: conv3x3 (SAME) + bias + ReLU + mean over H, W."""
    y = jax.lax.conv_general_dilated(
        x, conv_w, window_strides=(1, 1), padding="SAME",
        dimension_numbers=("NCHW", "OIHW", "NCHW"))
    y = jnp.maximum(y + conv_b.reshape(1, -1, 1, 1), 0.0)
    return y.mean(axis=(2, 3))


if __name__ == "__main__":
    key = jax.random.PRNGKey(0)
    kx, kwt, kb = jax.random.split(key, 3)

    N, C, H, W = 2, 4, 16, 16
    Cout, KH, KW = 64, 3, 3

    x = jax.random.normal(kx, (N, C, H, W), dtype=jnp.float32)
    conv_w = (jax.random.normal(kwt, (Cout, C, KH, KW), dtype=jnp.float32)
              * (1.0 / np.sqrt(C * KH * KW)))
    conv_b = jax.random.normal(kb, (Cout,), dtype=jnp.float32) * 0.01

    feats = jax.block_until_ready(feature_model_forward(x, conv_w, conv_b))

    # Reference on bf16-rounded matmul operands (the kernel feeds the MXU bf16
    # inputs; bias / ReLU / pooling stay f32 in both).
    x_r = x.astype(jnp.bfloat16).astype(jnp.float32)
    w_r = conv_w.astype(jnp.bfloat16).astype(jnp.float32)
    ref = jax.block_until_ready(reference_forward(x_r, w_r, conv_b))

    assert feats.shape == (N, Cout), feats.shape
    np.testing.assert_allclose(np.asarray(feats), np.asarray(ref),
                               rtol=2e-3, atol=2e-3)
    print("KERNEL_OK")
</pallas_src>

<mosaic_0001>
module attributes {stable_mosaic.version = 11 : i64} {
  func.func @_feature_kernel(%arg0: i32, %arg1: memref<1x342x4xf32, #tpu.memory_space<vmem>>, %arg2: memref<9x4x128xbf16, #tpu.memory_space<vmem>>, %arg3: memref<1x128xf32, #tpu.memory_space<vmem>>, %arg4: memref<1x1x128xf32, #tpu.memory_space<vmem>>) attributes {dimension_semantics = [#tpu.dimension_semantics<parallel>], iteration_bounds = array<i64: 2>, scalar_prefetch = 0 : i64, scratch_operands = 0 : i64, tpu.core_type = #tpu.core_type<tc>, window_params = [{transform_indices = @transform_0, window_bounds = array<i64: 1, 342, 4>}, {pipeline_mode = #tpu.pipeline_mode<synchronous>, transform_indices = @transform_1, window_bounds = array<i64: 9, 4, 128>}, {pipeline_mode = #tpu.pipeline_mode<synchronous>, transform_indices = @transform_2, window_bounds = array<i64: 1, 128>}, {transform_indices = @transform_3, window_bounds = array<i64: 1, 1, 128>}]} {
    %cst = arith.constant 0.000000e+00 : f32
    %0 = vector.broadcast %cst : f32 to vector<288x128xf32>
    %c0 = arith.constant 0 : index
    %c0_0 = arith.constant 0 : index
    %c0_1 = arith.constant 0 : index
    %1 = vector.load %arg1[%c0, %c0_0, %c0_1] : memref<1x342x4xf32, #tpu.memory_space<vmem>>, vector<1x288x4xf32>
    %2 = vector.shape_cast %1 : vector<1x288x4xf32> to vector<288x4xf32>
    %3 = arith.truncf %2 : vector<288x4xf32> to vector<288x4xbf16>
    %c0_2 = arith.constant 0 : index
    %c0_3 = arith.constant 0 : index
    %c0_4 = arith.constant 0 : index
    %4 = vector.load %arg2[%c0_2, %c0_3, %c0_4] : memref<9x4x128xbf16, #tpu.memory_space<vmem>>, vector<1x4x128xbf16>
    %5 = vector.shape_cast %4 : vector<1x4x128xbf16> to vector<4x128xbf16>
    %cst_5 = arith.constant dense<0.000000e+00> : vector<288x128xf32>
    %6 = tpu.matmul %3, %5, %cst_5 {dimension_numbers = #tpu.dot_dimension_numbers<[1], [0], [0], [1], [0, 0, 1, 1], [], []>} : vector<288x4xbf16>, vector<4x128xbf16>, vector<288x128xf32> -> vector<288x128xf32>
    %7 = arith.addf %0, %6 : vector<288x128xf32>
    %c0_6 = arith.constant 0 : index
    %c1 = arith.constant 1 : index
    %c0_7 = arith.constant 0 : index
    %8 = vector.load %arg1[%c0_6, %c1, %c0_7] : memref<1x342x4xf32, #tpu.memory_space<vmem>>, vector<1x288x4xf32>
    %9 = vector.shape_cast %8 : vector<1x288x4xf32> to vector<288x4xf32>
    %10 = arith.truncf %9 : vector<288x4xf32> to vector<288x4xbf16>
    %c1_8 = arith.constant 1 : index
    %c0_9 = arith.constant 0 : index
    %c0_10 = arith.constant 0 : index
    %11 = vector.load %arg2[%c1_8, %c0_9, %c0_10] : memref<9x4x128xbf16, #tpu.memory_space<vmem>>, vector<1x4x128xbf16>
    %12 = vector.shape_cast %11 : vector<1x4x128xbf16> to vector<4x128xbf16>
    %cst_11 = arith.constant dense<0.000000e+00> : vector<288x128xf32>
    %13 = tpu.matmul %10, %12, %cst_11 {dimension_numbers = #tpu.dot_dimension_numbers<[1], [0], [0], [1], [0, 0, 1, 1], [], []>} : vector<288x4xbf16>, vector<4x128xbf16>, vector<288x128xf32> -> vector<288x128xf32>
    %14 = arith.addf %7, %13 : vector<288x128xf32>
    %c0_12 = arith.constant 0 : index
    %c2 = arith.constant 2 : index
    %c0_13 = arith.constant 0 : index
    %15 = vector.load %arg1[%c0_12, %c2, %c0_13] : memref<1x342x4xf32, #tpu.memory_space<vmem>>, vector<1x288x4xf32>
    %16 = vector.shape_cast %15 : vector<1x288x4xf32> to vector<288x4xf32>
    %17 = arith.truncf %16 : vector<288x4xf32> to vector<288x4xbf16>
    %c2_14 = arith.constant 2 : index
    %c0_15 = arith.constant 0 : index
    %c0_16 = arith.constant 0 : index
    %18 = vector.load %arg2[%c2_14, %c0_15, %c0_16] : memref<9x4x128xbf16, #tpu.memory_space<vmem>>, vector<1x4x128xbf16>
    %19 = vector.shape_cast %18 : vector<1x4x128xbf16> to vector<4x128xbf16>
    %cst_17 = arith.constant dense<0.000000e+00> : vector<288x128xf32>
    %20 = tpu.matmul %17, %19, %cst_17 {dimension_numbers = #tpu.dot_dimension_numbers<[1], [0], [0], [1], [0, 0, 1, 1], [], []>} : vector<288x4xbf16>, vector<4x128xbf16>, vector<288x128xf32> -> vector<288x128xf32>
    %21 = arith.addf %14, %20 : vector<288x128xf32>
    %c0_18 = arith.constant 0 : index
    %c18 = arith.constant 18 : index
    %c0_19 = arith.constant 0 : index
    %22 = vector.load %arg1[%c0_18, %c18, %c0_19] : memref<1x342x4xf32, #tpu.memory_space<vmem>>, vector<1x288x4xf32>
    %23 = vector.shape_cast %22 : vector<1x288x4xf32> to vector<288x4xf32>
    %24 = arith.truncf %23 : vector<288x4xf32> to vector<288x4xbf16>
    %c3 = arith.constant 3 : index
    %c0_20 = arith.constant 0 : index
    %c0_21 = arith.constant 0 : index
    %25 = vector.load %arg2[%c3, %c0_20, %c0_21] : memref<9x4x128xbf16, #tpu.memory_space<vmem>>, vector<1x4x128xbf16>
    %26 = vector.shape_cast %25 : vector<1x4x128xbf16> to vector<4x128xbf16>
    %cst_22 = arith.constant dense<0.000000e+00> : vector<288x128xf32>
    %27 = tpu.matmul %24, %26, %cst_22 {dimension_numbers = #tpu.dot_dimension_numbers<[1], [0], [0], [1], [0, 0, 1, 1], [], []>} : vector<288x4xbf16>, vector<4x128xbf16>, vector<288x128xf32> -> vector<288x128xf32>
    %28 = arith.addf %21, %27 : vector<288x128xf32>
    %c0_23 = arith.constant 0 : index
    %c19 = arith.constant 19 : index
    %c0_24 = arith.constant 0 : index
    %29 = vector.load %arg1[%c0_23, %c19, %c0_24] : memref<1x342x4xf32, #tpu.memory_space<vmem>>, vector<1x288x4xf32>
    %30 = vector.shape_cast %29 : vector<1x288x4xf32> to vector<288x4xf32>
    %31 = arith.truncf %30 : vector<288x4xf32> to vector<288x4xbf16>
    %c4 = arith.constant 4 : index
    %c0_25 = arith.constant 0 : index
    %c0_26 = arith.constant 0 : index
    %32 = vector.load %arg2[%c4, %c0_25, %c0_26] : memref<9x4x128xbf16, #tpu.memory_space<vmem>>, vector<1x4x128xbf16>
    %33 = vector.shape_cast %32 : vector<1x4x128xbf16> to vector<4x128xbf16>
    %cst_27 = arith.constant dense<0.000000e+00> : vector<288x128xf32>
    %34 = tpu.matmul %31, %33, %cst_27 {dimension_numbers = #tpu.dot_dimension_numbers<[1], [0], [0], [1], [0, 0, 1, 1], [], []>} : vector<288x4xbf16>, vector<4x128xbf16>, vector<288x128xf32> -> vector<288x128xf32>
    %35 = arith.addf %28, %34 : vector<288x128xf32>
    %c0_28 = arith.constant 0 : index
    %c20 = arith.constant 20 : index
    %c0_29 = arith.constant 0 : index
    %36 = vector.load %arg1[%c0_28, %c20, %c0_29] : memref<1x342x4xf32, #tpu.memory_space<vmem>>, vector<1x288x4xf32>
    %37 = vector.shape_cast %36 : vector<1x288x4xf32> to vector<288x4xf32>
    %38 = arith.truncf %37 : vector<288x4xf32> to vector<288x4xbf16>
    %c5 = arith.constant 5 : index
    %c0_30 = arith.constant 0 : index
    %c0_31 = arith.constant 0 : index
    %39 = vector.load %arg2[%c5, %c0_30, %c0_31] : memref<9x4x128xbf16, #tpu.memory_space<vmem>>, vector<1x4x128xbf16>
    %40 = vector.shape_cast %39 : vector<1x4x128xbf16> to vector<4x128xbf16>
    %cst_32 = arith.constant dense<0.000000e+00> : vector<288x128xf32>
    %41 = tpu.matmul %38, %40, %cst_32 {dimension_numbers = #tpu.dot_dimension_numbers<[1], [0], [0], [1], [0, 0, 1, 1], [], []>} : vector<288x4xbf16>, vector<4x128xbf16>, vector<288x128xf32> -> vector<288x128xf32>
    %42 = arith.addf %35, %41 : vector<288x128xf32>
    %c0_33 = arith.constant 0 : index
    %c36 = arith.constant 36 : index
    %c0_34 = arith.constant 0 : index
    %43 = vector.load %arg1[%c0_33, %c36, %c0_34] : memref<1x342x4xf32, #tpu.memory_space<vmem>>, vector<1x288x4xf32>
    %44 = vector.shape_cast %43 : vector<1x288x4xf32> to vector<288x4xf32>
    %45 = arith.truncf %44 : vector<288x4xf32> to vector<288x4xbf16>
    %c6 = arith.constant 6 : index
    %c0_35 = arith.constant 0 : index
    %c0_36 = arith.constant 0 : index
    %46 = vector.load %arg2[%c6, %c0_35, %c0_36] : memref<9x4x128xbf16, #tpu.memory_space<vmem>>, vector<1x4x128xbf16>
    %47 = vector.shape_cast %46 : vector<1x4x128xbf16> to vector<4x128xbf16>
    %cst_37 = arith.constant dense<0.000000e+00> : vector<288x128xf32>
    %48 = tpu.matmul %45, %47, %cst_37 {dimension_numbers = #tpu.dot_dimension_numbers<[1], [0], [0], [1], [0, 0, 1, 1], [], []>} : vector<288x4xbf16>, vector<4x128xbf16>, vector<288x128xf32> -> vector<288x128xf32>
    %49 = arith.addf %42, %48 : vector<288x128xf32>
    %c0_38 = arith.constant 0 : index
    %c37 = arith.constant 37 : index
    %c0_39 = arith.constant 0 : index
    %50 = vector.load %arg1[%c0_38, %c37, %c0_39] : memref<1x342x4xf32, #tpu.memory_space<vmem>>, vector<1x288x4xf32>
    %51 = vector.shape_cast %50 : vector<1x288x4xf32> to vector<288x4xf32>
    %52 = arith.truncf %51 : vector<288x4xf32> to vector<288x4xbf16>
    %c7 = arith.constant 7 : index
    %c0_40 = arith.constant 0 : index
    %c0_41 = arith.constant 0 : index
    %53 = vector.load %arg2[%c7, %c0_40, %c0_41] : memref<9x4x128xbf16, #tpu.memory_space<vmem>>, vector<1x4x128xbf16>
    %54 = vector.shape_cast %53 : vector<1x4x128xbf16> to vector<4x128xbf16>
    %cst_42 = arith.constant dense<0.000000e+00> : vector<288x128xf32>
    %55 = tpu.matmul %52, %54, %cst_42 {dimension_numbers = #tpu.dot_dimension_numbers<[1], [0], [0], [1], [0, 0, 1, 1], [], []>} : vector<288x4xbf16>, vector<4x128xbf16>, vector<288x128xf32> -> vector<288x128xf32>
    %56 = arith.addf %49, %55 : vector<288x128xf32>
    %c0_43 = arith.constant 0 : index
    %c38 = arith.constant 38 : index
    %c0_44 = arith.constant 0 : index
    %57 = vector.load %arg1[%c0_43, %c38, %c0_44] : memref<1x342x4xf32, #tpu.memory_space<vmem>>, vector<1x288x4xf32>
    %58 = vector.shape_cast %57 : vector<1x288x4xf32> to vector<288x4xf32>
    %59 = arith.truncf %58 : vector<288x4xf32> to vector<288x4xbf16>
    %c8 = arith.constant 8 : index
    %c0_45 = arith.constant 0 : index
    %c0_46 = arith.constant 0 : index
    %60 = vector.load %arg2[%c8, %c0_45, %c0_46] : memref<9x4x128xbf16, #tpu.memory_space<vmem>>, vector<1x4x128xbf16>
    %61 = vector.shape_cast %60 : vector<1x4x128xbf16> to vector<4x128xbf16>
    %cst_47 = arith.constant dense<0.000000e+00> : vector<288x128xf32>
    %62 = tpu.matmul %59, %61, %cst_47 {dimension_numbers = #tpu.dot_dimension_numbers<[1], [0], [0], [1], [0, 0, 1, 1], [], []>} : vector<288x4xbf16>, vector<4x128xbf16>, vector<288x128xf32> -> vector<288x128xf32>
    %63 = arith.addf %56, %62 : vector<288x128xf32>
    %c0_48 = arith.constant 0 : index
    %c0_49 = arith.constant 0 : index
    %64 = vector.load %arg3[%c0_48, %c0_49] : memref<1x128xf32, #tpu.memory_space<vmem>>, vector<1x128xf32>
    %65 = vector.broadcast %64 : vector<1x128xf32> to vector<288x128xf32>
    %66 = arith.addf %63, %65 : vector<288x128xf32>
    %cst_50 = arith.constant 0.000000e+00 : f32
    %67 = vector.broadcast %cst_50 : f32 to vector<288x128xf32>
    %68 = arith.maximumf %66, %67 : vector<288x128xf32>
    %69 = tpu.iota {dimensions = array<i32: 0>} : vector<288x128xi32>
    %c18_i32 = arith.constant 18 : i32
    %c0_i32 = arith.constant 0 : i32
    %70 = arith.cmpi eq, %c18_i32, %c0_i32 : i32
    %c1_i32 = arith.constant 1 : i32
    %71 = arith.select %70, %c1_i32, %c18_i32 : i32
    %72 = vector.broadcast %71 : i32 to vector<288x128xi32>
    %73 = arith.remsi %69, %72 : vector<288x128xi32>
    %c0_i32_51 = arith.constant 0 : i32
    %74 = vector.broadcast %c0_i32_51 : i32 to vector<288x128xi32>
    %75 = arith.cmpi ne, %73, %74 : vector<288x128xi32>
    %c0_i32_52 = arith.constant 0 : i32
    %76 = vector.broadcast %c0_i32_52 : i32 to vector<288x128xi32>
    %77 = arith.cmpi slt, %73, %76 : vector<288x128xi32>
    %c0_i32_53 = arith.constant 0 : i32
    %78 = arith.cmpi slt, %71, %c0_i32_53 : i32
    %79 = vector.broadcast %78 : i1 to vector<288x128xi1>
    %80 = vector.broadcast %79 : vector<288x128xi1> to vector<288x128xi1>
    %81 = arith.xori %77, %80 : vector<288x128xi1>
    %82 = arith.andi %81, %75 : vector<288x128xi1>
    %83 = vector.broadcast %71 : i32 to vector<288x128xi32>
    %84 = arith.addi %73, %83 : vector<288x128xi32>
    %85 = arith.select %82, %84, %73 : vector<288x128xi1>, vector<288x128xi32>
    %c16_i32 = arith.constant 16 : i32
    %86 = vector.broadcast %c16_i32 : i32 to vector<288x128xi32>
    %87 = arith.cmpi slt, %85, %86 : vector<288x128xi32>
    %cst_54 = arith.constant 0.000000e+00 : f32
    %88 = vector.broadcast %cst_54 : f32 to vector<288x128xf32>
    %89 = arith.select %87, %68, %88 : vector<288x128xi1>, vector<288x128xf32>
    %cst_55 = arith.constant dense<0.000000e+00> : vector<128xf32>
    %90 = vector.multi_reduction <add>, %89, %cst_55 [0] : vector<288x128xf32> to vector<128xf32>
    %91 = vector.shape_cast %90 : vector<128xf32> to vector<1x128xf32>
    %cst_56 = arith.constant 3.906250e-03 : f32
    %92 = vector.broadcast %cst_56 : f32 to vector<1x128xf32>
    %93 = arith.mulf %91, %92 : vector<1x128xf32>
    %c0_57 = arith.constant 0 : index
    %c0_58 = arith.constant 0 : index
    %c0_59 = arith.constant 0 : index
    %94 = vector.load %arg4[%c0_57, %c0_58, %c0_59] : memref<1x1x128xf32, #tpu.memory_space<vmem>>, vector<1x1x128xf32>
    %95 = vector.shape_cast %94 : vector<1x1x128xf32> to vector<1x128xf32>
    %96 = vector.shape_cast %93 : vector<1x128xf32> to vector<1x1x128xf32>
    tpu.vector_store %arg4[%c0_57, %c0_58, %c0_59], %96 {strides = array<i32>} : memref<1x1x128xf32, #tpu.memory_space<vmem>>, vector<1x1x128xf32>,
    return
  }
  func.func @transform_0(%arg0: i32) -> (i32, i32, i32) {
    %c0_i32 = arith.constant 0 : i32
    %c0_i32_0 = arith.constant 0 : i32
    %c0_i32_1 = arith.constant 0 : i32
    return %arg0, %c0_i32, %c0_i32_0 : i32, i32, i32
  }
  func.func @transform_1(%arg0: i32) -> (i32, i32, i32) {
    %c0_i32 = arith.constant 0 : i32
    %c0_i32_0 = arith.constant 0 : i32
    %c0_i32_1 = arith.constant 0 : i32
    %c0_i32_2 = arith.constant 0 : i32
    return %c0_i32, %c0_i32_0, %c0_i32_1 : i32, i32, i32
  }
  func.func @transform_2(%arg0: i32) -> (i32, i32) {
    %c0_i32 = arith.constant 0 : i32
    %c0_i32_0 = arith.constant 0 : i32
    %c0_i32_1 = arith.constant 0 : i32
    return %c0_i32, %c0_i32_0 : i32, i32
  }
  func.func @transform_3(%arg0: i32) -> (i32, i32, i32) {
    %c0_i32 = arith.constant 0 : i32
    %c0_i32_0 = arith.constant 0 : i32
    %c0_i32_1 = arith.constant 0 : i32
    return %arg0, %c0_i32, %c0_i32_0 : i32, i32, i32
  }
}

</mosaic_0001>

<llo_original>
// kernel: feature_model_forward.1
$region0: #{feature_model_forward.1}
  #allocation0 [shape = 'u32[]', space=smem, size = 0x4, offset = 0x4, fixed_abs, tag = 'smem constant byte address 0x4 - core index']
  #allocation1 [shape = 'u32[144,128]{1,0:T(1,128)}', space=vmem, size = 0x12000, scoped, tag = 'internal scratch']
  %s0 = inlined_call_operand.vmem [shape: f32[2,342,4], index: 0, kind: input, shape index: {}]
  %s1 = inlined_call_operand.vmem [shape: bf16[9,4,128], index: 1, kind: input, shape index: {}]
  %s2 = inlined_call_operand.vmem [shape: f32[1,128], index: 2, kind: input, shape index: {}]
  %s3 = inlined_call_operand.hbm [shape: f32[2,1,128], index: 3, kind: output, shape index: {}]
  %s4 = sld [smem:[#allocation0]]
  $region45: #{feature_model_forward.1} parent=0
    _
  %s6 = ssub.s32 1, %s4
  %s7 = scalar_select 0, %s6, %s4
  $region1: #{feature_model_forward.1} parent=0
    #allocation2 [shape = 'u8[1024]{0}', space=vmem, size = 0x400, scoped, tag = 'output window, operand 0']
    #allocation3 [shape = 's32[2]{0}', space=sflag, size = 0x8, scoped, tag = 'scoped memory for feature_model_forward.1']
    %8 = vsyncpa [#allocation3], 0
    %s9 = scalar_lea.sflag [#allocation3], 1
    %10 = vsyncpa %s9, 0
    loop: start=0, step=1, limit=4
    $region2: #{feature_model_forward.1} parent=1 // loop_pre_header
      _
    $region3: #{feature_model_forward.1} parent=1 // loop_header
      %s12 = sphi 0, %s16
      %p13 = scmp.ge.s32.totalorder %s12, 4
      %s22 = sphi 0, %s24
      %s25 = sphi 0, %s22
      %s26 = sphi 0, %s25
      %s42 = sphi 0, %s26
      %s46 = sphi 0, %s46
      %s48 = sphi 0, %s46
      %s49 = sphi 0, %s48
      %s63 = sphi 0, %s49
      %s67 = sphi 0, %s67
      %s69 = sphi 0, %s67
      %s70 = sphi 0, %s69
      %s84 = sphi 0, %s70
      %s90 = sphi 0, %s92
      %s93 = sphi 0, %s90
      %s94 = sphi 0, %s93
      %s110 = sphi 0, %s94
    $region4: #{feature_model_forward.1} parent=1 // loop_header_branch
      %15 = sbr.rel (%p13) target = $region8
    $region5: #{feature_model_forward.1} parent=1 // loop_body
      %s17 = ssub.s32 %s12, 1
      %s18 = ssub.s32 %s12, 2
      %s19 = sadd.s32 %s12, 1
      %s20 = ssub.s32 %s12, %s19
      %p21 = scmp.eq.s32.totalorder %s20, 0
      %s23 = sadd.s32 %s22, 1
      %s24 = scalar_select %p21, %s22, %s23
      %p27 = pneg %p21
      %p28 = scmp.eq.s32.totalorder %s12, 1
      %p29 = por %p27, %p28
      %p30 = scmp.ne.s32.totalorder %s22, %s25
      %p31 = scmp.eq.s32.totalorder %s12, 0
      %p32 = por %p30, %p31
      %p33 = scmp.ne.s32.totalorder %s22, %s25
      %p34 = scmp.eq.s32.totalorder %s17, 1
      %p35 = por %p33, %p34
      %p36 = scmp.ne.s32.totalorder %s25, %s26
      %p37 = scmp.eq.s32.totalorder %s17, 0
      %p38 = por %p36, %p37
      %p39 = scmp.ne.s32.totalorder %s25, %s26
      %p40 = scmp.eq.s32.totalorder %s18, 1
      %p41 = por %p39, %p40
      %p43 = scmp.ne.s32.totalorder %s26, %s42
      %p44 = scmp.eq.s32.totalorder %s18, 0
      %p45 = por %p43, %p44
      %s47 = sadd.s32 %s46, 1
      %p50 = scmp.eq.s32.totalorder %s12, 1
      %p51 = scmp.ne.s32.totalorder %s46, %s48
      %p52 = scmp.eq.s32.totalorder %s12, 0
      %p53 = por %p51, %p52
      %p54 = scmp.ne.s32.totalorder %s46, %s48
      %p55 = scmp.eq.s32.totalorder %s17, 1
      %p56 = por %p54, %p55
      %p57 = scmp.ne.s32.totalorder %s48, %s49
      %p58 = scmp.eq.s32.totalorder %s17, 0
      %p59 = por %p57, %p58
      %p60 = scmp.ne.s32.totalorder %s48, %s49
      %p61 = scmp.eq.s32.totalorder %s18, 1
      %p62 = por %p60, %p61
      %p64 = scmp.ne.s32.totalorder %s49, %s63
      %p65 = scmp.eq.s32.totalorder %s18, 0
      %p66 = por %p64, %p65
      %s68 = sadd.s32 %s67, 1
      %p71 = scmp.eq.s32.totalorder %s12, 1
      %p72 = scmp.ne.s32.totalorder %s67, %s69
      %p73 = scmp.eq.s32.totalorder %s12, 0
      %p74 = por %p72, %p73
      %p75 = scmp.ne.s32.totalorder %s67, %s69
      %p76 = scmp.eq.s32.totalorder %s17, 1
      %p77 = por %p75, %p76
      %p78 = scmp.ne.s32.totalorder %s69, %s70
      %p79 = scmp.eq.s32.totalorder %s17, 0
      %p80 = por %p78, %p79
      %p81 = scmp.ne.s32.totalorder %s69, %s70
      %p82 = scmp.eq.s32.totalorder %s18, 1
      %p83 = por %p81, %p82
      %p85 = scmp.ne.s32.totalorder %s70, %s84
      %p86 = scmp.eq.s32.totalorder %s18, 0
      %p87 = por %p85, %p86
      %s88 = ssub.s32 %s12, %s19
      %p89 = scmp.eq.s32.totalorder %s88, 0
      %s91 = sadd.s32 %s90, 1
      %s92 = scalar_select %p89, %s90, %s91
      %p95 = pneg %p89
      %p96 = scmp.eq.s32.totalorder %s12, 1
      %p97 = por %p95, %p96
      %p98 = scmp.ne.s32.totalorder %s90, %s93
      %p99 = scmp.eq.s32.totalorder %s12, 0
      %p100 = por %p98, %p99
      %p101 = scmp.ne.s32.totalorder %s90, %s93
      %p102 = scmp.eq.s32.totalorder %s17, 1
      %p103 = por %p101, %p102
      %p104 = scmp.ne.s32.totalorder %s93, %s94
      %p105 = scmp.eq.s32.totalorder %s17, 0
      %p106 = por %p104, %p105
      %p107 = scmp.ne.s32.totalorder %s93, %s94
      %p108 = scmp.eq.s32.totalorder %s18, 1
      %p109 = por %p107, %p108
      %p111 = scmp.ne.s32.totalorder %s94, %s110
      %p112 = scmp.eq.s32.totalorder %s18, 0
      %p113 = por %p111, %p112
      %p114 = scmp.le.s32.totalorder 1, %s12
      %p115 = scmp.lt.s32.totalorder %s12, 3
      %p116 = pnand %p114, %p115
      %p117 = pneg %p116
      // Predicated region
      $region9: #{feature_model_forward.1} parent=5 // pred_check
        _
      $region10: #{feature_model_forward.1} parent=5 // pred_check_branch
        %119 = sbr.rel (%p116) target = $region12
      $region11: #{feature_model_forward.1} parent=5 // pred_region
        %s120 = ssub.s32 %s12, 1
        // Predicated region
        $region13: #{feature_model_forward.1} parent=11 // pred_check
          %p121 = pneg %p59
        $region14: #{feature_model_forward.1} parent=11 // pred_check_branch
          %123 = sbr.rel (%p121) target = $region16
        $region15: #{feature_model_forward.1} parent=11 // pred_region
          _
        $region16: #{feature_model_forward.1} parent=11 // pred_fallthru
          _
        // Predicated region
        $region17: #{feature_model_forward.1} parent=11 // pred_check
          %p124 = pneg %p80
        $region18: #{feature_model_forward.1} parent=11 // pred_check_branch
          %126 = sbr.rel (%p124) target = $region20
        $region19: #{feature_model_forward.1} parent=11 // pred_region
          _
        $region20: #{feature_model_forward.1} parent=11 // pred_fallthru
          _
      $region12: #{feature_model_forward.1} parent=5 // pred_fallthru
        _
      %p127 = scmp.lt.s32.totalorder %s12, 2
      // Predicated region
      $region21: #{feature_model_forward.1} parent=5 // pred_check
        %p128 = pneg %p127
      $region22: #{feature_model_forward.1} parent=5 // pred_check_branch
        %130 = sbr.rel (%p128) target = $region24
      $region23: #{feature_model_forward.1} parent=5 // pred_region
        // Predicated region
        $region25: #{feature_model_forward.1} parent=23 // pred_check
          %p131 = pneg %p32
        $region26: #{feature_model_forward.1} parent=23 // pred_check_branch
          %133 = sbr.rel (%p131) target = $region28
        $region27: #{feature_model_forward.1} parent=23 // pred_region
          %p134 = scmp.lt.s32.totalorder %s12, 1
          %s135 = scalar_select %p134, %s12, 1
          %s136 = smul.addr %s135, 43
          %s137 = smul.addr %s136, 8
          %s138 = scalar_lea.vmem %s0, %s137
        $region28: #{feature_model_forward.1} parent=23 // pred_fallthru
          _
      $region24: #{feature_model_forward.1} parent=5 // pred_fallthru
        _
      %p139 = scmp.le.s32.totalorder 1, %s12
      %p140 = scmp.lt.s32.totalorder %s12, 3
      %p141 = pnand %p139, %p140
      %p142 = pneg %p141
      // Predicated region
      $region29: #{feature_model_forward.1} parent=5 // pred_check
        _
      $region30: #{feature_model_forward.1} parent=5 // pred_check_branch
        %144 = sbr.rel (%p141) target = $region32
      $region31: #{feature_model_forward.1} parent=5 // pred_region
        %s145 = ssub.s32 %s12, 1
        %p146 = scmp.lt.s32.totalorder %s17, 1
        %s147 = scalar_select %p146, %s17, 1
        %s148 = smul.addr %s147, 43
        %s149 = smul.addr %s148, 8
        %s150 = scalar_lea.vmem %s0, %s149
        %p151 = pneg %p38
        %p152 = pneg %p35
        %p153 = pneg %p59
        %p154 = pneg %p56
        %p155 = pneg %p80
        %p156 = pneg %p77
        %p157 = pneg %p106
        %p158 = pneg %p103
        %s159 = sand.u32 %s93, 1
        %s160 = scalar_lea.sflag [#allocation3], %s159
        %s161 = sand.u32 %s93, 1
        %s162 = scalar_lea.vmem [#allocation2], %s161
        %p163 = scmp.lt.s32.totalorder %s17, 1
        %s164 = scalar_select %p163, %s17, 1
        %s165 = smul.addr %s164, 43
        %s166 = smul.addr %s165, 8
        %s167 = scalar_lea.vmem %s0, %s166
        %v169 = vld [vmem:[%s167] sm:$0xff]
        %v170 = vld [vmem:[%s167 + $0x8] sm:$0xff]
        %v171 = vld [vmem:[%s167 + $0x10] sm:$0xff]
        %v172 = vld [vmem:[%s167 + $0x18] sm:$0xff]
        %v173 = vld [vmem:[%s167 + $0x20] sm:$0xff]
        %v174 = vld [vmem:[%s167 + $0x28] sm:$0xff]
        %v175 = vld [vmem:[%s167 + $0x30] sm:$0xff]
        %v176 = vld [vmem:[%s167 + $0x38] sm:$0xff]
        %v177 = vld [vmem:[%s167 + $0x40] sm:$0xff]
        %v178 = vld [vmem:[%s167 + $0x48] sm:$0xff]
        %v179 = vld [vmem:[%s167 + $0x50] sm:$0xff]
        %v180 = vld [vmem:[%s167 + $0x58] sm:$0xff]
        %v181 = vld [vmem:[%s167 + $0x60] sm:$0xff]
        %v182 = vld [vmem:[%s167 + $0x68] sm:$0xff]
        %v183 = vld [vmem:[%s167 + $0x70] sm:$0xff]
        %v184 = vld [vmem:[%s167 + $0x78] sm:$0xff]
        %v185 = vld [vmem:[%s167 + $0x80] sm:$0xff]
        %v186 = vld [vmem:[%s167 + $0x88] sm:$0xff]
        %v187 = vld [vmem:[%s167 + $0x90] sm:$0xff]
        %v188 = vld [vmem:[%s167 + $0x98] sm:$0xff]
        %v189 = vld [vmem:[%s167 + $0xa0] sm:$0xff]
        %v190 = vld [vmem:[%s167 + $0xa8] sm:$0xff]
        %v191 = vld [vmem:[%s167 + $0xb0] sm:$0xff]
        %v192 = vld [vmem:[%s167 + $0xb8] sm:$0xff]
        %v193 = vld [vmem:[%s167 + $0xc0] sm:$0xff]
        %v194 = vld [vmem:[%s167 + $0xc8] sm:$0xff]
        %v195 = vld [vmem:[%s167 + $0xd0] sm:$0xff]
        %v196 = vld [vmem:[%s167 + $0xd8] sm:$0xff]
        %v197 = vld [vmem:[%s167 + $0xe0] sm:$0xff]
        %v198 = vld [vmem:[%s167 + $0xe8] sm:$0xff]
        %v199 = vld [vmem:[%s167 + $0xf0] sm:$0xff]
        %v200 = vld [vmem:[%s167 + $0xf8] sm:$0xff]
        %v201 = vld [vmem:[%s167 + $0x100] sm:$0xff]
        %v202 = vld [vmem:[%s167 + $0x108] sm:$0xff]
        %v203 = vld [vmem:[%s167 + $0x110] sm:$0xff]
        %v204 = vld [vmem:[%s167 + $0x118] sm:$0xff]
        %v205 = vpack.c.bf16 %v170, %v169
        %v206 = vpack.c.bf16 %v172, %v171
        %v207 = vpack.c.bf16 %v174, %v173
        %v208 = vpack.c.bf16 %v176, %v175
        %v209 = vpack.c.bf16 %v178, %v177
        %v210 = vpack.c.bf16 %v180, %v179
        %v211 = vpack.c.bf16 %v182, %v181
        %v212 = vpack.c.bf16 %v184, %v183
        %v213 = vpack.c.bf16 %v186, %v185
        %v214 = vpack.c.bf16 %v188, %v187
        %v215 = vpack.c.bf16 %v190, %v189
        %v216 = vpack.c.bf16 %v192, %v191
        %v217 = vpack.c.bf16 %v194, %v193
        %v218 = vpack.c.bf16 %v196, %v195
        %v219 = vpack.c.bf16 %v198, %v197
        %v220 = vpack.c.bf16 %v200, %v199
        %v221 = vpack.c.bf16 %v202, %v201
        %v222 = vpack.c.bf16 %v204, %v203
        %v223 = vld [vmem:[%s1] sm:$0x3]
        %v224 = vld [vmem:[%s167 + $0x1] sm:$0xff]
        %v225 = vld [vmem:[%s167 + $0x9] sm:$0xff]
        %v226 = vld [vmem:[%s167 + $0x11] sm:$0xff]
        %v227 = vld [vmem:[%s167 + $0x19] sm:$0xff]
        %v228 = vld [vmem:[%s167 + $0x21] sm:$0xff]
        %v229 = vld [vmem:[%s167 + $0x29] sm:$0xff]
        %v230 = vld [vmem:[%s167 + $0x31] sm:$0xff]
        %v231 = vld [vmem:[%s167 + $0x39] sm:$0xff]
        %v232 = vld [vmem:[%s167 + $0x41] sm:$0xff]
        %v233 = vld [vmem:[%s167 + $0x49] sm:$0xff]
        %v234 = vld [vmem:[%s167 + $0x51] sm:$0xff]
        %v235 = vld [vmem:[%s167 + $0x59] sm:$0xff]
        %v236 = vld [vmem:[%s167 + $0x61] sm:$0xff]
        %v237 = vld [vmem:[%s167 + $0x69] sm:$0xff]
        %v238 = vld [vmem:[%s167 + $0x71] sm:$0xff]
        %v239 = vld [vmem:[%s167 + $0x79] sm:$0xff]
        %v240 = vld [vmem:[%s167 + $0x81] sm:$0xff]
        %v241 = vld [vmem:[%s167 + $0x89] sm:$0xff]
        %v242 = vld [vmem:[%s167 + $0x91] sm:$0xff]
        %v243 = vld [vmem:[%s167 + $0x99] sm:$0xff]
        %v244 = vld [vmem:[%s167 + $0xa1] sm:$0xff]
        %v245 = vld [vmem:[%s167 + $0xa9] sm:$0xff]
        %v246 = vld [vmem:[%s167 + $0xb1] sm:$0xff]
        %v247 = vld [vmem:[%s167 + $0xb9] sm:$0xff]
        %v248 = vld [vmem:[%s167 + $0xc1] sm:$0xff]
        %v249 = vld [vmem:[%s167 + $0xc9] sm:$0xff]
        %v250 = vld [vmem:[%s167 + $0xd1] sm:$0xff]
        %v251 = vld [vmem:[%s167 + $0xd9] sm:$0xff]
        %v252 = vld [vmem:[%s167 + $0xe1] sm:$0xff]
        %v253 = vld [vmem:[%s167 + $0xe9] sm:$0xff]
        %v254 = vld [vmem:[%s167 + $0xf1] sm:$0xff]
        %v255 = vld [vmem:[%s167 + $0xf9] sm:$0xff]
        %v256 = vld [vmem:[%s167 + $0x101] sm:$0xff]
        %v257 = vld [vmem:[%s167 + $0x109] sm:$0xff]
        %v258 = vld [vmem:[%s167 + $0x111] sm:$0xff]
        %v259 = vld [vmem:[%s167 + $0x119] sm:$0xff]
        %v260 = vpack.c.bf16 %v225, %v224
        %v261 = vpack.c.bf16 %v227, %v226
        %v262 = vpack.c.bf16 %v229, %v228
        %v263 = vpack.c.bf16 %v231, %v230
        %v264 = vpack.c.bf16 %v233, %v232
        %v265 = vpack.c.bf16 %v235, %v234
        %v266 = vpack.c.bf16 %v237, %v236
        %v267 = vpack.c.bf16 %v239, %v238
        %v268 = vpack.c.bf16 %v241, %v240
        %v269 = vpack.c.bf16 %v243, %v242
        %v270 = vpack.c.bf16 %v245, %v244
        %v271 = vpack.c.bf16 %v247, %v246
        %v272 = vpack.c.bf16 %v249, %v248
        %v273 = vpack.c.bf16 %v251, %v250
        %v274 = vpack.c.bf16 %v253, %v252
        %v275 = vpack.c.bf16 %v255, %v254
        %v276 = vpack.c.bf16 %v257, %v256
        %v277 = vpack.c.bf16 %v259, %v258
        %s278 = scalar_lea.vmem %s1, 2
        %v279 = vld [vmem:[%s278] sm:$0x3]
        %vm280 = vcmask 31744
        %v282 = vsel %vm280, %v260, 0
        %v285 = vsel %vm280, %v261, 0
        %v288 = vsel %vm280, %v262, 0
        %v291 = vsel %vm280, %v263, 0
        %v294 = vsel %vm280, %v264, 0
        %v297 = vsel %vm280, %v265, 0
        %v300 = vsel %vm280, %v266, 0
        %v303 = vsel %vm280, %v267, 0
        %v306 = vsel %vm280, %v268, 0
        %v309 = vsel %vm280, %v269, 0
        %v312 = vsel %vm280, %v270, 0
        %v315 = vsel %vm280, %v271, 0
        %v318 = vsel %vm280, %v272, 0
        %v321 = vsel %vm280, %v273, 0
        %v324 = vsel %vm280, %v274, 0
        %v327 = vsel %vm280, %v275, 0
        %v330 = vsel %vm280, %v276, 0
        %v333 = vsel %vm280, %v277, 0
        %vm335 = vcmask 1041408
        %v337 = vsel %vm335, %v279, 0
        %339 = vmatprep.subr.bf16.mxu0 0
        %340 = vmatpush1.bf16.msra.mxu0 %v337
        %341 = vmatprep.subr.bf16.mxu0 0
        %342 = vmatpush1.bf16.msra.mxu0 0
        %343 = vmatprep.subr.bf16.mxu0 0
        %344 = vmatpush1.bf16.msra.mxu0 0
        %345 = vmatprep.subr.bf16.mxu0 0
        %346 = vmatpush1.bf16.msra.mxu0 0
        %347 = vmatprep.subr.bf16.mxu0 0
        %348 = vmatpush1.bf16.msra.mxu0 0
        %349 = vmatprep.subr.bf16.mxu0 0
        %350 = vmatpush1.bf16.msra.mxu0 0
        %351 = vmatprep.subr.bf16.mxu0 0
        %352 = vmatpush1.bf16.msra.mxu0 0
        %353 = vmatprep.subr.bf16.mxu0 0
        %354 = vmatpush1.bf16.msra.mxu0 0
        %355 = vmatprep.subr.bf16.mxu0 0
        %356 = vmatpush1.bf16.msra.mxu0 0
        %357 = vmatprep.subr.bf16.mxu0 0
        %358 = vmatpush1.bf16.msra.mxu0 0
        %359 = vmatprep.subr.bf16.mxu0 0
        %360 = vmatpush1.bf16.msra.mxu0 0
        %361 = vmatprep.subr.bf16.mxu0 0
        %362 = vmatpush1.bf16.msra.mxu0 0
        %363 = vmatprep.subr.bf16.mxu0 0
        %364 = vmatpush1.bf16.msra.mxu0 0
        %365 = vmatprep.subr.bf16.mxu0 0
        %366 = vmatpush1.bf16.msra.mxu0 0
        %367 = vmatprep.subr.bf16.mxu0 0
        %368 = vmatpush1.bf16.msra.mxu0 0
        %369 = vmatprep.subr.bf16.mxu0 0
        %370 = vmatpush1.bf16.msra.mxu0 0
        %371 = vmatprep.mubr.bf16.mxu0 0
        %372 = vmatmul.mubr.bf16.gmra.mrb[0].mxu0 %v282
        %v373 = vpop.f32.mrb[0].mxu0
        %v374 = vadd.f32 0.0, %v373
        %v375 = vpop.f32.mrb[0].mxu0
        %v376 = vpop.f32.mrb[0].mxu0
        %v377 = vadd.f32 0.0, %v376
        %v378 = vpop.f32.mrb[0].mxu0
        %379 = vmatprep.mubr.bf16.mxu0 0
        %380 = vmatmul.mubr.bf16.gmra.mrb[0].mxu0 %v285
        %v381 = vpop.f32.mrb[0].mxu0
        %v382 = vadd.f32 0.0, %v381
        %v383 = vpop.f32.mrb[0].mxu0
        %v384 = vpop.f32.mrb[0].mxu0
        %v385 = vadd.f32 0.0, %v384
        %v386 = vpop.f32.mrb[0].mxu0
        %387 = vmatprep.mubr.bf16.mxu0 0
        %388 = vmatmul.mubr.bf16.gmra.mrb[0].mxu0 %v288
        %v389 = vpop.f32.mrb[0].mxu0
        %v390 = vadd.f32 0.0, %v389
        %v391 = vpop.f32.mrb[0].mxu0
        %v392 = vpop.f32.mrb[0].mxu0
        %v393 = vadd.f32 0.0, %v392
        %v394 = vpop.f32.mrb[0].mxu0
        %395 = vmatprep.mubr.bf16.mxu0 0
        %396 = vmatmul.mubr.bf16.gmra.mrb[0].mxu0 %v291
        %v397 = vpop.f32.mrb[0].mxu0
        %v398 = vadd.f32 0.0, %v397
        %v399 = vpop.f32.mrb[0].mxu0
        %v400 = vpop.f32.mrb[0].mxu0
        %v401 = vadd.f32 0.0, %v400
        %v402 = vpop.f32.mrb[0].mxu0
        %403 = vmatprep.mubr.bf16.mxu0 0
        %404 = vmatmul.mubr.bf16.gmra.mrb[0].mxu0 %v294
        %v405 = vpop.f32.mrb[0].mxu0
        %v406 = vadd.f32 0.0, %v405
        %v407 = vpop.f32.mrb[0].mxu0
        %v408 = vpop.f32.mrb[0].mxu0
        %v409 = vadd.f32 0.0, %v408
        %v410 = vpop.f32.mrb[0].mxu0
        %411 = vmatprep.mubr.bf16.mxu0 0
        %412 = vmatmul.mubr.bf16.gmra.mrb[0].mxu0 %v297
        %v413 = vpop.f32.mrb[0].mxu0
        %v414 = vadd.f32 0.0, %v413
        %v415 = vpop.f32.mrb[0].mxu0
        %v416 = vpop.f32.mrb[0].mxu0
        %v417 = vadd.f32 0.0, %v416
        %v418 = vpop.f32.mrb[0].mxu0
        %419 = vmatprep.mubr.bf16.mxu0 0
        %420 = vmatmul.mubr.bf16.gmra.mrb[0].mxu0 %v300
        %v421 = vpop.f32.mrb[0].mxu0
        %v422 = vadd.f32 0.0, %v421
        %v423 = vpop.f32.mrb[0].mxu0
        %v424 = vpop.f32.mrb[0].mxu0
        %v425 = vadd.f32 0.0, %v424
        %v426 = vpop.f32.mrb[0].mxu0
        %427 = vmatprep.mubr.bf16.mxu0 0
        %428 = vmatmul.mubr.bf16.gmra.mrb[0].mxu0 %v303
        %v429 = vpop.f32.mrb[0].mxu0
        %v430 = vadd.f32 0.0, %v429
        %v431 = vpop.f32.mrb[0].mxu0
        %v432 = vpop.f32.mrb[0].mxu0
        %v433 = vadd.f32 0.0, %v432
        %v434 = vpop.f32.mrb[0].mxu0
        %435 = vmatprep.mubr.bf16.mxu0 0
        %436 = vmatmul.mubr.bf16.gmra.mrb[0].mxu0 %v306
        %v437 = vpop.f32.mrb[0].mxu0
        %v438 = vadd.f32 0.0, %v437
        %v439 = vpop.f32.mrb[0].mxu0
        %v440 = vpop.f32.mrb[0].mxu0
        %v441 = vadd.f32 0.0, %v440
        %v442 = vpop.f32.mrb[0].mxu0
        %443 = vmatprep.mubr.bf16.mxu0 0
        %444 = vmatmul.mubr.bf16.gmra.mrb[0].mxu0 %v309
        %v445 = vpop.f32.mrb[0].mxu0
        %v446 = vadd.f32 0.0, %v445
        %v447 = vpop.f32.mrb[0].mxu0
        %v448 = vpop.f32.mrb[0].mxu0
        %v449 = vadd.f32 0.0, %v448
        %v450 = vpop.f32.mrb[0].mxu0
        %451 = vmatprep.mubr.bf16.mxu0 0
        %452 = vmatmul.mubr.bf16.gmra.mrb[0].mxu0 %v312
        %v453 = vpop.f32.mrb[0].mxu0
        %v454 = vadd.f32 0.0, %v453
        %v455 = vpop.f32.mrb[0].mxu0
        %v456 = vpop.f32.mrb[0].mxu0
        %v457 = vadd.f32 0.0, %v456
        %v458 = vpop.f32.mrb[0].mxu0
        %459 = vmatprep.mubr.bf16.mxu0 0
        %460 = vmatmul.mubr.bf16.gmra.mrb[0].mxu0 %v315
        %v461 = vpop.f32.mrb[0].mxu0
        %v462 = vadd.f32 0.0, %v461
        %v463 = vpop.f32.mrb[0].mxu0
        %v464 = vpop.f32.mrb[0].mxu0
        %v465 = vadd.f32 0.0, %v464
        %v466 = vpop.f32.mrb[0].mxu0
        %467 = vmatprep.mubr.bf16.mxu0 0
        %468 = vmatmul.mubr.bf16.gmra.mrb[0].mxu0 %v318
        %v469 = vpop.f32.mrb[0].mxu0
        %v470 = vadd.f32 0.0, %v469
        %v471 = vpop.f32.mrb[0].mxu0
        %v472 = vpop.f32.mrb[0].mxu0
        %v473 = vadd.f32 0.0, %v472
        %v474 = vpop.f32.mrb[0].mxu0
        %475 = vmatprep.mubr.bf16.mxu0 0
        %476 = vmatmul.mubr.bf16.gmra.mrb[0].mxu0 %v321
        %v477 = vpop.f32.mrb[0].mxu0
        %v478 = vadd.f32 0.0, %v477
        %v479 = vpop.f32.mrb[0].mxu0
        %v480 = vpop.f32.mrb[0].mxu0
        %v481 = vadd.f32 0.0, %v480
        %v482 = vpop.f32.mrb[0].mxu0
        %483 = vmatprep.mubr.bf16.mxu0 0
        %484 = vmatmul.mubr.bf16.gmra.mrb[0].mxu0 %v324
        %v485 = vpop.f32.mrb[0].mxu0
        %v486 = vadd.f32 0.0, %v485
        %v487 = vpop.f32.mrb[0].mxu0
        %v488 = vpop.f32.mrb[0].mxu0
        %v489 = vadd.f32 0.0, %v488
        %v490 = vpop.f32.mrb[0].mxu0
        %491 = vmatprep.mubr.bf16.mxu0 0
        %492 = vmatmul.mubr.bf16.gmra.mrb[0].mxu0 %v327
        %v493 = vpop.f32.mrb[0].mxu0
        %v494 = vadd.f32 0.0, %v493
        %v495 = vpop.f32.mrb[0].mxu0
        %v496 = vpop.f32.mrb[0].mxu0
        %v497 = vadd.f32 0.0, %v496
        %v498 = vpop.f32.mrb[0].mxu0
        %499 = vmatprep.mubr.bf16.mxu0 0
        %500 = vmatmul.mubr.bf16.gmra.mrb[0].mxu0 %v330
        %v501 = vpop.f32.mrb[0].mxu0
        %v502 = vadd.f32 0.0, %v501
        %v503 = vpop.f32.mrb[0].mxu0
        %v504 = vpop.f32.mrb[0].mxu0
        %v505 = vadd.f32 0.0, %v504
        %v506 = vpop.f32.mrb[0].mxu0
        %507 = vmatprep.mubr.bf16.mxu0 0
        %508 = vmatmul.mubr.bf16.gmra.mrb[0].mxu0 %v333
        %v509 = vpop.f32.mrb[0].mxu0
        %v510 = vadd.f32 0.0, %v509
        %v511 = vpop.f32.mrb[0].mxu0
        %v512 = vpop.f32.mrb[0].mxu0
        %v513 = vadd.f32 0.0, %v512
        %v514 = vpop.f32.mrb[0].mxu0
        %515 = vdwg.mxu0
        %v517 = vsel %vm280, %v205, 0
        %v520 = vsel %vm280, %v206, 0
        %v523 = vsel %vm280, %v207, 0
        %v526 = vsel %vm280, %v208, 0
        %v529 = vsel %vm280, %v209, 0
        %v532 = vsel %vm280, %v210, 0
        %v535 = vsel %vm280, %v211, 0
        %v538 = vsel %vm280, %v212, 0
        %v541 = vsel %vm280, %v213, 0
        %v544 = vsel %vm280, %v214, 0
        %v547 = vsel %vm280, %v215, 0
        %v550 = vsel %vm280, %v216, 0
        %v553 = vsel %vm280, %v217, 0
        %v556 = vsel %vm280, %v218, 0
        %v559 = vsel %vm280, %v219, 0
        %v562 = vsel %vm280, %v220, 0
        %v565 = vsel %vm280, %v221, 0
        %v568 = vsel %vm280, %v222, 0
        %v571 = vsel %vm335, %v223, 0
        %573 = vmatprep.subr.bf16.mxu0 0
        %574 = vmatpush1.bf16.msra.mxu0 %v571
        %575 = vmatprep.subr.bf16.mxu0 0
        %576 = vmatpush1.bf16.msra.mxu0 0
        %577 = vmatprep.subr.bf16.mxu0 0
        %578 = vmatpush1.bf16.msra.mxu0 0
        %579 = vmatprep.subr.bf16.mxu0 0
        %580 = vmatpush1.bf16.msra.mxu0 0
        %581 = vmatprep.subr.bf16.mxu0 0
        %582 = vmatpush1.bf16.msra.mxu0 0
        %583 = vmatprep.subr.bf16.mxu0 0
        %584 = vmatpush1.bf16.msra.mxu0 0
        %585 = vmatprep.subr.bf16.mxu0 0
        %586 = vmatpush1.bf16.msra.mxu0 0
        %587 = vmatprep.subr.bf16.mxu0 0
        %588 = vmatpush1.bf16.msra.mxu0 0
        %589 = vmatprep.subr.bf16.mxu0 0
        %590 = vmatpush1.bf16.msra.mxu0 0
        %591 = vmatprep.subr.bf16.mxu0 0
        %592 = vmatpush1.bf16.msra.mxu0 0
        %593 = vmatprep.subr.bf16.mxu0 0
        %594 = vmatpush1.bf16.msra.mxu0 0
        %595 = vmatprep.subr.bf16.mxu0 0
        %596 = vmatpush1.bf16.msra.mxu0 0
        %597 = vmatprep.subr.bf16.mxu0 0
        %598 = vmatpush1.bf16.msra.mxu0 0
        %599 = vmatprep.subr.bf16.mxu0 0
        %600 = vmatpush1.bf16.msra.mxu0 0
        %601 = vmatprep.subr.bf16.mxu0 0
        %602 = vmatpush1.bf16.msra.mxu0 0
        %603 = vmatprep.subr.bf16.mxu0 0
        %604 = vmatpush1.bf16.msra.mxu0 0
        %605 = vmatprep.mubr.bf16.mxu0 0
        %606 = vmatmul.mubr.bf16.gmra.mrb[0].mxu0 %v517
        %v607 = vpop.f32.mrb[0].mxu0
        %v608 = vadd.f32 %v374, %v607
        %v609 = vpop.f32.mrb[0].mxu0
        %v610 = vpop.f32.mrb[0].mxu0
        %v611 = vadd.f32 %v377, %v610
        %v612 = vpop.f32.mrb[0].mxu0
        %613 = vmatprep.mubr.bf16.mxu0 0
        %614 = vmatmul.mubr.bf16.gmra.mrb[0].mxu0 %v520
        %v615 = vpop.f32.mrb[0].mxu0
        %v616 = vadd.f32 %v382, %v615
        %v617 = vpop.f32.mrb[0].mxu0
        %v618 = vpop.f32.mrb[0].mxu0
        %v619 = vadd.f32 %v385, %v618
        %v620 = vpop.f32.mrb[0].mxu0
        %621 = vmatprep.mubr.bf16.mxu0 0
        %622 = vmatmul.mubr.bf16.gmra.mrb[0].mxu0 %v523
        %v623 = vpop.f32.mrb[0].mxu0
        %v624 = vadd.f32 %v390, %v623
        %v625 = vpop.f32.mrb[0].mxu0
        %v626 = vpop.f32.mrb[0].mxu0
        %v627 = vadd.f32 %v393, %v626
        %v628 = vpop.f32.mrb[0].mxu0
        %629 = vmatprep.mubr.bf16.mxu0 0
        %630 = vmatmul.mubr.bf16.gmra.mrb[0].mxu0 %v526
        %v631 = vpop.f32.mrb[0].mxu0
        %v632 = vadd.f32 %v398, %v631
        %v633 = vpop.f32.mrb[0].mxu0
        %v634 = vpop.f32.mrb[0].mxu0
        %v635 = vadd.f32 %v401, %v634
        %v636 = vpop.f32.mrb[0].mxu0
        %637 = vmatprep.mubr.bf16.mxu0 0
        %638 = vmatmul.mubr.bf16.gmra.mrb[0].mxu0 %v529
        %v639 = vpop.f32.mrb[0].mxu0
        %v640 = vadd.f32 %v406, %v639
        %v641 = vpop.f32.mrb[0].mxu0
        %v642 = vpop.f32.mrb[0].mxu0
        %v643 = vadd.f32 %v409, %v642
        %v644 = vpop.f32.mrb[0].mxu0
        %645 = vmatprep.mubr.bf16.mxu0 0
        %646 = vmatmul.mubr.bf16.gmra.mrb[0].mxu0 %v532
        %v647 = vpop.f32.mrb[0].mxu0
        %v648 = vadd.f32 %v414, %v647
        %v649 = vpop.f32.mrb[0].mxu0
        %v650 = vpop.f32.mrb[0].mxu0
        %v651 = vadd.f32 %v417, %v650
        %v652 = vpop.f32.mrb[0].mxu0
        %653 = vmatprep.mubr.bf16.mxu0 0
        %654 = vmatmul.mubr.bf16.gmra.mrb[0].mxu0 %v535
        %v655 = vpop.f32.mrb[0].mxu0
        %v656 = vadd.f32 %v422, %v655
        %v657 = vpop.f32.mrb[0].mxu0
        %v658 = vpop.f32.mrb[0].mxu0
        %v659 = vadd.f32 %v425, %v658
        %v660 = vpop.f32.mrb[0].mxu0
        %661 = vmatprep.mubr.bf16.mxu0 0
        %662 = vmatmul.mubr.bf16.gmra.mrb[0].mxu0 %v538
        %v663 = vpop.f32.mrb[0].mxu0
        %v664 = vadd.f32 %v430, %v663
        %v665 = vpop.f32.mrb[0].mxu0
        %v666 = vpop.f32.mrb[0].mxu0
        %v667 = vadd.f32 %v433, %v666
        %v668 = vpop.f32.mrb[0].mxu0
        %669 = vmatprep.mubr.bf16.mxu0 0
        %670 = vmatmul.mubr.bf16.gmra.mrb[0].mxu0 %v541
        %v671 = vpop.f32.mrb[0].mxu0
        %v672 = vadd.f32 %v438, %v671
        %v673 = vpop.f32.mrb[0].mxu0
        %v674 = vpop.f32.mrb[0].mxu0
        %v675 = vadd.f32 %v441, %v674
        %v676 = vpop.f32.mrb[0].mxu0
        %677 = vmatprep.mubr.bf16.mxu0 0
        %678 = vmatmul.mubr.bf16.gmra.mrb[0].mxu0 %v544
        %v679 = vpop.f32.mrb[0].mxu0
        %v680 = vadd.f32 %v446, %v679
        %v681 = vpop.f32.mrb[0].mxu0
        %v682 = vpop.f32.mrb[0].mxu0
        %v683 = vadd.f32 %v449, %v682
        %v684 = vpop.f32.mrb[0].mxu0
        %685 = vmatprep.mubr.bf16.mxu0 0
        %686 = vmatmul.mubr.bf16.gmra.mrb[0].mxu0 %v547
        %v687 = vpop.f32.mrb[0].mxu0
        %v688 = vadd.f32 %v454, %v687
        %v689 = vpop.f32.mrb[0].mxu0
        %v690 = vpop.f32.mrb[0].mxu0
        %v691 = vadd.f32 %v457, %v690
        %v692 = vpop.f32.mrb[0].mxu0
        %693 = vmatprep.mubr.bf16.mxu0 0
        %694 = vmatmul.mubr.bf16.gmra.mrb[0].mxu0 %v550
        %v695 = vpop.f32.mrb[0].mxu0
        %v696 = vadd.f32 %v462, %v695
        %v697 = vpop.f32.mrb[0].mxu0
        %v698 = vpop.f32.mrb[0].mxu0
        %v699 = vadd.f32 %v465, %v698
        %v700 = vpop.f32.mrb[0].mxu0
        %701 = vmatprep.mubr.bf16.mxu0 0
        %702 = vmatmul.mubr.bf16.gmra.mrb[0].mxu0 %v553
        %v703 = vpop.f32.mrb[0].mxu0
        %v704 = vadd.f32 %v470, %v703
        %v705 = vpop.f32.mrb[0].mxu0
        %v706 = vpop.f32.mrb[0].mxu0
        %v707 = vadd.f32 %v473, %v706
        %v708 = vpop.f32.mrb[0].mxu0
        %709 = vmatprep.mubr.bf16.mxu0 0
        %710 = vmatmul.mubr.bf16.gmra.mrb[0].mxu0 %v556
        %v711 = vpop.f32.mrb[0].mxu0
        %v712 = vadd.f32 %v478, %v711
        %v713 = vpop.f32.mrb[0].mxu0
        %v714 = vpop.f32.mrb[0].mxu0
        %v715 = vadd.f32 %v481, %v714
        %v716 = vpop.f32.mrb[0].mxu0
        %717 = vmatprep.mubr.bf16.mxu0 0
        %718 = vmatmul.mubr.bf16.gmra.mrb[0].mxu0 %v559
        %v719 = vpop.f32.mrb[0].mxu0
        %v720 = vadd.f32 %v486, %v719
        %v721 = vpop.f32.mrb[0].mxu0
        %v722 = vpop.f32.mrb[0].mxu0
        %v723 = vadd.f32 %v489, %v722
        %v724 = vpop.f32.mrb[0].mxu0
        %725 = vmatprep.mubr.bf16.mxu0 0
        %726 = vmatmul.mubr.bf16.gmra.mrb[0].mxu0 %v562
        %v727 = vpop.f32.mrb[0].mxu0
        %v728 = vadd.f32 %v494, %v727
        %v729 = vpop.f32.mrb[0].mxu0
        %v730 = vpop.f32.mrb[0].mxu0
        %v731 = vadd.f32 %v497, %v730
        %v732 = vpop.f32.mrb[0].mxu0
        %733 = vmatprep.mubr.bf16.mxu0 0
        %734 = vmatmul.mubr.bf16.gmra.mrb[0].mxu0 %v565
        %v735 = vpop.f32.mrb[0].mxu0
        %v736 = vadd.f32 %v502, %v735
        %v737 = vpop.f32.mrb[0].mxu0
        %v738 = vpop.f32.mrb[0].mxu0
        %v739 = vadd.f32 %v505, %v738
        %v740 = vpop.f32.mrb[0].mxu0
        %741 = vmatprep.mubr.bf16.mxu0 0
        %742 = vmatmul.mubr.bf16.gmra.mrb[0].mxu0 %v568
        %v743 = vpop.f32.mrb[0].mxu0
        %v744 = vadd.f32 %v510, %v743
        %v745 = vpop.f32.mrb[0].mxu0
        %v746 = vpop.f32.mrb[0].mxu0
        %v747 = vadd.f32 %v513, %v746
        %v748 = vpop.f32.mrb[0].mxu0
        %749 = vdwg.mxu0
        %v750 = vld [vmem:[%s167 + $0x2] sm:$0xff]
        %v751 = vld [vmem:[%s167 + $0xa] sm:$0xff]
        %v752 = vld [vmem:[%s167 + $0x12] sm:$0xff]
        %v753 = vld [vmem:[%s167 + $0x1a] sm:$0xff]
        %v754 = vld [vmem:[%s167 + $0x22] sm:$0xff]
        %v755 = vld [vmem:[%s167 + $0x2a] sm:$0xff]
        %v756 = vld [vmem:[%s167 + $0x32] sm:$0xff]
        %v757 = vld [vmem:[%s167 + $0x3a] sm:$0xff]
        %v758 = vld [vmem:[%s167 + $0x42] sm:$0xff]
        %v759 = vld [vmem:[%s167 + $0x4a] sm:$0xff]
        %v760 = vld [vmem:[%s167 + $0x52] sm:$0xff]
        %v761 = vld [vmem:[%s167 + $0x5a] sm:$0xff]
        %v762 = vld [vmem:[%s167 + $0x62] sm:$0xff]
        %v763 = vld [vmem:[%s167 + $0x6a] sm:$0xff]
        %v764 = vld [vmem:[%s167 + $0x72] sm:$0xff]
        %v765 = vld [vmem:[%s167 + $0x7a] sm:$0xff]
        %v766 = vld [vmem:[%s167 + $0x82] sm:$0xff]
        %v767 = vld [vmem:[%s167 + $0x8a] sm:$0xff]
        %v768 = vld [vmem:[%s167 + $0x92] sm:$0xff]
        %v769 = vld [vmem:[%s167 + $0x9a] sm:$0xff]
        %v770 = vld [vmem:[%s167 + $0xa2] sm:$0xff]
        %v771 = vld [vmem:[%s167 + $0xaa] sm:$0xff]
        %v772 = vld [vmem:[%s167 + $0xb2] sm:$0xff]
        %v773 = vld [vmem:[%s167 + $0xba] sm:$0xff]
        %v774 = vld [vmem:[%s167 + $0xc2] sm:$0xff]
        %v775 = vld [vmem:[%s167 + $0xca] sm:$0xff]
        %v776 = vld [vmem:[%s167 + $0xd2] sm:$0xff]
        %v777 = vld [vmem:[%s167 + $0xda] sm:$0xff]
        %v778 = vld [vmem:[%s167 + $0xe2] sm:$0xff]
        %v779 = vld [vmem:[%s167 + $0xea] sm:$0xff]
        %v780 = vld [vmem:[%s167 + $0xf2] sm:$0xff]
        %v781 = vld [vmem:[%s167 + $0xfa] sm:$0xff]
        %v782 = vld [vmem:[%s167 + $0x102] sm:$0xff]
        %v783 = vld [vmem:[%s167 + $0x10a] sm:$0xff]
        %v784 = vld [vmem:[%s167 + $0x112] sm:$0xff]
        %v785 = vld [vmem:[%s167 + $0x11a] sm:$0xff]
        %v786 = vpack.c.bf16 %v751, %v750
        %v787 = vpack.c.bf16 %v753, %v752
        %v788 = vpack.c.bf16 %v755, %v754
        %v789 = vpack.c.bf16 %v757, %v756
        %v790 = vpack.c.bf16 %v759, %v758
        %v791 = vpack.c.bf16 %v761, %v760
        %v792 = vpack.c.bf16 %v763, %v762
        %v793 = vpack.c.bf16 %v765, %v764
        %v794 = vpack.c.bf16 %v767, %v766
        %v795 = vpack.c.bf16 %v769, %v768
        %v796 = vpack.c.bf16 %v771, %v770
        %v797 = vpack.c.bf16 %v773, %v772
        %v798 = vpack.c.bf16 %v775, %v774
        %v799 = vpack.c.bf16 %v777, %v776
        %v800 = vpack.c.bf16 %v779, %v778
        %v801 = vpack.c.bf16 %v781, %v780
        %v802 = vpack.c.bf16 %v783, %v782
        %v803 = vpack.c.bf16 %v785, %v784
        %s804 = scalar_lea.vmem %s1, 4
        %v805 = vld [vmem:[%s804] sm:$0x3]
        %v807 = vsel %vm280, %v786, 0
        %v810 = vsel %vm280, %v787, 0
        %v813 = vsel %vm280, %v788, 0
        %v816 = vsel %vm280, %v789, 0
        %v819 = vsel %vm280, %v790, 0
        %v822 = vsel %vm280, %v791, 0
        %v825 = vsel %vm280, %v792, 0
        %v828 = vsel %vm280, %v793, 0
        %v831 = vsel %vm280, %v794, 0
        %v834 = vsel %vm280, %v795, 0
        %v837 = vsel %vm280, %v796, 0
        %v840 = vsel %vm280, %v797, 0
        %v843 = vsel %vm280, %v798, 0
        %v846 = vsel %vm280, %v799, 0
        %v849 = vsel %vm280, %v800, 0
        %v852 = vsel %vm280, %v801, 0
        %v855 = vsel %vm280, %v802, 0
        %v858 = vsel %vm280, %v803, 0
        %v861 = vsel %vm335, %v805, 0
        %863 = vmatprep.subr.bf16.mxu0 0
        %864 = vmatpush1.bf16.msra.mxu0 %v861
        %865 = vmatprep.subr.bf16.mxu0 0
        %866 = vmatpush1.bf16.msra.mxu0 0
        %867 = vmatprep.subr.bf16.mxu0 0
        %868 = vmatpush1.bf16.msra.mxu0 0
        %869 = vmatprep.subr.bf16.mxu0 0
        %870 = vmatpush1.bf16.msra.mxu0 0
        %871 = vmatprep.subr.bf16.mxu0 0
        %872 = vmatpush1.bf16.msra.mxu0 0
        %873 = vmatprep.subr.bf16.mxu0 0
        %874 = vmatpush1.bf16.msra.mxu0 0
        %875 = vmatprep.subr.bf16.mxu0 0
        %876 = vmatpush1.bf16.msra.mxu0 0
        %877 = vmatprep.subr.bf16.mxu0 0
        %878 = vmatpush1.bf16.msra.mxu0 0
        %879 = vmatprep.subr.bf16.mxu0 0
        %880 = vmatpush1.bf16.msra.mxu0 0
        %881 = vmatprep.subr.bf16.mxu0 0
        %882 = vmatpush1.bf16.msra.mxu0 0
        %883 = vmatprep.subr.bf16.mxu0 0
        %884 = vmatpush1.bf16.msra.mxu0 0
        %885 = vmatprep.subr.bf16.mxu0 0
        %886 = vmatpush1.bf16.msra.mxu0 0
        %887 = vmatprep.subr.bf16.mxu0 0
        %888 = vmatpush1.bf16.msra.mxu0 0
        %889 = vmatprep.subr.bf16.mxu0 0
        %890 = vmatpush1.bf16.msra.mxu0 0
        %891 = vmatprep.subr.bf16.mxu0 0
        %892 = vmatpush1.bf16.msra.mxu0 0
        %893 = vmatprep.subr.bf16.mxu0 0
        %894 = vmatpush1.bf16.msra.mxu0 0
        %895 = vmatprep.mubr.bf16.mxu0 0
        %896 = vmatmul.mubr.bf16.gmra.mrb[0].mxu0 %v807
        %v897 = vpop.f32.mrb[0].mxu0
        %v898 = vadd.f32 0.0, %v897
        %v899 = vpop.f32.mrb[0].mxu0
        %v900 = vpop.f32.mrb[0].mxu0
        %v901 = vadd.f32 0.0, %v900
        %v902 = vpop.f32.mrb[0].mxu0
        %903 = vmatprep.mubr.bf16.mxu0 0
        %904 = vmatmul.mubr.bf16.gmra.mrb[0].mxu0 %v810
        %v905 = vpop.f32.mrb[0].mxu0
        %v906 = vadd.f32 0.0, %v905
        %v907 = vpop.f32.mrb[0].mxu0
        %v908 = vpop.f32.mrb[0].mxu0
        %v909 = vadd.f32 0.0, %v908
        %v910 = vpop.f32.mrb[0].mxu0
        %911 = vmatprep.mubr.bf16.mxu0 0
        %912 = vmatmul.mubr.bf16.gmra.mrb[0].mxu0 %v813
        %v913 = vpop.f32.mrb[0].mxu0
        %v914 = vadd.f32 0.0, %v913
        %v915 = vpop.f32.mrb[0].mxu0
        %v916 = vpop.f32.mrb[0].mxu0
        %v917 = vadd.f32 0.0, %v916
        %v918 = vpop.f32.mrb[0].mxu0
        %919 = vmatprep.mubr.bf16.mxu0 0
        %920 = vmatmul.mubr.bf16.gmra.mrb[0].mxu0 %v816
        %v921 = vpop.f32.mrb[0].mxu0
        %v922 = vadd.f32 0.0, %v921
        %v923 = vpop.f32.mrb[0].mxu0
        %v924 = vpop.f32.mrb[0].mxu0
        %v925 = vadd.f32 0.0, %v924
        %v926 = vpop.f32.mrb[0].mxu0
        %927 = vmatprep.mubr.bf16.mxu0 0
        %928 = vmatmul.mubr.bf16.gmra.mrb[0].mxu0 %v819
        %v929 = vpop.f32.mrb[0].mxu0
        %v930 = vadd.f32 0.0, %v929
        %v931 = vpop.f32.mrb[0].mxu0
        %v932 = vpop.f32.mrb[0].mxu0
        %v933 = vadd.f32 0.0, %v932
        %v934 = vpop.f32.mrb[0].mxu0
        %935 = vmatprep.mubr.bf16.mxu0 0
        %936 = vmatmul.mubr.bf16.gmra.mrb[0].mxu0 %v822
        %v937 = vpop.f32.mrb[0].mxu0
        %v938 = vadd.f32 0.0, %v937
        %v939 = vpop.f32.mrb[0].mxu0
        %v940 = vpop.f32.mrb[0].mxu0
        %v941 = vadd.f32 0.0, %v940
        %v942 = vpop.f32.mrb[0].mxu0
        %943 = vmatprep.mubr.bf16.mxu0 0
        %944 = vmatmul.mubr.bf16.gmra.mrb[0].mxu0 %v825
        %v945 = vpop.f32.mrb[0].mxu0
        %v946 = vadd.f32 0.0, %v945
        %v947 = vpop.f32.mrb[0].mxu0
        %v948 = vpop.f32.mrb[0].mxu0
        %v949 = vadd.f32 0.0, %v948
        %v950 = vpop.f32.mrb[0].mxu0
        %951 = vmatprep.mubr.bf16.mxu0 0
        %952 = vmatmul.mubr.bf16.gmra.mrb[0].mxu0 %v828
        %v953 = vpop.f32.mrb[0].mxu0
        %v954 = vadd.f32 0.0, %v953
        %v955 = vpop.f32.mrb[0].mxu0
        %v956 = vpop.f32.mrb[0].mxu0
        %v957 = vadd.f32 0.0, %v956
        %v958 = vpop.f32.mrb[0].mxu0
        %959 = vmatprep.mubr.bf16.mxu0 0
        %960 = vmatmul.mubr.bf16.gmra.mrb[0].mxu0 %v831
        %v961 = vpop.f32.mrb[0].mxu0
        %v962 = vadd.f32 0.0, %v961
        %v963 = vpop.f32.mrb[0].mxu0
        %v964 = vpop.f32.mrb[0].mxu0
        %v965 = vadd.f32 0.0, %v964
        %v966 = vpop.f32.mrb[0].mxu0
        %967 = vmatprep.mubr.bf16.mxu0 0
        %968 = vmatmul.mubr.bf16.gmra.mrb[0].mxu0 %v834
        %v969 = vpop.f32.mrb[0].mxu0
        %v970 = vadd.f32 0.0, %v969
        %v971 = vpop.f32.mrb[0].mxu0
        %v972 = vpop.f32.mrb[0].mxu0
        %v973 = vadd.f32 0.0, %v972
        %v974 = vpop.f32.mrb[0].mxu0
        %975 = vmatprep.mubr.bf16.mxu0 0
        %976 = vmatmul.mubr.bf16.gmra.mrb[0].mxu0 %v837
        %v977 = vpop.f32.mrb[0].mxu0
        %v978 = vadd.f32 0.0, %v977
        %v979 = vpop.f32.mrb[0].mxu0
        %v980 = vpop.f32.mrb[0].mxu0
        %v981 = vadd.f32 0.0, %v980
        %v982 = vpop.f32.mrb[0].mxu0
        %983 = vmatprep.mubr.bf16.mxu0 0
        %984 = vmatmul.mubr.bf16.gmra.mrb[0].mxu0 %v840
        %v985 = vpop.f32.mrb[0].mxu0
        %v986 = vadd.f32 0.0, %v985
        %v987 = vpop.f32.mrb[0].mxu0
        %v988 = vpop.f32.mrb[0].mxu0
        %v989 = vadd.f32 0.0, %v988
        %v990 = vpop.f32.mrb[0].mxu0
        %991 = vmatprep.mubr.bf16.mxu0 0
        %992 = vmatmul.mubr.bf16.gmra.mrb[0].mxu0 %v843
        %v993 = vpop.f32.mrb[0].mxu0
        %v994 = vadd.f32 0.0, %v993
        %v995 = vpop.f32.mrb[0].mxu0
        %v996 = vpop.f32.mrb[0].mxu0
        %v997 = vadd.f32 0.0, %v996
        %v998 = vpop.f32.mrb[0].mxu0
        %999 = vmatprep.mubr.bf16.mxu0 0
        %1000 = vmatmul.mubr.bf16.gmra.mrb[0].mxu0 %v846
        %v1001 = vpop.f32.mrb[0].mxu0
        %v1002 = vadd.f32 0.0, %v1001
        %v1003 = vpop.f32.mrb[0].mxu0
        %v1004 = vpop.f32.mrb[0].mxu0
        %v1005 = vadd.f32 0.0, %v1004
        %v1006 = vpop.f32.mrb[0].mxu0
        %1007 = vmatprep.mubr.bf16.mxu0 0
        %1008 = vmatmul.mubr.bf16.gmra.mrb[0].mxu0 %v849
        %v1009 = vpop.f32.mrb[0].mxu0
        %v1010 = vadd.f32 0.0, %v1009
        %v1011 = vpop.f32.mrb[0].mxu0
        %v1012 = vpop.f32.mrb[0].mxu0
        %v1013 = vadd.f32 0.0, %v1012
        %v1014 = vpop.f32.mrb[0].mxu0
        %1015 = vmatprep.mubr.bf16.mxu0 0
        %1016 = vmatmul.mubr.bf16.gmra.mrb[0].mxu0 %v852
        %v1017 = vpop.f32.mrb[0].mxu0
        %v1018 = vadd.f32 0.0, %v1017
        %v1019 = vpop.f32.mrb[0].mxu0
        %v1020 = vpop.f32.mrb[0].mxu0
        %v1021 = vadd.f32 0.0, %v1020
        %v1022 = vpop.f32.mrb[0].mxu0
        %1023 = vmatprep.mubr.bf16.mxu0 0
        %1024 = vmatmul.mubr.bf16.gmra.mrb[0].mxu0 %v855
        %v1025 = vpop.f32.mrb[0].mxu0
        %v1026 = vadd.f32 0.0, %v1025
        %v1027 = vpop.f32.mrb[0].mxu0
        %v1028 = vpop.f32.mrb[0].mxu0
        %v1029 = vadd.f32 0.0, %v1028
        %v1030 = vpop.f32.mrb[0].mxu0
        %1031 = vmatprep.mubr.bf16.mxu0 0
        %1032 = vmatmul.mubr.bf16.gmra.mrb[0].mxu0 %v858
        %v1033 = vpop.f32.mrb[0].mxu0
        %v1034 = vadd.f32 0.0, %v1033
        %v1035 = vpop.f32.mrb[0].mxu0
        %v1036 = vpop.f32.mrb[0].mxu0
        %v1037 = vadd.f32 0.0, %v1036
        %v1038 = vpop.f32.mrb[0].mxu0
        %1039 = vdwg.mxu0
        %v1040 = vadd.f32 %v608, %v898
        %v1041 = vadd.f32 %v611, %v901
        %v1042 = vadd.f32 %v616, %v906
        %v1043 = vadd.f32 %v619, %v909
        %v1044 = vadd.f32 %v624, %v914
        %v1045 = vadd.f32 %v627, %v917
        %v1046 = vadd.f32 %v632, %v922
        %v1047 = vadd.f32 %v635, %v925
        %v1048 = vadd.f32 %v640, %v930
        %v1049 = vadd.f32 %v643, %v933
        %v1050 = vadd.f32 %v648, %v938
        %v1051 = vadd.f32 %v651, %v941
        %v1052 = vadd.f32 %v656, %v946
        %v1053 = vadd.f32 %v659, %v949
        %v1054 = vadd.f32 %v664, %v954
        %v1055 = vadd.f32 %v667, %v957
        %v1056 = vadd.f32 %v672, %v962
        %v1057 = vadd.f32 %v675, %v965
        %v1058 = vadd.f32 %v680, %v970
        %v1059 = vadd.f32 %v683, %v973
        %v1060 = vadd.f32 %v688, %v978
        %v1061 = vadd.f32 %v691, %v981
        %v1062 = vadd.f32 %v696, %v986
        %v1063 = vadd.f32 %v699, %v989
        %v1064 = vadd.f32 %v704, %v994
        %v1065 = vadd.f32 %v707, %v997
        %v1066 = vadd.f32 %v712, %v1002
        %v1067 = vadd.f32 %v715, %v1005
        %v1068 = vadd.f32 %v720, %v1010
        %v1069 = vadd.f32 %v723, %v1013
        %v1070 = vadd.f32 %v728, %v1018
        %v1071 = vadd.f32 %v731, %v1021
        %v1072 = vadd.f32 %v736, %v1026
        %v1073 = vadd.f32 %v739, %v1029
        %v1074 = vadd.f32 %v744, %v1034
        %v1075 = vadd.f32 %v747, %v1037
        %v1076 = vld [vmem:[%s167 + $0x12] sm:$0xff]
        %v1077 = vld [vmem:[%s167 + $0x1a] sm:$0xff]
        %v1078 = vld [vmem:[%s167 + $0x22] sm:$0xff]
        %v1079 = vld [vmem:[%s167 + $0x2a] sm:$0xff]
        %v1080 = vld [vmem:[%s167 + $0x32] sm:$0xff]
        %v1081 = vld [vmem:[%s167 + $0x3a] sm:$0xff]
        %v1082 = vld [vmem:[%s167 + $0x42] sm:$0xff]
        %v1083 = vld [vmem:[%s167 + $0x4a] sm:$0xff]
        %v1084 = vld [vmem:[%s167 + $0x52] sm:$0xff]
        %v1085 = vld [vmem:[%s167 + $0x5a] sm:$0xff]
        %v1086 = vld [vmem:[%s167 + $0x62] sm:$0xff]
        %v1087 = vld [vmem:[%s167 + $0x6a] sm:$0xff]
        %v1088 = vld [vmem:[%s167 + $0x72] sm:$0xff]
        %v1089 = vld [vmem:[%s167 + $0x7a] sm:$0xff]
        %v1090 = vld [vmem:[%s167 + $0x82] sm:$0xff]
        %v1091 = vld [vmem:[%s167 + $0x8a] sm:$0xff]
        %v1092 = vld [vmem:[%s167 + $0x92] sm:$0xff]
        %v1093 = vld [vmem:[%s167 + $0x9a] sm:$0xff]
        %v1094 = vld [vmem:[%s167 + $0xa2] sm:$0xff]
        %v1095 = vld [vmem:[%s167 + $0xaa] sm:$0xff]
        %v1096 = vld [vmem:[%s167 + $0xb2] sm:$0xff]
        %v1097 = vld [vmem:[%s167 + $0xba] sm:$0xff]
        %v1098 = vld [vmem:[%s167 + $0xc2] sm:$0xff]
        %v1099 = vld [vmem:[%s167 + $0xca] sm:$0xff]
        %v1100 = vld [vmem:[%s167 + $0xd2] sm:$0xff]
        %v1101 = vld [vmem:[%s167 + $0xda] sm:$0xff]
        %v1102 = vld [vmem:[%s167 + $0xe2] sm:$0xff]
        %v1103 = vld [vmem:[%s167 + $0xea] sm:$0xff]
        %v1104 = vld [vmem:[%s167 + $0xf2] sm:$0xff]
        %v1105 = vld [vmem:[%s167 + $0xfa] sm:$0xff]
        %v1106 = vld [vmem:[%s167 + $0x102] sm:$0xff]
        %v1107 = vld [vmem:[%s167 + $0x10a] sm:$0xff]
        %v1108 = vld [vmem:[%s167 + $0x112] sm:$0xff]
        %v1109 = vld [vmem:[%s167 + $0x11a] sm:$0xff]
        %v1110 = vld [vmem:[%s167 + $0x122] sm:$0xff]
        %v1111 = vld [vmem:[%s167 + $0x12a] sm:$0xff]
        %v1112 = vpack.c.bf16 %v1077, %v1076
        %v1113 = vpack.c.bf16 %v1079, %v1078
        %v1114 = vpack.c.bf16 %v1081, %v1080
        %v1115 = vpack.c.bf16 %v1083, %v1082
        %v1116 = vpack.c.bf16 %v1085, %v1084
        %v1117 = vpack.c.bf16 %v1087, %v1086
        %v1118 = vpack.c.bf16 %v1089, %v1088
        %v1119 = vpack.c.bf16 %v1091, %v1090
        %v1120 = vpack.c.bf16 %v1093, %v1092
        %v1121 = vpack.c.bf16 %v1095, %v1094
        %v1122 = vpack.c.bf16 %v1097, %v1096
        %v1123 = vpack.c.bf16 %v1099, %v1098
        %v1124 = vpack.c.bf16 %v1101, %v1100
        %v1125 = vpack.c.bf16 %v1103, %v1102
        %v1126 = vpack.c.bf16 %v1105, %v1104
        %v1127 = vpack.c.bf16 %v1107, %v1106
        %v1128 = vpack.c.bf16 %v1109, %v1108
        %v1129 = vpack.c.bf16 %v1111, %v1110
        %s1130 = scalar_lea.vmem %s1, 6
        %v1131 = vld [vmem:[%s1130] sm:$0x3]
        %v1133 = vsel %vm280, %v1112, 0
        %v1136 = vsel %vm280, %v1113, 0
        %v1139 = vsel %vm280, %v1114, 0
        %v1142 = vsel %vm280, %v1115, 0
        %v1145 = vsel %vm280, %v1116, 0
        %v1148 = vsel %vm280, %v1117, 0
        %v1151 = vsel %vm280, %v1118, 0
        %v1154 = vsel %vm280, %v1119, 0
        %v1157 = vsel %vm280, %v1120, 0
        %v1160 = vsel %vm280, %v1121, 0
        %v1163 = vsel %vm280, %v1122, 0
        %v1166 = vsel %vm280, %v1123, 0
        %v1169 = vsel %vm280, %v1124, 0
        %v1172 = vsel %vm280, %v1125, 0
        %v1175 = vsel %vm280, %v1126, 0
        %v1178 = vsel %vm280, %v1127, 0
        %v1181 = vsel %vm280, %v1128, 0
        %v1184 = vsel %vm280, %v1129, 0
        %v1187 = vsel %vm335, %v1131, 0
        %1189 = vmatprep.subr.bf16.mxu0 0
        %1190 = vmatpush1.bf16.msra.mxu0 %v1187
        %1191 = vmatprep.subr.bf16.mxu0 0
        %1192 = vmatpush1.bf16.msra.mxu0 0
        %1193 = vmatprep.subr.bf16.mxu0 0
        %1194 = vmatpush1.bf16.msra.mxu0 0
        %1195 = vmatprep.subr.bf16.mxu0 0
        %1196 = vmatpush1.bf16.msra.mxu0 0
        %1197 = vmatprep.subr.bf16.mxu0 0
        %1198 = vmatpush1.bf16.msra.mxu0 0
        %1199 = vmatprep.subr.bf16.mxu0 0
        %1200 = vmatpush1.bf16.msra.mxu0 0
        %1201 = vmatprep.subr.bf16.mxu0 0
        %1202 = vmatpush1.bf16.msra.mxu0 0
        %1203 = vmatprep.subr.bf16.mxu0 0
        %1204 = vmatpush1.bf16.msra.mxu0 0
        %1205 = vmatprep.subr.bf16.mxu0 0
        %1206 = vmatpush1.bf16.msra.mxu0 0
        %1207 = vmatprep.subr.bf16.mxu0 0
        %1208 = vmatpush1.bf16.msra.mxu0 0
        %1209 = vmatprep.subr.bf16.mxu0 0
        %1210 = vmatpush1.bf16.msra.mxu0 0
        %1211 = vmatprep.subr.bf16.mxu0 0
        %1212 = vmatpush1.bf16.msra.mxu0 0
        %1213 = vmatprep.subr.bf16.mxu0 0
        %1214 = vmatpush1.bf16.msra.mxu0 0
        %1215 = vmatprep.subr.bf16.mxu0 0
        %1216 = vmatpush1.bf16.msra.mxu0 0
        %1217 = vmatprep.subr.bf16.mxu0 0
        %1218 = vmatpush1.bf16.msra.mxu0 0
        %1219 = vmatprep.subr.bf16.mxu0 0
        %1220 = vmatpush1.bf16.msra.mxu0 0
        %1221 = vmatprep.mubr.bf16.mxu0 0
        %1222 = vmatmul.mubr.bf16.gmra.mrb[0].mxu0 %v1133
        %v1223 = vpop.f32.mrb[0].mxu0
        %v1224 = vadd.f32 0.0, %v1223
        %v1225 = vpop.f32.mrb[0].mxu0
        %v1226 = vpop.f32.mrb[0].mxu0
        %v1227 = vadd.f32 0.0, %v1226
        %v1228 = vpop.f32.mrb[0].mxu0
        %1229 = vmatprep.mubr.bf16.mxu0 0
        %1230 = vmatmul.mubr.bf16.gmra.mrb[0].mxu0 %v1136
        %v1231 = vpop.f32.mrb[0].mxu0
        %v1232 = vadd.f32 0.0, %v1231
        %v1233 = vpop.f32.mrb[0].mxu0
        %v1234 = vpop.f32.mrb[0].mxu0
        %v1235 = vadd.f32 0.0, %v1234
        %v1236 = vpop.f32.mrb[0].mxu0
        %1237 = vmatprep.mubr.bf16.mxu0 0
        %1238 = vmatmul.mubr.bf16.gmra.mrb[0].mxu0 %v1139
        %v1239 = vpop.f32.mrb[0].mxu0
        %v1240 = vadd.f32 0.0, %v1239
        %v1241 = vpop.f32.mrb[0].mxu0
        %v1242 = vpop.f32.mrb[0].mxu0
        %v1243 = vadd.f32 0.0, %v1242
        %v1244 = vpop.f32.mrb[0].mxu0
        %1245 = vmatprep.mubr.bf16.mxu0 0
        %1246 = vmatmul.mubr.bf16.gmra.mrb[0].mxu0 %v1142
        %v1247 = vpop.f32.mrb[0].mxu0
        %v1248 = vadd.f32 0.0, %v1247
        %v1249 = vpop.f32.mrb[0].mxu0
        %v1250 = vpop.f32.mrb[0].mxu0
        %v1251 = vadd.f32 0.0, %v1250
        %v1252 = vpop.f32.mrb[0].mxu0
        %1253 = vmatprep.mubr.bf16.mxu0 0
        %1254 = vmatmul.mubr.bf16.gmra.mrb[0].mxu0 %v1145
        %v1255 = vpop.f32.mrb[0].mxu0
        %v1256 = vadd.f32 0.0, %v1255
        %v1257 = vpop.f32.mrb[0].mxu0
        %v1258 = vpop.f32.mrb[0].mxu0
        %v1259 = vadd.f32 0.0, %v1258
        %v1260 = vpop.f32.mrb[0].mxu0
        %1261 = vmatprep.mubr.bf16.mxu0 0
        %1262 = vmatmul.mubr.bf16.gmra.mrb[0].mxu0 %v1148
        %v1263 = vpop.f32.mrb[0].mxu0
        %v1264 = vadd.f32 0.0, %v1263
        %v1265 = vpop.f32.mrb[0].mxu0
        %v1266 = vpop.f32.mrb[0].mxu0
        %v1267 = vadd.f32 0.0, %v1266
        %v1268 = vpop.f32.mrb[0].mxu0
        %1269 = vmatprep.mubr.bf16.mxu0 0
        %1270 = vmatmul.mubr.bf16.gmra.mrb[0].mxu0 %v1151
        %v1271 = vpop.f32.mrb[0].mxu0
        %v1272 = vadd.f32 0.0, %v1271
        %v1273 = vpop.f32.mrb[0].mxu0
        %v1274 = vpop.f32.mrb[0].mxu0
        %v1275 = vadd.f32 0.0, %v1274
        %v1276 = vpop.f32.mrb[0].mxu0
        %1277 = vmatprep.mubr.bf16.mxu0 0
        %1278 = vmatmul.mubr.bf16.gmra.mrb[0].mxu0 %v1154
        %v1279 = vpop.f32.mrb[0].mxu0
        %v1280 = vadd.f32 0.0, %v1279
        %v1281 = vpop.f32.mrb[0].mxu0
        %v1282 = vpop.f32.mrb[0].mxu0
        %v1283 = vadd.f32 0.0, %v1282
        %v1284 = vpop.f32.mrb[0].mxu0
        %1285 = vmatprep.mubr.bf16.mxu0 0
        %1286 = vmatmul.mubr.bf16.gmra.mrb[0].mxu0 %v1157
        %v1287 = vpop.f32.mrb[0].mxu0
        %v1288 = vadd.f32 0.0, %v1287
        %v1289 = vpop.f32.mrb[0].mxu0
        %v1290 = vpop.f32.mrb[0].mxu0
        %v1291 = vadd.f32 0.0, %v1290
        %v1292 = vpop.f32.mrb[0].mxu0
        %1293 = vmatprep.mubr.bf16.mxu0 0
        %1294 = vmatmul.mubr.bf16.gmra.mrb[0].mxu0 %v1160
        %v1295 = vpop.f32.mrb[0].mxu0
        %v1296 = vadd.f32 0.0, %v1295
        %v1297 = vpop.f32.mrb[0].mxu0
        %v1298 = vpop.f32.mrb[0].mxu0
        %v1299 = vadd.f32 0.0, %v1298
        %v1300 = vpop.f32.mrb[0].mxu0
        %1301 = vmatprep.mubr.bf16.mxu0 0
        %1302 = vmatmul.mubr.bf16.gmra.mrb[0].mxu0 %v1163
        %v1303 = vpop.f32.mrb[0].mxu0
        %v1304 = vadd.f32 0.0, %v1303
        %v1305 = vpop.f32.mrb[0].mxu0
        %v1306 = vpop.f32.mrb[0].mxu0
        %v1307 = vadd.f32 0.0, %v1306
        %v1308 = vpop.f32.mrb[0].mxu0
        %1309 = vmatprep.mubr.bf16.mxu0 0
        %1310 = vmatmul.mubr.bf16.gmra.mrb[0].mxu0 %v1166
        %v1311 = vpop.f32.mrb[0].mxu0
        %v1312 = vadd.f32 0.0, %v1311
        %v1313 = vpop.f32.mrb[0].mxu0
        %v1314 = vpop.f32.mrb[0].mxu0
        %v1315 = vadd.f32 0.0, %v1314
        %v1316 = vpop.f32.mrb[0].mxu0
        %1317 = vmatprep.mubr.bf16.mxu0 0
        %1318 = vmatmul.mubr.bf16.gmra.mrb[0].mxu0 %v1169
        %v1319 = vpop.f32.mrb[0].mxu0
        %v1320 = vadd.f32 0.0, %v1319
        %v1321 = vpop.f32.mrb[0].mxu0
        %v1322 = vpop.f32.mrb[0].mxu0
        %v1323 = vadd.f32 0.0, %v1322
        %v1324 = vpop.f32.mrb[0].mxu0
        %1325 = vmatprep.mubr.bf16.mxu0 0
        %1326 = vmatmul.mubr.bf16.gmra.mrb[0].mxu0 %v1172
        %v1327 = vpop.f32.mrb[0].mxu0
        %v1328 = vadd.f32 0.0, %v1327
        %v1329 = vpop.f32.mrb[0].mxu0
        %v1330 = vpop.f32.mrb[0].mxu0
        %v1331 = vadd.f32 0.0, %v1330
        %v1332 = vpop.f32.mrb[0].mxu0
        %1333 = vmatprep.mubr.bf16.mxu0 0
        %1334 = vmatmul.mubr.bf16.gmra.mrb[0].mxu0 %v1175
        %v1335 = vpop.f32.mrb[0].mxu0
        %v1336 = vadd.f32 0.0, %v1335
        %v1337 = vpop.f32.mrb[0].mxu0
        %v1338 = vpop.f32.mrb[0].mxu0
        %v1339 = vadd.f32 0.0, %v1338
        %v1340 = vpop.f32.mrb[0].mxu0
        %1341 = vmatprep.mubr.bf16.mxu0 0
        %1342 = vmatmul.mubr.bf16.gmra.mrb[0].mxu0 %v1178
        %v1343 = vpop.f32.mrb[0].mxu0
        %v1344 = vadd.f32 0.0, %v1343
        %v1345 = vpop.f32.mrb[0].mxu0
        %v1346 = vpop.f32.mrb[0].mxu0
        %v1347 = vadd.f32 0.0, %v1346
        %v1348 = vpop.f32.mrb[0].mxu0
        %1349 = vmatprep.mubr.bf16.mxu0 0
        %1350 = vmatmul.mubr.bf16.gmra.mrb[0].mxu0 %v1181
        %v1351 = vpop.f32.mrb[0].mxu0
        %v1352 = vadd.f32 0.0, %v1351
        %v1353 = vpop.f32.mrb[0].mxu0
        %v1354 = vpop.f32.mrb[0].mxu0
        %v1355 = vadd.f32 0.0, %v1354
        %v1356 = vpop.f32.mrb[0].mxu0
        %1357 = vmatprep.mubr.bf16.mxu0 0
        %1358 = vmatmul.mubr.bf16.gmra.mrb[0].mxu0 %v1184
        %v1359 = vpop.f32.mrb[0].mxu0
        %v1360 = vadd.f32 0.0, %v1359
        %v1361 = vpop.f32.mrb[0].mxu0
        %v1362 = vpop.f32.mrb[0].mxu0
        %v1363 = vadd.f32 0.0, %v1362
        %v1364 = vpop.f32.mrb[0].mxu0
        %1365 = vdwg.mxu0
        %v1366 = vadd.f32 %v1040, %v1224
        %v1367 = vadd.f32 %v1041, %v1227
        %v1368 = vadd.f32 %v1042, %v1232
        %v1369 = vadd.f32 %v1043, %v1235
        %v1370 = vadd.f32 %v1044, %v1240
        %v1371 = vadd.f32 %v1045, %v1243
        %v1372 = vadd.f32 %v1046, %v1248
        %v1373 = vadd.f32 %v1047, %v1251
        %v1374 = vadd.f32 %v1048, %v1256
        %v1375 = vadd.f32 %v1049, %v1259
        %v1376 = vadd.f32 %v1050, %v1264
        %v1377 = vadd.f32 %v1051, %v1267
        %v1378 = vadd.f32 %v1052, %v1272
        %v1379 = vadd.f32 %v1053, %v1275
        %v1380 = vadd.f32 %v1054, %v1280
        %v1381 = vadd.f32 %v1055, %v1283
        %v1382 = vadd.f32 %v1056, %v1288
        %v1383 = vadd.f32 %v1057, %v1291
        %v1384 = vadd.f32 %v1058, %v1296
        %v1385 = vadd.f32 %v1059, %v1299
        %v1386 = vadd.f32 %v1060, %v1304
        %v1387 = vadd.f32 %v1061, %v1307
        %v1388 = vadd.f32 %v1062, %v1312
        %v1389 = vadd.f32 %v1063, %v1315
        %v1390 = vadd.f32 %v1064, %v1320
        %v1391 = vadd.f32 %v1065, %v1323
        %v1392 = vadd.f32 %v1066, %v1328
        %v1393 = vadd.f32 %v1067, %v1331
        %v1394 = vadd.f32 %v1068, %v1336
        %v1395 = vadd.f32 %v1069, %v1339
        %v1396 = vadd.f32 %v1070, %v1344
        %v1397 = vadd.f32 %v1071, %v1347
        %v1398 = vadd.f32 %v1072, %v1352
        %v1399 = vadd.f32 %v1073, %v1355
        %v1400 = vadd.f32 %v1074, %v1360
        %v1401 = vadd.f32 %v1075, %v1363
        %v1402 = vld [vmem:[%s167 + $0x13] sm:$0xff]
        %v1403 = vld [vmem:[%s167 + $0x1b] sm:$0xff]
        %v1404 = vld [vmem:[%s167 + $0x23] sm:$0xff]
        %v1405 = vld [vmem:[%s167 + $0x2b] sm:$0xff]
        %v1406 = vld [vmem:[%s167 + $0x33] sm:$0xff]
        %v1407 = vld [vmem:[%s167 + $0x3b] sm:$0xff]
        %v1408 = vld [vmem:[%s167 + $0x43] sm:$0xff]
        %v1409 = vld [vmem:[%s167 + $0x4b] sm:$0xff]
        %v1410 = vld [vmem:[%s167 + $0x53] sm:$0xff]
        %v1411 = vld [vmem:[%s167 + $0x5b] sm:$0xff]
        %v1412 = vld [vmem:[%s167 + $0x63] sm:$0xff]
        %v1413 = vld [vmem:[%s167 + $0x6b] sm:$0xff]
        %v1414 = vld [vmem:[%s167 + $0x73] sm:$0xff]
        %v1415 = vld [vmem:[%s167 + $0x7b] sm:$0xff]
        %v1416 = vld [vmem:[%s167 + $0x83] sm:$0xff]
        %v1417 = vld [vmem:[%s167 + $0x8b] sm:$0xff]
        %v1418 = vld [vmem:[%s167 + $0x93] sm:$0xff]
        %v1419 = vld [vmem:[%s167 + $0x9b] sm:$0xff]
        %v1420 = vld [vmem:[%s167 + $0xa3] sm:$0xff]
        %v1421 = vld [vmem:[%s167 + $0xab] sm:$0xff]
        %v1422 = vld [vmem:[%s167 + $0xb3] sm:$0xff]
        %v1423 = vld [vmem:[%s167 + $0xbb] sm:$0xff]
        %v1424 = vld [vmem:[%s167 + $0xc3] sm:$0xff]
        %v1425 = vld [vmem:[%s167 + $0xcb] sm:$0xff]
        %v1426 = vld [vmem:[%s167 + $0xd3] sm:$0xff]
        %v1427 = vld [vmem:[%s167 + $0xdb] sm:$0xff]
        %v1428 = vld [vmem:[%s167 + $0xe3] sm:$0xff]
        %v1429 = vld [vmem:[%s167 + $0xeb] sm:$0xff]
        %v1430 = vld [vmem:[%s167 + $0xf3] sm:$0xff]
        %v1431 = vld [vmem:[%s167 + $0xfb] sm:$0xff]
        %v1432 = vld [vmem:[%s167 + $0x103] sm:$0xff]
        %v1433 = vld [vmem:[%s167 + $0x10b] sm:$0xff]
        %v1434 = vld [vmem:[%s167 + $0x113] sm:$0xff]
        %v1435 = vld [vmem:[%s167 + $0x11b] sm:$0xff]
        %v1436 = vld [vmem:[%s167 + $0x123] sm:$0xff]
        %v1437 = vld [vmem:[%s167 + $0x12b] sm:$0xff]
        %v1438 = vpack.c.bf16 %v1403, %v1402
        %v1439 = vpack.c.bf16 %v1405, %v1404
        %v1440 = vpack.c.bf16 %v1407, %v1406
        %v1441 = vpack.c.bf16 %v1409, %v1408
        %v1442 = vpack.c.bf16 %v1411, %v1410
        %v1443 = vpack.c.bf16 %v1413, %v1412
        %v1444 = vpack.c.bf16 %v1415, %v1414
        %v1445 = vpack.c.bf16 %v1417, %v1416
        %v1446 = vpack.c.bf16 %v1419, %v1418
        %v1447 = vpack.c.bf16 %v1421, %v1420
        %v1448 = vpack.c.bf16 %v1423, %v1422
        %v1449 = vpack.c.bf16 %v1425, %v1424
        %v1450 = vpack.c.bf16 %v1427, %v1426
        %v1451 = vpack.c.bf16 %v1429, %v1428
        %v1452 = vpack.c.bf16 %v1431, %v1430
        %v1453 = vpack.c.bf16 %v1433, %v1432
        %v1454 = vpack.c.bf16 %v1435, %v1434
        %v1455 = vpack.c.bf16 %v1437, %v1436
        %s1456 = scalar_lea.vmem %s1, 8
        %v1457 = vld [vmem:[%s1456] sm:$0x3]
        %v1459 = vsel %vm280, %v1438, 0
        %v1462 = vsel %vm280, %v1439, 0
        %v1465 = vsel %vm280, %v1440, 0
        %v1468 = vsel %vm280, %v1441, 0
        %v1471 = vsel %vm280, %v1442, 0
        %v1474 = vsel %vm280, %v1443, 0
        %v1477 = vsel %vm280, %v1444, 0
        %v1480 = vsel %vm280, %v1445, 0
        %v1483 = vsel %vm280, %v1446, 0
        %v1486 = vsel %vm280, %v1447, 0
        %v1489 = vsel %vm280, %v1448, 0
        %v1492 = vsel %vm280, %v1449, 0
        %v1495 = vsel %vm280, %v1450, 0
        %v1498 = vsel %vm280, %v1451, 0
        %v1501 = vsel %vm280, %v1452, 0
        %v1504 = vsel %vm280, %v1453, 0
        %v1507 = vsel %vm280, %v1454, 0
        %v1510 = vsel %vm280, %v1455, 0
        %v1513 = vsel %vm335, %v1457, 0
        %1515 = vmatprep.subr.bf16.mxu0 0
        %1516 = vmatpush1.bf16.msra.mxu0 %v1513
        %1517 = vmatprep.subr.bf16.mxu0 0
        %1518 = vmatpush1.bf16.msra.mxu0 0
        %1519 = vmatprep.subr.bf16.mxu0 0
        %1520 = vmatpush1.bf16.msra.mxu0 0
        %1521 = vmatprep.subr.bf16.mxu0 0
        %1522 = vmatpush1.bf16.msra.mxu0 0
        %1523 = vmatprep.subr.bf16.mxu0 0
        %1524 = vmatpush1.bf16.msra.mxu0 0
        %1525 = vmatprep.subr.bf16.mxu0 0
        %1526 = vmatpush1.bf16.msra.mxu0 0
        %1527 = vmatprep.subr.bf16.mxu0 0
        %1528 = vmatpush1.bf16.msra.mxu0 0
        %1529 = vmatprep.subr.bf16.mxu0 0
        %1530 = vmatpush1.bf16.msra.mxu0 0
        %1531 = vmatprep.subr.bf16.mxu0 0
        %1532 = vmatpush1.bf16.msra.mxu0 0
        %1533 = vmatprep.subr.bf16.mxu0 0
        %1534 = vmatpush1.bf16.msra.mxu0 0
        %1535 = vmatprep.subr.bf16.mxu0 0
        %1536 = vmatpush1.bf16.msra.mxu0 0
        %1537 = vmatprep.subr.bf16.mxu0 0
        %1538 = vmatpush1.bf16.msra.mxu0 0
        %1539 = vmatprep.subr.bf16.mxu0 0
        %1540 = vmatpush1.bf16.msra.mxu0 0
        %1541 = vmatprep.subr.bf16.mxu0 0
        %1542 = vmatpush1.bf16.msra.mxu0 0
        %1543 = vmatprep.subr.bf16.mxu0 0
        %1544 = vmatpush1.bf16.msra.mxu0 0
        %1545 = vmatprep.subr.bf16.mxu0 0
        %1546 = vmatpush1.bf16.msra.mxu0 0
        %1547 = vmatprep.mubr.bf16.mxu0 0
        %1548 = vmatmul.mubr.bf16.gmra.mrb[0].mxu0 %v1459
        %v1549 = vpop.f32.mrb[0].mxu0
        %v1550 = vadd.f32 0.0, %v1549
        %v1551 = vpop.f32.mrb[0].mxu0
        %v1552 = vpop.f32.mrb[0].mxu0
        %v1553 = vadd.f32 0.0, %v1552
        %v1554 = vpop.f32.mrb[0].mxu0
        %1555 = vmatprep.mubr.bf16.mxu0 0
        %1556 = vmatmul.mubr.bf16.gmra.mrb[0].mxu0 %v1462
        %v1557 = vpop.f32.mrb[0].mxu0
        %v1558 = vadd.f32 0.0, %v1557
        %v1559 = vpop.f32.mrb[0].mxu0
        %v1560 = vpop.f32.mrb[0].mxu0
        %v1561 = vadd.f32 0.0, %v1560
        %v1562 = vpop.f32.mrb[0].mxu0
        %1563 = vmatprep.mubr.bf16.mxu0 0
        %1564 = vmatmul.mubr.bf16.gmra.mrb[0].mxu0 %v1465
        %v1565 = vpop.f32.mrb[0].mxu0
        %v1566 = vadd.f32 0.0, %v1565
        %v1567 = vpop.f32.mrb[0].mxu0
        %v1568 = vpop.f32.mrb[0].mxu0
        %v1569 = vadd.f32 0.0, %v1568
        %v1570 = vpop.f32.mrb[0].mxu0
        %1571 = vmatprep.mubr.bf16.mxu0 0
        %1572 = vmatmul.mubr.bf16.gmra.mrb[0].mxu0 %v1468
        %v1573 = vpop.f32.mrb[0].mxu0
        %v1574 = vadd.f32 0.0, %v1573
        %v1575 = vpop.f32.mrb[0].mxu0
        %v1576 = vpop.f32.mrb[0].mxu0
        %v1577 = vadd.f32 0.0, %v1576
        %v1578 = vpop.f32.mrb[0].mxu0
        %1579 = vmatprep.mubr.bf16.mxu0 0
        %1580 = vmatmul.mubr.bf16.gmra.mrb[0].mxu0 %v1471
        %v1581 = vpop.f32.mrb[0].mxu0
        %v1582 = vadd.f32 0.0, %v1581
        %v1583 = vpop.f32.mrb[0].mxu0
        %v1584 = vpop.f32.mrb[0].mxu0
        %v1585 = vadd.f32 0.0, %v1584
        %v1586 = vpop.f32.mrb[0].mxu0
        %1587 = vmatprep.mubr.bf16.mxu0 0
        %1588 = vmatmul.mubr.bf16.gmra.mrb[0].mxu0 %v1474
        %v1589 = vpop.f32.mrb[0].mxu0
        %v1590 = vadd.f32 0.0, %v1589
        %v1591 = vpop.f32.mrb[0].mxu0
        %v1592 = vpop.f32.mrb[0].mxu0
        %v1593 = vadd.f32 0.0, %v1592
        %v1594 = vpop.f32.mrb[0].mxu0
        %1595 = vmatprep.mubr.bf16.mxu0 0
        %1596 = vmatmul.mubr.bf16.gmra.mrb[0].mxu0 %v1477
        %v1597 = vpop.f32.mrb[0].mxu0
        %v1598 = vadd.f32 0.0, %v1597
        %v1599 = vpop.f32.mrb[0].mxu0
        %v1600 = vpop.f32.mrb[0].mxu0
        %v1601 = vadd.f32 0.0, %v1600
        %v1602 = vpop.f32.mrb[0].mxu0
        %1603 = vmatprep.mubr.bf16.mxu0 0
        %1604 = vmatmul.mubr.bf16.gmra.mrb[0].mxu0 %v1480
        %v1605 = vpop.f32.mrb[0].mxu0
        %v1606 = vadd.f32 0.0, %v1605
        %v1607 = vpop.f32.mrb[0].mxu0
        %v1608 = vpop.f32.mrb[0].mxu0
        %v1609 = vadd.f32 0.0, %v1608
        %v1610 = vpop.f32.mrb[0].mxu0
        %1611 = vmatprep.mubr.bf16.mxu0 0
        %1612 = vmatmul.mubr.bf16.gmra.mrb[0].mxu0 %v1483
        %v1613 = vpop.f32.mrb[0].mxu0
        %v1614 = vadd.f32 0.0, %v1613
        %v1615 = vpop.f32.mrb[0].mxu0
        %v1616 = vpop.f32.mrb[0].mxu0
        %v1617 = vadd.f32 0.0, %v1616
        %v1618 = vpop.f32.mrb[0].mxu0
        %1619 = vmatprep.mubr.bf16.mxu0 0
        %1620 = vmatmul.mubr.bf16.gmra.mrb[0].mxu0 %v1486
        %v1621 = vpop.f32.mrb[0].mxu0
        %v1622 = vadd.f32 0.0, %v1621
        %v1623 = vpop.f32.mrb[0].mxu0
        %v1624 = vpop.f32.mrb[0].mxu0
        %v1625 = vadd.f32 0.0, %v1624
        %v1626 = vpop.f32.mrb[0].mxu0
        %1627 = vmatprep.mubr.bf16.mxu0 0
        %1628 = vmatmul.mubr.bf16.gmra.mrb[0].mxu0 %v1489
        %v1629 = vpop.f32.mrb[0].mxu0
        %v1630 = vadd.f32 0.0, %v1629
        %v1631 = vpop.f32.mrb[0].mxu0
        %v1632 = vpop.f32.mrb[0].mxu0
        %v1633 = vadd.f32 0.0, %v1632
        %v1634 = vpop.f32.mrb[0].mxu0
        %1635 = vmatprep.mubr.bf16.mxu0 0
        %1636 = vmatmul.mubr.bf16.gmra.mrb[0].mxu0 %v1492
        %v1637 = vpop.f32.mrb[0].mxu0
        %v1638 = vadd.f32 0.0, %v1637
        %v1639 = vpop.f32.mrb[0].mxu0
        %v1640 = vpop.f32.mrb[0].mxu0
        %v1641 = vadd.f32 0.0, %v1640
        %v1642 = vpop.f32.mrb[0].mxu0
        %1643 = vmatprep.mubr.bf16.mxu0 0
        %1644 = vmatmul.mubr.bf16.gmra.mrb[0].mxu0 %v1495
        %v1645 = vpop.f32.mrb[0].mxu0
        %v1646 = vadd.f32 0.0, %v1645
        %v1647 = vpop.f32.mrb[0].mxu0
        %v1648 = vpop.f32.mrb[0].mxu0
        %v1649 = vadd.f32 0.0, %v1648
        %v1650 = vpop.f32.mrb[0].mxu0
        %1651 = vmatprep.mubr.bf16.mxu0 0
        %1652 = vmatmul.mubr.bf16.gmra.mrb[0].mxu0 %v1498
        %v1653 = vpop.f32.mrb[0].mxu0
        %v1654 = vadd.f32 0.0, %v1653
        %v1655 = vpop.f32.mrb[0].mxu0
        %v1656 = vpop.f32.mrb[0].mxu0
        %v1657 = vadd.f32 0.0, %v1656
        %v1658 = vpop.f32.mrb[0].mxu0
        %1659 = vmatprep.mubr.bf16.mxu0 0
        %1660 = vmatmul.mubr.bf16.gmra.mrb[0].mxu0 %v1501
        %v1661 = vpop.f32.mrb[0].mxu0
        %v1662 = vadd.f32 0.0, %v1661
        %v1663 = vpop.f32.mrb[0].mxu0
        %v1664 = vpop.f32.mrb[0].mxu0
        %v1665 = vadd.f32 0.0, %v1664
        %v1666 = vpop.f32.mrb[0].mxu0
        %1667 = vmatprep.mubr.bf16.mxu0 0
        %1668 = vmatmul.mubr.bf16.gmra.mrb[0].mxu0 %v1504
        %v1669 = vpop.f32.mrb[0].mxu0
        %v1670 = vadd.f32 0.0, %v1669
        %v1671 = vpop.f32.mrb[0].mxu0
        %v1672 = vpop.f32.mrb[0].mxu0
        %v1673 = vadd.f32 0.0, %v1672
        %v1674 = vpop.f32.mrb[0].mxu0
        %1675 = vmatprep.mubr.bf16.mxu0 0
        %1676 = vmatmul.mubr.bf16.gmra.mrb[0].mxu0 %v1507
        %v1677 = vpop.f32.mrb[0].mxu0
        %v1678 = vadd.f32 0.0, %v1677
        %v1679 = vpop.f32.mrb[0].mxu0
        %v1680 = vpop.f32.mrb[0].mxu0
        %v1681 = vadd.f32 0.0, %v1680
        %v1682 = vpop.f32.mrb[0].mxu0
        %1683 = vmatprep.mubr.bf16.mxu0 0
        %1684 = vmatmul.mubr.bf16.gmra.mrb[0].mxu0 %v1510
        %v1685 = vpop.f32.mrb[0].mxu0
        %v1686 = vadd.f32 0.0, %v1685
        %v1687 = vpop.f32.mrb[0].mxu0
        %v1688 = vpop.f32.mrb[0].mxu0
        %v1689 = vadd.f32 0.0, %v1688
        %v1690 = vpop.f32.mrb[0].mxu0
        %1691 = vdwg.mxu0
        %v1692 = vadd.f32 %v1366, %v1550
        %v1693 = vadd.f32 %v1367, %v1553
        %v1694 = vadd.f32 %v1368, %v1558
        %v1695 = vadd.f32 %v1369, %v1561
        %v1696 = vadd.f32 %v1370, %v1566
        %v1697 = vadd.f32 %v1371, %v1569
        %v1698 = vadd.f32 %v1372, %v1574
        %v1699 = vadd.f32 %v1373, %v1577
        %v1700 = vadd.f32 %v1374, %v1582
        %v1701 = vadd.f32 %v1375, %v1585
        %v1702 = vadd.f32 %v1376, %v1590
        %v1703 = vadd.f32 %v1377, %v1593
        %v1704 = vadd.f32 %v1378, %v1598
        %v1705 = vadd.f32 %v1379, %v1601
        %v1706 = vadd.f32 %v1380, %v1606
        %v1707 = vadd.f32 %v1381, %v1609
        %v1708 = vadd.f32 %v1382, %v1614
        %v1709 = vadd.f32 %v1383, %v1617
        %v1710 = vadd.f32 %v1384, %v1622
        %v1711 = vadd.f32 %v1385, %v1625
        %v1712 = vadd.f32 %v1386, %v1630
        %v1713 = vadd.f32 %v1387, %v1633
        %v1714 = vadd.f32 %v1388, %v1638
        %v1715 = vadd.f32 %v1389, %v1641
        %v1716 = vadd.f32 %v1390, %v1646
        %v1717 = vadd.f32 %v1391, %v1649
        %v1718 = vadd.f32 %v1392, %v1654
        %v1719 = vadd.f32 %v1393, %v1657
        %v1720 = vadd.f32 %v1394, %v1662
        %v1721 = vadd.f32 %v1395, %v1665
        %v1722 = vadd.f32 %v1396, %v1670
        %v1723 = vadd.f32 %v1397, %v1673
        %v1724 = vadd.f32 %v1398, %v1678
        %v1725 = vadd.f32 %v1399, %v1681
        %v1726 = vadd.f32 %v1400, %v1686
        %v1727 = vadd.f32 %v1401, %v1689
        %v1728 = vld [vmem:[%s167 + $0x14] sm:$0xff]
        %v1729 = vld [vmem:[%s167 + $0x1c] sm:$0xff]
        %v1730 = vld [vmem:[%s167 + $0x24] sm:$0xff]
        %v1731 = vld [vmem:[%s167 + $0x2c] sm:$0xff]
        %v1732 = vld [vmem:[%s167 + $0x34] sm:$0xff]
        %v1733 = vld [vmem:[%s167 + $0x3c] sm:$0xff]
        %v1734 = vld [vmem:[%s167 + $0x44] sm:$0xff]
        %v1735 = vld [vmem:[%s167 + $0x4c] sm:$0xff]
        %v1736 = vld [vmem:[%s167 + $0x54] sm:$0xff]
        %v1737 = vld [vmem:[%s167 + $0x5c] sm:$0xff]
        %v1738 = vld [vmem:[%s167 + $0x64] sm:$0xff]
        %v1739 = vld [vmem:[%s167 + $0x6c] sm:$0xff]
        %v1740 = vld [vmem:[%s167 + $0x74] sm:$0xff]
        %v1741 = vld [vmem:[%s167 + $0x7c] sm:$0xff]
        %v1742 = vld [vmem:[%s167 + $0x84] sm:$0xff]
        %v1743 = vld [vmem:[%s167 + $0x8c] sm:$0xff]
        %v1744 = vld [vmem:[%s167 + $0x94] sm:$0xff]
        %v1745 = vld [vmem:[%s167 + $0x9c] sm:$0xff]
        %v1746 = vld [vmem:[%s167 + $0xa4] sm:$0xff]
        %v1747 = vld [vmem:[%s167 + $0xac] sm:$0xff]
        %v1748 = vld [vmem:[%s167 + $0xb4] sm:$0xff]
        %v1749 = vld [vmem:[%s167 + $0xbc] sm:$0xff]
        %v1750 = vld [vmem:[%s167 + $0xc4] sm:$0xff]
        %v1751 = vld [vmem:[%s167 + $0xcc] sm:$0xff]
        %v1752 = vld [vmem:[%s167 + $0xd4] sm:$0xff]
        %v1753 = vld [vmem:[%s167 + $0xdc] sm:$0xff]
        %v1754 = vld [vmem:[%s167 + $0xe4] sm:$0xff]
        %v1755 = vld [vmem:[%s167 + $0xec] sm:$0xff]
        %v1756 = vld [vmem:[%s167 + $0xf4] sm:$0xff]
        %v1757 = vld [vmem:[%s167 + $0xfc] sm:$0xff]
        %v1758 = vld [vmem:[%s167 + $0x104] sm:$0xff]
        %v1759 = vld [vmem:[%s167 + $0x10c] sm:$0xff]
        %v1760 = vld [vmem:[%s167 + $0x114] sm:$0xff]
        %v1761 = vld [vmem:[%s167 + $0x11c] sm:$0xff]
        %v1762 = vld [vmem:[%s167 + $0x124] sm:$0xff]
        %v1763 = vld [vmem:[%s167 + $0x12c] sm:$0xff]
        %v1764 = vpack.c.bf16 %v1729, %v1728
        %v1765 = vpack.c.bf16 %v1731, %v1730
        %v1766 = vpack.c.bf16 %v1733, %v1732
        %v1767 = vpack.c.bf16 %v1735, %v1734
        %v1768 = vpack.c.bf16 %v1737, %v1736
        %v1769 = vpack.c.bf16 %v1739, %v1738
        %v1770 = vpack.c.bf16 %v1741, %v1740
        %v1771 = vpack.c.bf16 %v1743, %v1742
        %v1772 = vpack.c.bf16 %v1745, %v1744
        %v1773 = vpack.c.bf16 %v1747, %v1746
        %v1774 = vpack.c.bf16 %v1749, %v1748
        %v1775 = vpack.c.bf16 %v1751, %v1750
        %v1776 = vpack.c.bf16 %v1753, %v1752
        %v1777 = vpack.c.bf16 %v1755, %v1754
        %v1778 = vpack.c.bf16 %v1757, %v1756
        %v1779 = vpack.c.bf16 %v1759, %v1758
        %v1780 = vpack.c.bf16 %v1761, %v1760
        %v1781 = vpack.c.bf16 %v1763, %v1762
        %s1782 = scalar_lea.vmem %s1, 10
        %v1783 = vld [vmem:[%s1782] sm:$0x3]
        %v1785 = vsel %vm280, %v1764, 0
        %v1788 = vsel %vm280, %v1765, 0
        %v1791 = vsel %vm280, %v1766, 0
        %v1794 = vsel %vm280, %v1767, 0
        %v1797 = vsel %vm280, %v1768, 0
        %v1800 = vsel %vm280, %v1769, 0
        %v1803 = vsel %vm280, %v1770, 0
        %v1806 = vsel %vm280, %v1771, 0
        %v1809 = vsel %vm280, %v1772, 0
        %v1812 = vsel %vm280, %v1773, 0
        %v1815 = vsel %vm280, %v1774, 0
        %v1818 = vsel %vm280, %v1775, 0
        %v1821 = vsel %vm280, %v1776, 0
        %v1824 = vsel %vm280, %v1777, 0
        %v1827 = vsel %vm280, %v1778, 0
        %v1830 = vsel %vm280, %v1779, 0
        %v1833 = vsel %vm280, %v1780, 0
        %v1836 = vsel %vm280, %v1781, 0
        %v1839 = vsel %vm335, %v1783, 0
        %1841 = vmatprep.subr.bf16.mxu0 0
        %1842 = vmatpush1.bf16.msra.mxu0 %v1839
        %1843 = vmatprep.subr.bf16.mxu0 0
        %1844 = vmatpush1.bf16.msra.mxu0 0
        %1845 = vmatprep.subr.bf16.mxu0 0
        %1846 = vmatpush1.bf16.msra.mxu0 0
        %1847 = vmatprep.subr.bf16.mxu0 0
        %1848 = vmatpush1.bf16.msra.mxu0 0
        %1849 = vmatprep.subr.bf16.mxu0 0
        %1850 = vmatpush1.bf16.msra.mxu0 0
        %1851 = vmatprep.subr.bf16.mxu0 0
        %1852 = vmatpush1.bf16.msra.mxu0 0
        %1853 = vmatprep.subr.bf16.mxu0 0
        %1854 = vmatpush1.bf16.msra.mxu0 0
        %1855 = vmatprep.subr.bf16.mxu0 0
        %1856 = vmatpush1.bf16.msra.mxu0 0
        %1857 = vmatprep.subr.bf16.mxu0 0
        %1858 = vmatpush1.bf16.msra.mxu0 0
        %1859 = vmatprep.subr.bf16.mxu0 0
        %1860 = vmatpush1.bf16.msra.mxu0 0
        %1861 = vmatprep.subr.bf16.mxu0 0
        %1862 = vmatpush1.bf16.msra.mxu0 0
        %1863 = vmatprep.subr.bf16.mxu0 0
        %1864 = vmatpush1.bf16.msra.mxu0 0
        %1865 = vmatprep.subr.bf16.mxu0 0
        %1866 = vmatpush1.bf16.msra.mxu0 0
        %1867 = vmatprep.subr.bf16.mxu0 0
        %1868 = vmatpush1.bf16.msra.mxu0 0
        %1869 = vmatprep.subr.bf16.mxu0 0
        %1870 = vmatpush1.bf16.msra.mxu0 0
        %1871 = vmatprep.subr.bf16.mxu0 0
        %1872 = vmatpush1.bf16.msra.mxu0 0
        %1873 = vmatprep.mubr.bf16.mxu0 0
        %1874 = vmatmul.mubr.bf16.gmra.mrb[0].mxu0 %v1785
        %v1875 = vpop.f32.mrb[0].mxu0
        %v1876 = vadd.f32 0.0, %v1875
        %v1877 = vpop.f32.mrb[0].mxu0
        %v1878 = vpop.f32.mrb[0].mxu0
        %v1879 = vadd.f32 0.0, %v1878
        %v1880 = vpop.f32.mrb[0].mxu0
        %1881 = vmatprep.mubr.bf16.mxu0 0
        %1882 = vmatmul.mubr.bf16.gmra.mrb[0].mxu0 %v1788
        %v1883 = vpop.f32.mrb[0].mxu0
        %v1884 = vadd.f32 0.0, %v1883
        %v1885 = vpop.f32.mrb[0].mxu0
        %v1886 = vpop.f32.mrb[0].mxu0
        %v1887 = vadd.f32 0.0, %v1886
        %v1888 = vpop.f32.mrb[0].mxu0
        %1889 = vmatprep.mubr.bf16.mxu0 0
        %1890 = vmatmul.mubr.bf16.gmra.mrb[0].mxu0 %v1791
        %v1891 = vpop.f32.mrb[0].mxu0
        %v1892 = vadd.f32 0.0, %v1891
        %v1893 = vpop.f32.mrb[0].mxu0
        %v1894 = vpop.f32.mrb[0].mxu0
        %v1895 = vadd.f32 0.0, %v1894
        %v1896 = vpop.f32.mrb[0].mxu0
        %1897 = vmatprep.mubr.bf16.mxu0 0
        %1898 = vmatmul.mubr.bf16.gmra.mrb[0].mxu0 %v1794
        %v1899 = vpop.f32.mrb[0].mxu0
        %v1900 = vadd.f32 0.0, %v1899
        %v1901 = vpop.f32.mrb[0].mxu0
        %v1902 = vpop.f32.mrb[0].mxu0
        %v1903 = vadd.f32 0.0, %v1902
        %v1904 = vpop.f32.mrb[0].mxu0
        %1905 = vmatprep.mubr.bf16.mxu0 0
        %1906 = vmatmul.mubr.bf16.gmra.mrb[0].mxu0 %v1797
        %v1907 = vpop.f32.mrb[0].mxu0
        %v1908 = vadd.f32 0.0, %v1907
        %v1909 = vpop.f32.mrb[0].mxu0
        %v1910 = vpop.f32.mrb[0].mxu0
        %v1911 = vadd.f32 0.0, %v1910
        %v1912 = vpop.f32.mrb[0].mxu0
        %1913 = vmatprep.mubr.bf16.mxu0 0
        %1914 = vmatmul.mubr.bf16.gmra.mrb[0].mxu0 %v1800
        %v1915 = vpop.f32.mrb[0].mxu0
        %v1916 = vadd.f32 0.0, %v1915
        %v1917 = vpop.f32.mrb[0].mxu0
        %v1918 = vpop.f32.mrb[0].mxu0
        %v1919 = vadd.f32 0.0, %v1918
        %v1920 = vpop.f32.mrb[0].mxu0
        %1921 = vmatprep.mubr.bf16.mxu0 0
        %1922 = vmatmul.mubr.bf16.gmra.mrb[0].mxu0 %v1803
        %v1923 = vpop.f32.mrb[0].mxu0
        %v1924 = vadd.f32 0.0, %v1923
        %v1925 = vpop.f32.mrb[0].mxu0
        %v1926 = vpop.f32.mrb[0].mxu0
        %v1927 = vadd.f32 0.0, %v1926
        %v1928 = vpop.f32.mrb[0].mxu0
        %1929 = vmatprep.mubr.bf16.mxu0 0
        %1930 = vmatmul.mubr.bf16.gmra.mrb[0].mxu0 %v1806
        %v1931 = vpop.f32.mrb[0].mxu0
        %v1932 = vadd.f32 0.0, %v1931
        %v1933 = vpop.f32.mrb[0].mxu0
        %v1934 = vpop.f32.mrb[0].mxu0
        %v1935 = vadd.f32 0.0, %v1934
        %v1936 = vpop.f32.mrb[0].mxu0
        %1937 = vmatprep.mubr.bf16.mxu0 0
        %1938 = vmatmul.mubr.bf16.gmra.mrb[0].mxu0 %v1809
        %v1939 = vpop.f32.mrb[0].mxu0
        %v1940 = vadd.f32 0.0, %v1939
        %v1941 = vpop.f32.mrb[0].mxu0
        %v1942 = vpop.f32.mrb[0].mxu0
        %v1943 = vadd.f32 0.0, %v1942
        %v1944 = vpop.f32.mrb[0].mxu0
        %1945 = vmatprep.mubr.bf16.mxu0 0
        %1946 = vmatmul.mubr.bf16.gmra.mrb[0].mxu0 %v1812
        %v1947 = vpop.f32.mrb[0].mxu0
        %v1948 = vadd.f32 0.0, %v1947
        %v1949 = vpop.f32.mrb[0].mxu0
        %v1950 = vpop.f32.mrb[0].mxu0
        %v1951 = vadd.f32 0.0, %v1950
        %v1952 = vpop.f32.mrb[0].mxu0
        %1953 = vmatprep.mubr.bf16.mxu0 0
        %1954 = vmatmul.mubr.bf16.gmra.mrb[0].mxu0 %v1815
        %v1955 = vpop.f32.mrb[0].mxu0
        %v1956 = vadd.f32 0.0, %v1955
        %v1957 = vpop.f32.mrb[0].mxu0
        %v1958 = vpop.f32.mrb[0].mxu0
        %v1959 = vadd.f32 0.0, %v1958
        %v1960 = vpop.f32.mrb[0].mxu0
        %1961 = vmatprep.mubr.bf16.mxu0 0
        %1962 = vmatmul.mubr.bf16.gmra.mrb[0].mxu0 %v1818
        %v1963 = vpop.f32.mrb[0].mxu0
        %v1964 = vadd.f32 0.0, %v1963
        %v1965 = vpop.f32.mrb[0].mxu0
        %v1966 = vpop.f32.mrb[0].mxu0
        %v1967 = vadd.f32 0.0, %v1966
        %v1968 = vpop.f32.mrb[0].mxu0
        %1969 = vmatprep.mubr.bf16.mxu0 0
        %1970 = vmatmul.mubr.bf16.gmra.mrb[0].mxu0 %v1821
        %v1971 = vpop.f32.mrb[0].mxu0
        %v1972 = vadd.f32 0.0, %v1971
        %v1973 = vpop.f32.mrb[0].mxu0
        %v1974 = vpop.f32.mrb[0].mxu0
        %v1975 = vadd.f32 0.0, %v1974
        %v1976 = vpop.f32.mrb[0].mxu0
        %1977 = vmatprep.mubr.bf16.mxu0 0
        %1978 = vmatmul.mubr.bf16.gmra.mrb[0].mxu0 %v1824
        %v1979 = vpop.f32.mrb[0].mxu0
        %v1980 = vadd.f32 0.0, %v1979
        %v1981 = vpop.f32.mrb[0].mxu0
        %v1982 = vpop.f32.mrb[0].mxu0
        %v1983 = vadd.f32 0.0, %v1982
        %v1984 = vpop.f32.mrb[0].mxu0
        %1985 = vmatprep.mubr.bf16.mxu0 0
        %1986 = vmatmul.mubr.bf16.gmra.mrb[0].mxu0 %v1827
        %v1987 = vpop.f32.mrb[0].mxu0
        %v1988 = vadd.f32 0.0, %v1987
        %v1989 = vpop.f32.mrb[0].mxu0
        %v1990 = vpop.f32.mrb[0].mxu0
        %v1991 = vadd.f32 0.0, %v1990
        %v1992 = vpop.f32.mrb[0].mxu0
        %1993 = vmatprep.mubr.bf16.mxu0 0
        %1994 = vmatmul.mubr.bf16.gmra.mrb[0].mxu0 %v1830
        %v1995 = vpop.f32.mrb[0].mxu0
        %v1996 = vadd.f32 0.0, %v1995
        %v1997 = vpop.f32.mrb[0].mxu0
        %v1998 = vpop.f32.mrb[0].mxu0
        %v1999 = vadd.f32 0.0, %v1998
        %v2000 = vpop.f32.mrb[0].mxu0
        %2001 = vmatprep.mubr.bf16.mxu0 0
        %2002 = vmatmul.mubr.bf16.gmra.mrb[0].mxu0 %v1833
        %v2003 = vpop.f32.mrb[0].mxu0
        %v2004 = vadd.f32 0.0, %v2003
        %v2005 = vpop.f32.mrb[0].mxu0
        %v2006 = vpop.f32.mrb[0].mxu0
        %v2007 = vadd.f32 0.0, %v2006
        %v2008 = vpop.f32.mrb[0].mxu0
        %2009 = vmatprep.mubr.bf16.mxu0 0
        %2010 = vmatmul.mubr.bf16.gmra.mrb[0].mxu0 %v1836
        %v2011 = vpop.f32.mrb[0].mxu0
        %v2012 = vadd.f32 0.0, %v2011
        %v2013 = vpop.f32.mrb[0].mxu0
        %v2014 = vpop.f32.mrb[0].mxu0
        %v2015 = vadd.f32 0.0, %v2014
        %v2016 = vpop.f32.mrb[0].mxu0
        %2017 = vdwg.mxu0
        %v2018 = vadd.f32 %v1692, %v1876
        %v2019 = vadd.f32 %v1693, %v1879
        %v2020 = vadd.f32 %v1694, %v1884
        %v2021 = vadd.f32 %v1695, %v1887
        %v2022 = vadd.f32 %v1696, %v1892
        %v2023 = vadd.f32 %v1697, %v1895
        %v2024 = vadd.f32 %v1698, %v1900
        %v2025 = vadd.f32 %v1699, %v1903
        %v2026 = vadd.f32 %v1700, %v1908
        %v2027 = vadd.f32 %v1701, %v1911
        %v2028 = vadd.f32 %v1702, %v1916
        %v2029 = vadd.f32 %v1703, %v1919
        %v2030 = vadd.f32 %v1704, %v1924
        %v2031 = vadd.f32 %v1705, %v1927
        %v2032 = vadd.f32 %v1706, %v1932
        %v2033 = vadd.f32 %v1707, %v1935
        %v2034 = vadd.f32 %v1708, %v1940
        %v2035 = vadd.f32 %v1709, %v1943
        %v2036 = vadd.f32 %v1710, %v1948
        %v2037 = vadd.f32 %v1711, %v1951
        %v2038 = vadd.f32 %v1712, %v1956
        %v2039 = vadd.f32 %v1713, %v1959
        %v2040 = vadd.f32 %v1714, %v1964
        %v2041 = vadd.f32 %v1715, %v1967
        %v2042 = vadd.f32 %v1716, %v1972
        %v2043 = vadd.f32 %v1717, %v1975
        %v2044 = vadd.f32 %v1718, %v1980
        %v2045 = vadd.f32 %v1719, %v1983
        %v2046 = vadd.f32 %v1720, %v1988
        %v2047 = vadd.f32 %v1721, %v1991
        %v2048 = vadd.f32 %v1722, %v1996
        %v2049 = vadd.f32 %v1723, %v1999
        %v2050 = vadd.f32 %v1724, %v2004
        %v2051 = vadd.f32 %v1725, %v2007
        %v2052 = vadd.f32 %v1726, %v2012
        %v2053 = vadd.f32 %v1727, %v2015
        %v2054 = vld [vmem:[%s167 + $0x24] sm:$0xff]
        %v2055 = vld [vmem:[%s167 + $0x2c] sm:$0xff]
        %v2056 = vld [vmem:[%s167 + $0x34] sm:$0xff]
        %v2057 = vld [vmem:[%s167 + $0x3c] sm:$0xff]
        %v2058 = vld [vmem:[%s167 + $0x44] sm:$0xff]
        %v2059 = vld [vmem:[%s167 + $0x4c] sm:$0xff]
        %v2060 = vld [vmem:[%s167 + $0x54] sm:$0xff]
        %v2061 = vld [vmem:[%s167 + $0x5c] sm:$0xff]
        %v2062 = vld [vmem:[%s167 + $0x64] sm:$0xff]
        %v2063 = vld [vmem:[%s167 + $0x6c] sm:$0xff]
        %v2064 = vld [vmem:[%s167 + $0x74] sm:$0xff]
        %v2065 = vld [vmem:[%s167 + $0x7c] sm:$0xff]
        %v2066 = vld [vmem:[%s167 + $0x84] sm:$0xff]
        %v2067 = vld [vmem:[%s167 + $0x8c] sm:$0xff]
        %v2068 = vld [vmem:[%s167 + $0x94] sm:$0xff]
        %v2069 = vld [vmem:[%s167 + $0x9c] sm:$0xff]
        %v2070 = vld [vmem:[%s167 + $0xa4] sm:$0xff]
        %v2071 = vld [vmem:[%s167 + $0xac] sm:$0xff]
        %v2072 = vld [vmem:[%s167 + $0xb4] sm:$0xff]
        %v2073 = vld [vmem:[%s167 + $0xbc] sm:$0xff]
        %v2074 = vld [vmem:[%s167 + $0xc4] sm:$0xff]
        %v2075 = vld [vmem:[%s167 + $0xcc] sm:$0xff]
        %v2076 = vld [vmem:[%s167 + $0xd4] sm:$0xff]
        %v2077 = vld [vmem:[%s167 + $0xdc] sm:$0xff]
        %v2078 = vld [vmem:[%s167 + $0xe4] sm:$0xff]
        %v2079 = vld [vmem:[%s167 + $0xec] sm:$0xff]
        %v2080 = vld [vmem:[%s167 + $0xf4] sm:$0xff]
        %v2081 = vld [vmem:[%s167 + $0xfc] sm:$0xff]
        %v2082 = vld [vmem:[%s167 + $0x104] sm:$0xff]
        %v2083 = vld [vmem:[%s167 + $0x10c] sm:$0xff]
        %v2084 = vld [vmem:[%s167 + $0x114] sm:$0xff]
        %v2085 = vld [vmem:[%s167 + $0x11c] sm:$0xff]
        %v2086 = vld [vmem:[%s167 + $0x124] sm:$0xff]
        %v2087 = vld [vmem:[%s167 + $0x12c] sm:$0xff]
        %v2088 = vld [vmem:[%s167 + $0x134] sm:$0xff]
        %v2089 = vld [vmem:[%s167 + $0x13c] sm:$0xff]
        %v2090 = vpack.c.bf16 %v2055, %v2054
        %v2091 = vpack.c.bf16 %v2057, %v2056
        %v2092 = vpack.c.bf16 %v2059, %v2058
        %v2093 = vpack.c.bf16 %v2061, %v2060
        %v2094 = vpack.c.bf16 %v2063, %v2062
        %v2095 = vpack.c.bf16 %v2065, %v2064
        %v2096 = vpack.c.bf16 %v2067, %v2066
        %v2097 = vpack.c.bf16 %v2069, %v2068
        %v2098 = vpack.c.bf16 %v2071, %v2070
        %v2099 = vpack.c.bf16 %v2073, %v2072
        %v2100 = vpack.c.bf16 %v2075, %v2074
        %v2101 = vpack.c.bf16 %v2077, %v2076
        %v2102 = vpack.c.bf16 %v2079, %v2078
        %v2103 = vpack.c.bf16 %v2081, %v2080
        %v2104 = vpack.c.bf16 %v2083, %v2082
        %v2105 = vpack.c.bf16 %v2085, %v2084
        %v2106 = vpack.c.bf16 %v2087, %v2086
        %v2107 = vpack.c.bf16 %v2089, %v2088
        %s2108 = scalar_lea.vmem %s1, 12
        %v2109 = vld [vmem:[%s2108] sm:$0x3]
        %v2111 = vsel %vm280, %v2090, 0
        %v2114 = vsel %vm280, %v2091, 0
        %v2117 = vsel %vm280, %v2092, 0
        %v2120 = vsel %vm280, %v2093, 0
        %v2123 = vsel %vm280, %v2094, 0
        %v2126 = vsel %vm280, %v2095, 0
        %v2129 = vsel %vm280, %v2096, 0
        %v2132 = vsel %vm280, %v2097, 0
        %v2135 = vsel %vm280, %v2098, 0
        %v2138 = vsel %vm280, %v2099, 0
        %v2141 = vsel %vm280, %v2100, 0
        %v2144 = vsel %vm280, %v2101, 0
        %v2147 = vsel %vm280, %v2102, 0
        %v2150 = vsel %vm280, %v2103, 0
        %v2153 = vsel %vm280, %v2104, 0
        %v2156 = vsel %vm280, %v2105, 0
        %v2159 = vsel %vm280, %v2106, 0
        %v2162 = vsel %vm280, %v2107, 0
        %v2165 = vsel %vm335, %v2109, 0
        %2167 = vmatprep.subr.bf16.mxu0 0
        %2168 = vmatpush1.bf16.msra.mxu0 %v2165
        %2169 = vmatprep.subr.bf16.mxu0 0
        %2170 = vmatpush1.bf16.msra.mxu0 0
        %2171 = vmatprep.subr.bf16.mxu0 0
        %2172 = vmatpush1.bf16.msra.mxu0 0
        %2173 = vmatprep.subr.bf16.mxu0 0
        %2174 = vmatpush1.bf16.msra.mxu0 0
        %2175 = vmatprep.subr.bf16.mxu0 0
        %2176 = vmatpush1.bf16.msra.mxu0 0
        %2177 = vmatprep.subr.bf16.mxu0 0
        %2178 = vmatpush1.bf16.msra.mxu0 0
        %2179 = vmatprep.subr.bf16.mxu0 0
        %2180 = vmatpush1.bf16.msra.mxu0 0
        %2181 = vmatprep.subr.bf16.mxu0 0
        %2182 = vmatpush1.bf16.msra.mxu0 0
        %2183 = vmatprep.subr.bf16.mxu0 0
        %2184 = vmatpush1.bf16.msra.mxu0 0
        %2185 = vmatprep.subr.bf16.mxu0 0
        %2186 = vmatpush1.bf16.msra.mxu0 0
        %2187 = vmatprep.subr.bf16.mxu0 0
        %2188 = vmatpush1.bf16.msra.mxu0 0
        %2189 = vmatprep.subr.bf16.mxu0 0
        %2190 = vmatpush1.bf16.msra.mxu0 0
        %2191 = vmatprep.subr.bf16.mxu0 0
        %2192 = vmatpush1.bf16.msra.mxu0 0
        %2193 = vmatprep.subr.bf16.mxu0 0
        %2194 = vmatpush1.bf16.msra.mxu0 0
        %2195 = vmatprep.subr.bf16.mxu0 0
        %2196 = vmatpush1.bf16.msra.mxu0 0
        %2197 = vmatprep.subr.bf16.mxu0 0
        %2198 = vmatpush1.bf16.msra.mxu0 0
        %2199 = vmatprep.mubr.bf16.mxu0 0
        %2200 = vmatmul.mubr.bf16.gmra.mrb[0].mxu0 %v2111
        %v2201 = vpop.f32.mrb[0].mxu0
        %v2202 = vadd.f32 0.0, %v2201
        %v2203 = vpop.f32.mrb[0].mxu0
        %v2204 = vpop.f32.mrb[0].mxu0
        %v2205 = vadd.f32 0.0, %v2204
        %v2206 = vpop.f32.mrb[0].mxu0
        %2207 = vmatprep.mubr.bf16.mxu0 0
        %2208 = vmatmul.mubr.bf16.gmra.mrb[0].mxu0 %v2114
        %v2209 = vpop.f32.mrb[0].mxu0
        %v2210 = vadd.f32 0.0, %v2209
        %v2211 = vpop.f32.mrb[0].mxu0
        %v2212 = vpop.f32.mrb[0].mxu0
        %v2213 = vadd.f32 0.0, %v2212
        %v2214 = vpop.f32.mrb[0].mxu0
        %2215 = vmatprep.mubr.bf16.mxu0 0
        %2216 = vmatmul.mubr.bf16.gmra.mrb[0].mxu0 %v2117
        %v2217 = vpop.f32.mrb[0].mxu0
        %v2218 = vadd.f32 0.0, %v2217
        %v2219 = vpop.f32.mrb[0].mxu0
        %v2220 = vpop.f32.mrb[0].mxu0
        %v2221 = vadd.f32 0.0, %v2220
        %v2222 = vpop.f32.mrb[0].mxu0
        %2223 = vmatprep.mubr.bf16.mxu0 0
        %2224 = vmatmul.mubr.bf16.gmra.mrb[0].mxu0 %v2120
        %v2225 = vpop.f32.mrb[0].mxu0
        %v2226 = vadd.f32 0.0, %v2225
        %v2227 = vpop.f32.mrb[0].mxu0
        %v2228 = vpop.f32.mrb[0].mxu0
        %v2229 = vadd.f32 0.0, %v2228
        %v2230 = vpop.f32.mrb[0].mxu0
        %2231 = vmatprep.mubr.bf16.mxu0 0
        %2232 = vmatmul.mubr.bf16.gmra.mrb[0].mxu0 %v2123
        %v2233 = vpop.f32.mrb[0].mxu0
        %v2234 = vadd.f32 0.0, %v2233
        %v2235 = vpop.f32.mrb[0].mxu0
        %v2236 = vpop.f32.mrb[0].mxu0
        %v2237 = vadd.f32 0.0, %v2236
        %v2238 = vpop.f32.mrb[0].mxu0
        %2239 = vmatprep.mubr.bf16.mxu0 0
        %2240 = vmatmul.mubr.bf16.gmra.mrb[0].mxu0 %v2126
        %v2241 = vpop.f32.mrb[0].mxu0
        %v2242 = vadd.f32 0.0, %v2241
        %v2243 = vpop.f32.mrb[0].mxu0
        %v2244 = vpop.f32.mrb[0].mxu0
        %v2245 = vadd.f32 0.0, %v2244
        %v2246 = vpop.f32.mrb[0].mxu0
        %2247 = vmatprep.mubr.bf16.mxu0 0
        %2248 = vmatmul.mubr.bf16.gmra.mrb[0].mxu0 %v2129
        %v2249 = vpop.f32.mrb[0].mxu0
        %v2250 = vadd.f32 0.0, %v2249
        %v2251 = vpop.f32.mrb[0].mxu0
        %v2252 = vpop.f32.mrb[0].mxu0
        %v2253 = vadd.f32 0.0, %v2252
        %v2254 = vpop.f32.mrb[0].mxu0
        %2255 = vmatprep.mubr.bf16.mxu0 0
        %2256 = vmatmul.mubr.bf16.gmra.mrb[0].mxu0 %v2132
        %v2257 = vpop.f32.mrb[0].mxu0
        %v2258 = vadd.f32 0.0, %v2257
        %v2259 = vpop.f32.mrb[0].mxu0
        %v2260 = vpop.f32.mrb[0].mxu0
        %v2261 = vadd.f32 0.0, %v2260
        %v2262 = vpop.f32.mrb[0].mxu0
        %2263 = vmatprep.mubr.bf16.mxu0 0
        %2264 = vmatmul.mubr.bf16.gmra.mrb[0].mxu0 %v2135
        %v2265 = vpop.f32.mrb[0].mxu0
        %v2266 = vadd.f32 0.0, %v2265
        %v2267 = vpop.f32.mrb[0].mxu0
        %v2268 = vpop.f32.mrb[0].mxu0
        %v2269 = vadd.f32 0.0, %v2268
        %v2270 = vpop.f32.mrb[0].mxu0
        %2271 = vmatprep.mubr.bf16.mxu0 0
        %2272 = vmatmul.mubr.bf16.gmra.mrb[0].mxu0 %v2138
        %v2273 = vpop.f32.mrb[0].mxu0
        %v2274 = vadd.f32 0.0, %v2273
        %v2275 = vpop.f32.mrb[0].mxu0
        %v2276 = vpop.f32.mrb[0].mxu0
        %v2277 = vadd.f32 0.0, %v2276
        %v2278 = vpop.f32.mrb[0].mxu0
        %2279 = vmatprep.mubr.bf16.mxu0 0
        %2280 = vmatmul.mubr.bf16.gmra.mrb[0].mxu0 %v2141
        %v2281 = vpop.f32.mrb[0].mxu0
        %v2282 = vadd.f32 0.0, %v2281
        %v2283 = vpop.f32.mrb[0].mxu0
        %v2284 = vpop.f32.mrb[0].mxu0
        %v2285 = vadd.f32 0.0, %v2284
        %v2286 = vpop.f32.mrb[0].mxu0
        %2287 = vmatprep.mubr.bf16.mxu0 0
        %2288 = vmatmul.mubr.bf16.gmra.mrb[0].mxu0 %v2144
        %v2289 = vpop.f32.mrb[0].mxu0
        %v2290 = vadd.f32 0.0, %v2289
        %v2291 = vpop.f32.mrb[0].mxu0
        %v2292 = vpop.f32.mrb[0].mxu0
        %v2293 = vadd.f32 0.0, %v2292
        %v2294 = vpop.f32.mrb[0].mxu0
        %2295 = vmatprep.mubr.bf16.mxu0 0
        %2296 = vmatmul.mubr.bf16.gmra.mrb[0].mxu0 %v2147
        %v2297 = vpop.f32.mrb[0].mxu0
        %v2298 = vadd.f32 0.0, %v2297
        %v2299 = vpop.f32.mrb[0].mxu0
        %v2300 = vpop.f32.mrb[0].mxu0
        %v2301 = vadd.f32 0.0, %v2300
        %v2302 = vpop.f32.mrb[0].mxu0
        %2303 = vmatprep.mubr.bf16.mxu0 0
        %2304 = vmatmul.mubr.bf16.gmra.mrb[0].mxu0 %v2150
        %v2305 = vpop.f32.mrb[0].mxu0
        %v2306 = vadd.f32 0.0, %v2305
        %v2307 = vpop.f32.mrb[0].mxu0
        %v2308 = vpop.f32.mrb[0].mxu0
        %v2309 = vadd.f32 0.0, %v2308
        %v2310 = vpop.f32.mrb[0].mxu0
        %2311 = vmatprep.mubr.bf16.mxu0 0
        %2312 = vmatmul.mubr.bf16.gmra.mrb[0].mxu0 %v2153
        %v2313 = vpop.f32.mrb[0].mxu0
        %v2314 = vadd.f32 0.0, %v2313
        %v2315 = vpop.f32.mrb[0].mxu0
        %v2316 = vpop.f32.mrb[0].mxu0
        %v2317 = vadd.f32 0.0, %v2316
        %v2318 = vpop.f32.mrb[0].mxu0
        %2319 = vmatprep.mubr.bf16.mxu0 0
        %2320 = vmatmul.mubr.bf16.gmra.mrb[0].mxu0 %v2156
        %v2321 = vpop.f32.mrb[0].mxu0
        %v2322 = vadd.f32 0.0, %v2321
        %v2323 = vpop.f32.mrb[0].mxu0
        %v2324 = vpop.f32.mrb[0].mxu0
        %v2325 = vadd.f32 0.0, %v2324
        %v2326 = vpop.f32.mrb[0].mxu0
        %2327 = vmatprep.mubr.bf16.mxu0 0
        %2328 = vmatmul.mubr.bf16.gmra.mrb[0].mxu0 %v2159
        %v2329 = vpop.f32.mrb[0].mxu0
        %v2330 = vadd.f32 0.0, %v2329
        %v2331 = vpop.f32.mrb[0].mxu0
        %v2332 = vpop.f32.mrb[0].mxu0
        %v2333 = vadd.f32 0.0, %v2332
        %v2334 = vpop.f32.mrb[0].mxu0
        %2335 = vmatprep.mubr.bf16.mxu0 0
        %2336 = vmatmul.mubr.bf16.gmra.mrb[0].mxu0 %v2162
        %v2337 = vpop.f32.mrb[0].mxu0
        %v2338 = vadd.f32 0.0, %v2337
        %v2339 = vpop.f32.mrb[0].mxu0
        %v2340 = vpop.f32.mrb[0].mxu0
        %v2341 = vadd.f32 0.0, %v2340
        %v2342 = vpop.f32.mrb[0].mxu0
        %2343 = vdwg.mxu0
        %v2344 = vadd.f32 %v2018, %v2202
        %v2345 = vadd.f32 %v2019, %v2205
        %v2346 = vadd.f32 %v2020, %v2210
        %v2347 = vadd.f32 %v2021, %v2213
        %v2348 = vadd.f32 %v2022, %v2218
        %v2349 = vadd.f32 %v2023, %v2221
        %v2350 = vadd.f32 %v2024, %v2226
        %v2351 = vadd.f32 %v2025, %v2229
        %v2352 = vadd.f32 %v2026, %v2234
        %v2353 = vadd.f32 %v2027, %v2237
        %v2354 = vadd.f32 %v2028, %v2242
        %v2355 = vadd.f32 %v2029, %v2245
        %v2356 = vadd.f32 %v2030, %v2250
        %v2357 = vadd.f32 %v2031, %v2253
        %v2358 = vadd.f32 %v2032, %v2258
        %v2359 = vadd.f32 %v2033, %v2261
        %v2360 = vadd.f32 %v2034, %v2266
        %v2361 = vadd.f32 %v2035, %v2269
        %v2362 = vadd.f32 %v2036, %v2274
        %v2363 = vadd.f32 %v2037, %v2277
        %v2364 = vadd.f32 %v2038, %v2282
        %v2365 = vadd.f32 %v2039, %v2285
        %v2366 = vadd.f32 %v2040, %v2290
        %v2367 = vadd.f32 %v2041, %v2293
        %v2368 = vadd.f32 %v2042, %v2298
        %v2369 = vadd.f32 %v2043, %v2301
        %v2370 = vadd.f32 %v2044, %v2306
        %v2371 = vadd.f32 %v2045, %v2309
        %v2372 = vadd.f32 %v2046, %v2314
        %v2373 = vadd.f32 %v2047, %v2317
        %v2374 = vadd.f32 %v2048, %v2322
        %v2375 = vadd.f32 %v2049, %v2325
        %v2376 = vadd.f32 %v2050, %v2330
        %v2377 = vadd.f32 %v2051, %v2333
        %v2378 = vadd.f32 %v2052, %v2338
        %v2379 = vadd.f32 %v2053, %v2341
        %v2380 = vld [vmem:[%s167 + $0x25] sm:$0xff]
        %v2381 = vld [vmem:[%s167 + $0x2d] sm:$0xff]
        %v2382 = vld [vmem:[%s167 + $0x35] sm:$0xff]
        %v2383 = vld [vmem:[%s167 + $0x3d] sm:$0xff]
        %v2384 = vld [vmem:[%s167 + $0x45] sm:$0xff]
        %v2385 = vld [vmem:[%s167 + $0x4d] sm:$0xff]
        %v2386 = vld [vmem:[%s167 + $0x55] sm:$0xff]
        %v2387 = vld [vmem:[%s167 + $0x5d] sm:$0xff]
        %v2388 = vld [vmem:[%s167 + $0x65] sm:$0xff]
        %v2389 = vld [vmem:[%s167 + $0x6d] sm:$0xff]
        %v2390 = vld [vmem:[%s167 + $0x75] sm:$0xff]
        %v2391 = vld [vmem:[%s167 + $0x7d] sm:$0xff]
        %v2392 = vld [vmem:[%s167 + $0x85] sm:$0xff]
        %v2393 = vld [vmem:[%s167 + $0x8d] sm:$0xff]
        %v2394 = vld [vmem:[%s167 + $0x95] sm:$0xff]
        %v2395 = vld [vmem:[%s167 + $0x9d] sm:$0xff]
        %v2396 = vld [vmem:[%s167 + $0xa5] sm:$0xff]
        %v2397 = vld [vmem:[%s167 + $0xad] sm:$0xff]
        %v2398 = vld [vmem:[%s167 + $0xb5] sm:$0xff]
        %v2399 = vld [vmem:[%s167 + $0xbd] sm:$0xff]
        %v2400 = vld [vmem:[%s167 + $0xc5] sm:$0xff]
        %v2401 = vld [vmem:[%s167 + $0xcd] sm:$0xff]
        %v2402 = vld [vmem:[%s167 + $0xd5] sm:$0xff]
        %v2403 = vld [vmem:[%s167 + $0xdd] sm:$0xff]
        %v2404 = vld [vmem:[%s167 + $0xe5] sm:$0xff]
        %v2405 = vld [vmem:[%s167 + $0xed] sm:$0xff]
        %v2406 = vld [vmem:[%s167 + $0xf5] sm:$0xff]
        %v2407 = vld [vmem:[%s167 + $0xfd] sm:$0xff]
        %v2408 = vld [vmem:[%s167 + $0x105] sm:$0xff]
        %v2409 = vld [vmem:[%s167 + $0x10d] sm:$0xff]
        %v2410 = vld [vmem:[%s167 + $0x115] sm:$0xff]
        %v2411 = vld [vmem:[%s167 + $0x11d] sm:$0xff]
        %v2412 = vld [vmem:[%s167 + $0x125] sm:$0xff]
        %v2413 = vld [vmem:[%s167 + $0x12d] sm:$0xff]
        %v2414 = vld [vmem:[%s167 + $0x135] sm:$0xff]
        %v2415 = vld [vmem:[%s167 + $0x13d] sm:$0xff]
        %v2416 = vpack.c.bf16 %v2381, %v2380
        %v2417 = vpack.c.bf16 %v2383, %v2382
        %v2418 = vpack.c.bf16 %v2385, %v2384
        %v2419 = vpack.c.bf16 %v2387, %v2386
        %v2420 = vpack.c.bf16 %v2389, %v2388
        %v2421 = vpack.c.bf16 %v2391, %v2390
        %v2422 = vpack.c.bf16 %v2393, %v2392
        %v2423 = vpack.c.bf16 %v2395, %v2394
        %v2424 = vpack.c.bf16 %v2397, %v2396
        %v2425 = vpack.c.bf16 %v2399, %v2398
        %v2426 = vpack.c.bf16 %v2401, %v2400
        %v2427 = vpack.c.bf16 %v2403, %v2402
        %v2428 = vpack.c.bf16 %v2405, %v2404
        %v2429 = vpack.c.bf16 %v2407, %v2406
        %v2430 = vpack.c.bf16 %v2409, %v2408
        %v2431 = vpack.c.bf16 %v2411, %v2410
        %v2432 = vpack.c.bf16 %v2413, %v2412
        %v2433 = vpack.c.bf16 %v2415, %v2414
        %s2434 = scalar_lea.vmem %s1, 14
        %v2435 = vld [vmem:[%s2434] sm:$0x3]
        %v2437 = vsel %vm280, %v2416, 0
        %v2440 = vsel %vm280, %v2417, 0
        %v2443 = vsel %vm280, %v2418, 0
        %v2446 = vsel %vm280, %v2419, 0
        %v2449 = vsel %vm280, %v2420, 0
        %v2452 = vsel %vm280, %v2421, 0
        %v2455 = vsel %vm280, %v2422, 0
        %v2458 = vsel %vm280, %v2423, 0
        %v2461 = vsel %vm280, %v2424, 0
        %v2464 = vsel %vm280, %v2425, 0
        %v2467 = vsel %vm280, %v2426, 0
        %v2470 = vsel %vm280, %v2427, 0
        %v2473 = vsel %vm280, %v2428, 0
        %v2476 = vsel %vm280, %v2429, 0
        %v2479 = vsel %vm280, %v2430, 0
        %v2482 = vsel %vm280, %v2431, 0
        %v2485 = vsel %vm280, %v2432, 0
        %v2488 = vsel %vm280, %v2433, 0
        %v2491 = vsel %vm335, %v2435, 0
        %2493 = vmatprep.subr.bf16.mxu0 0
        %2494 = vmatpush1.bf16.msra.mxu0 %v2491
        %2495 = vmatprep.subr.bf16.mxu0 0
        %2496 = vmatpush1.bf16.msra.mxu0 0
        %2497 = vmatprep.subr.bf16.mxu0 0
        %2498 = vmatpush1.bf16.msra.mxu0 0
        %2499 = vmatprep.subr.bf16.mxu0 0
        %2500 = vmatpush1.bf16.msra.mxu0 0
        %2501 = vmatprep.subr.bf16.mxu0 0
        %2502 = vmatpush1.bf16.msra.mxu0 0
        %2503 = vmatprep.subr.bf16.mxu0 0
        %2504 = vmatpush1.bf16.msra.mxu0 0
        %2505 = vmatprep.subr.bf16.mxu0 0
        %2506 = vmatpush1.bf16.msra.mxu0 0
        %2507 = vmatprep.subr.bf16.mxu0 0
        %2508 = vmatpush1.bf16.msra.mxu0 0
        %2509 = vmatprep.subr.bf16.mxu0 0
        %2510 = vmatpush1.bf16.msra.mxu0 0
        %2511 = vmatprep.subr.bf16.mxu0 0
        %2512 = vmatpush1.bf16.msra.mxu0 0
        %2513 = vmatprep.subr.bf16.mxu0 0
        %2514 = vmatpush1.bf16.msra.mxu0 0
        %2515 = vmatprep.subr.bf16.mxu0 0
        %2516 = vmatpush1.bf16.msra.mxu0 0
        %2517 = vmatprep.subr.bf16.mxu0 0
        %2518 = vmatpush1.bf16.msra.mxu0 0
        %2519 = vmatprep.subr.bf16.mxu0 0
        %2520 = vmatpush1.bf16.msra.mxu0 0
        %2521 = vmatprep.subr.bf16.mxu0 0
        %2522 = vmatpush1.bf16.msra.mxu0 0
        %2523 = vmatprep.subr.bf16.mxu0 0
        %2524 = vmatpush1.bf16.msra.mxu0 0
        %2525 = vmatprep.mubr.bf16.mxu0 0
        %2526 = vmatmul.mubr.bf16.gmra.mrb[0].mxu0 %v2437
        %v2527 = vpop.f32.mrb[0].mxu0
        %v2528 = vadd.f32 0.0, %v2527
        %v2529 = vpop.f32.mrb[0].mxu0
        %v2530 = vpop.f32.mrb[0].mxu0
        %v2531 = vadd.f32 0.0, %v2530
        %v2532 = vpop.f32.mrb[0].mxu0
        %2533 = vmatprep.mubr.bf16.mxu0 0
        %2534 = vmatmul.mubr.bf16.gmra.mrb[0].mxu0 %v2440
        %v2535 = vpop.f32.mrb[0].mxu0
        %v2536 = vadd.f32 0.0, %v2535
        %v2537 = vpop.f32.mrb[0].mxu0
        %v2538 = vpop.f32.mrb[0].mxu0
        %v2539 = vadd.f32 0.0, %v2538
        %v2540 = vpop.f32.mrb[0].mxu0
        %2541 = vmatprep.mubr.bf16.mxu0 0
        %2542 = vmatmul.mubr.bf16.gmra.mrb[0].mxu0 %v2443
        %v2543 = vpop.f32.mrb[0].mxu0
        %v2544 = vadd.f32 0.0, %v2543
        %v2545 = vpop.f32.mrb[0].mxu0
        %v2546 = vpop.f32.mrb[0].mxu0
        %v2547 = vadd.f32 0.0, %v2546
        %v2548 = vpop.f32.mrb[0].mxu0
        %2549 = vmatprep.mubr.bf16.mxu0 0
        %2550 = vmatmul.mubr.bf16.gmra.mrb[0].mxu0 %v2446
        %v2551 = vpop.f32.mrb[0].mxu0
        %v2552 = vadd.f32 0.0, %v2551
        %v2553 = vpop.f32.mrb[0].mxu0
        %v2554 = vpop.f32.mrb[0].mxu0
        %v2555 = vadd.f32 0.0, %v2554
        %v2556 = vpop.f32.mrb[0].mxu0
        %2557 = vmatprep.mubr.bf16.mxu0 0
        %2558 = vmatmul.mubr.bf16.gmra.mrb[0].mxu0 %v2449
        %v2559 = vpop.f32.mrb[0].mxu0
        %v2560 = vadd.f32 0.0, %v2559
        %v2561 = vpop.f32.mrb[0].mxu0
        %v2562 = vpop.f32.mrb[0].mxu0
        %v2563 = vadd.f32 0.0, %v2562
        %v2564 = vpop.f32.mrb[0].mxu0
        %2565 = vmatprep.mubr.bf16.mxu0 0
        %2566 = vmatmul.mubr.bf16.gmra.mrb[0].mxu0 %v2452
        %v2567 = vpop.f32.mrb[0].mxu0
        %v2568 = vadd.f32 0.0, %v2567
        %v2569 = vpop.f32.mrb[0].mxu0
        %v2570 = vpop.f32.mrb[0].mxu0
        %v2571 = vadd.f32 0.0, %v2570
        %v2572 = vpop.f32.mrb[0].mxu0
        %2573 = vmatprep.mubr.bf16.mxu0 0
        %2574 = vmatmul.mubr.bf16.gmra.mrb[0].mxu0 %v2455
        %v2575 = vpop.f32.mrb[0].mxu0
        %v2576 = vadd.f32 0.0, %v2575
        %v2577 = vpop.f32.mrb[0].mxu0
        %v2578 = vpop.f32.mrb[0].mxu0
        %v2579 = vadd.f32 0.0, %v2578
        %v2580 = vpop.f32.mrb[0].mxu0
        %2581 = vmatprep.mubr.bf16.mxu0 0
        %2582 = vmatmul.mubr.bf16.gmra.mrb[0].mxu0 %v2458
        %v2583 = vpop.f32.mrb[0].mxu0
        %v2584 = vadd.f32 0.0, %v2583
        %v2585 = vpop.f32.mrb[0].mxu0
        %v2586 = vpop.f32.mrb[0].mxu0
        %v2587 = vadd.f32 0.0, %v2586
        %v2588 = vpop.f32.mrb[0].mxu0
        %2589 = vmatprep.mubr.bf16.mxu0 0
        %2590 = vmatmul.mubr.bf16.gmra.mrb[0].mxu0 %v2461
        %v2591 = vpop.f32.mrb[0].mxu0
        %v2592 = vadd.f32 0.0, %v2591
        %v2593 = vpop.f32.mrb[0].mxu0
        %v2594 = vpop.f32.mrb[0].mxu0
        %v2595 = vadd.f32 0.0, %v2594
        %v2596 = vpop.f32.mrb[0].mxu0
        %2597 = vmatprep.mubr.bf16.mxu0 0
        %2598 = vmatmul.mubr.bf16.gmra.mrb[0].mxu0 %v2464
        %v2599 = vpop.f32.mrb[0].mxu0
        %v2600 = vadd.f32 0.0, %v2599
        %v2601 = vpop.f32.mrb[0].mxu0
        %v2602 = vpop.f32.mrb[0].mxu0
        %v2603 = vadd.f32 0.0, %v2602
        %v2604 = vpop.f32.mrb[0].mxu0
        %2605 = vmatprep.mubr.bf16.mxu0 0
        %2606 = vmatmul.mubr.bf16.gmra.mrb[0].mxu0 %v2467
        %v2607 = vpop.f32.mrb[0].mxu0
        %v2608 = vadd.f32 0.0, %v2607
        %v2609 = vpop.f32.mrb[0].mxu0
        %v2610 = vpop.f32.mrb[0].mxu0
        %v2611 = vadd.f32 0.0, %v2610
        %v2612 = vpop.f32.mrb[0].mxu0
        %2613 = vmatprep.mubr.bf16.mxu0 0
        %2614 = vmatmul.mubr.bf16.gmra.mrb[0].mxu0 %v2470
        %v2615 = vpop.f32.mrb[0].mxu0
        %v2616 = vadd.f32 0.0, %v2615
        %v2617 = vpop.f32.mrb[0].mxu0
        %v2618 = vpop.f32.mrb[0].mxu0
        %v2619 = vadd.f32 0.0, %v2618
        %v2620 = vpop.f32.mrb[0].mxu0
        %2621 = vmatprep.mubr.bf16.mxu0 0
        %2622 = vmatmul.mubr.bf16.gmra.mrb[0].mxu0 %v2473
        %v2623 = vpop.f32.mrb[0].mxu0
        %v2624 = vadd.f32 0.0, %v2623
        %v2625 = vpop.f32.mrb[0].mxu0
        %v2626 = vpop.f32.mrb[0].mxu0
        %v2627 = vadd.f32 0.0, %v2626
        %v2628 = vpop.f32.mrb[0].mxu0
        %2629 = vmatprep.mubr.bf16.mxu0 0
        %2630 = vmatmul.mubr.bf16.gmra.mrb[0].mxu0 %v2476
        %v2631 = vpop.f32.mrb[0].mxu0
        %v2632 = vadd.f32 0.0, %v2631
        %v2633 = vpop.f32.mrb[0].mxu0
        %v2634 = vpop.f32.mrb[0].mxu0
        %v2635 = vadd.f32 0.0, %v2634
        %v2636 = vpop.f32.mrb[0].mxu0
        %2637 = vmatprep.mubr.bf16.mxu0 0
        %2638 = vmatmul.mubr.bf16.gmra.mrb[0].mxu0 %v2479
        %v2639 = vpop.f32.mrb[0].mxu0
        %v2640 = vadd.f32 0.0, %v2639
        %v2641 = vpop.f32.mrb[0].mxu0
        %v2642 = vpop.f32.mrb[0].mxu0
        %v2643 = vadd.f32 0.0, %v2642
        %v2644 = vpop.f32.mrb[0].mxu0
        %2645 = vmatprep.mubr.bf16.mxu0 0
        %2646 = vmatmul.mubr.bf16.gmra.mrb[0].mxu0 %v2482
        %v2647 = vpop.f32.mrb[0].mxu0
        %v2648 = vadd.f32 0.0, %v2647
        %v2649 = vpop.f32.mrb[0].mxu0
        %v2650 = vpop.f32.mrb[0].mxu0
        %v2651 = vadd.f32 0.0, %v2650
        %v2652 = vpop.f32.mrb[0].mxu0
        %2653 = vmatprep.mubr.bf16.mxu0 0
        %2654 = vmatmul.mubr.bf16.gmra.mrb[0].mxu0 %v2485
        %v2655 = vpop.f32.mrb[0].mxu0
        %v2656 = vadd.f32 0.0, %v2655
        %v2657 = vpop.f32.mrb[0].mxu0
        %v2658 = vpop.f32.mrb[0].mxu0
        %v2659 = vadd.f32 0.0, %v2658
        %v2660 = vpop.f32.mrb[0].mxu0
        %2661 = vmatprep.mubr.bf16.mxu0 0
        %2662 = vmatmul.mubr.bf16.gmra.mrb[0].mxu0 %v2488
        %v2663 = vpop.f32.mrb[0].mxu0
        %v2664 = vadd.f32 0.0, %v2663
        %v2665 = vpop.f32.mrb[0].mxu0
        %v2666 = vpop.f32.mrb[0].mxu0
        %v2667 = vadd.f32 0.0, %v2666
        %v2668 = vpop.f32.mrb[0].mxu0
        %2669 = vdwg.mxu0
        %v2670 = vadd.f32 %v2344, %v2528
        %v2671 = vadd.f32 %v2345, %v2531
        %v2672 = vadd.f32 %v2346, %v2536
        %v2673 = vadd.f32 %v2347, %v2539
        %v2674 = vadd.f32 %v2348, %v2544
        %v2675 = vadd.f32 %v2349, %v2547
        %v2676 = vadd.f32 %v2350, %v2552
        %v2677 = vadd.f32 %v2351, %v2555
        %v2678 = vadd.f32 %v2352, %v2560
        %v2679 = vadd.f32 %v2353, %v2563
        %v2680 = vadd.f32 %v2354, %v2568
        %v2681 = vadd.f32 %v2355, %v2571
        %v2682 = vadd.f32 %v2356, %v2576
        %v2683 = vadd.f32 %v2357, %v2579
        %v2684 = vadd.f32 %v2358, %v2584
        %v2685 = vadd.f32 %v2359, %v2587
        %v2686 = vadd.f32 %v2360, %v2592
        %v2687 = vadd.f32 %v2361, %v2595
        %v2688 = vadd.f32 %v2362, %v2600
        %v2689 = vadd.f32 %v2363, %v2603
        %v2690 = vadd.f32 %v2364, %v2608
        %v2691 = vadd.f32 %v2365, %v2611
        %v2692 = vadd.f32 %v2366, %v2616
        %v2693 = vadd.f32 %v2367, %v2619
        %v2694 = vadd.f32 %v2368, %v2624
        %v2695 = vadd.f32 %v2369, %v2627
        %v2696 = vadd.f32 %v2370, %v2632
        %v2697 = vadd.f32 %v2371, %v2635
        %v2698 = vadd.f32 %v2372, %v2640
        %v2699 = vadd.f32 %v2373, %v2643
        %v2700 = vadd.f32 %v2374, %v2648
        %v2701 = vadd.f32 %v2375, %v2651
        %v2702 = vadd.f32 %v2376, %v2656
        %v2703 = vadd.f32 %v2377, %v2659
        %v2704 = vadd.f32 %v2378, %v2664
        %v2705 = vadd.f32 %v2379, %v2667
        %v2706 = vld [vmem:[%s167 + $0x26] sm:$0xff]
        %v2707 = vld [vmem:[%s167 + $0x2e] sm:$0xff]
        %v2708 = vld [vmem:[%s167 + $0x36] sm:$0xff]
        %v2709 = vld [vmem:[%s167 + $0x3e] sm:$0xff]
        %v2710 = vld [vmem:[%s167 + $0x46] sm:$0xff]
        %v2711 = vld [vmem:[%s167 + $0x4e] sm:$0xff]
        %v2712 = vld [vmem:[%s167 + $0x56] sm:$0xff]
        %v2713 = vld [vmem:[%s167 + $0x5e] sm:$0xff]
        %v2714 = vld [vmem:[%s167 + $0x66] sm:$0xff]
        %v2715 = vld [vmem:[%s167 + $0x6e] sm:$0xff]
        %v2716 = vld [vmem:[%s167 + $0x76] sm:$0xff]
        %v2717 = vld [vmem:[%s167 + $0x7e] sm:$0xff]
        %v2718 = vld [vmem:[%s167 + $0x86] sm:$0xff]
        %v2719 = vld [vmem:[%s167 + $0x8e] sm:$0xff]
        %v2720 = vld [vmem:[%s167 + $0x96] sm:$0xff]
        %v2721 = vld [vmem:[%s167 + $0x9e] sm:$0xff]
        %v2722 = vld [vmem:[%s167 + $0xa6] sm:$0xff]
        %v2723 = vld [vmem:[%s167 + $0xae] sm:$0xff]
        %v2724 = vld [vmem:[%s167 + $0xb6] sm:$0xff]
        %v2725 = vld [vmem:[%s167 + $0xbe] sm:$0xff]
        %v2726 = vld [vmem:[%s167 + $0xc6] sm:$0xff]
        %v2727 = vld [vmem:[%s167 + $0xce] sm:$0xff]
        %v2728 = vld [vmem:[%s167 + $0xd6] sm:$0xff]
        %v2729 = vld [vmem:[%s167 + $0xde] sm:$0xff]
        %v2730 = vld [vmem:[%s167 + $0xe6] sm:$0xff]
        %v2731 = vld [vmem:[%s167 + $0xee] sm:$0xff]
        %v2732 = vld [vmem:[%s167 + $0xf6] sm:$0xff]
        %v2733 = vld [vmem:[%s167 + $0xfe] sm:$0xff]
        %v2734 = vld [vmem:[%s167 + $0x106] sm:$0xff]
        %v2735 = vld [vmem:[%s167 + $0x10e] sm:$0xff]
        %v2736 = vld [vmem:[%s167 + $0x116] sm:$0xff]
        %v2737 = vld [vmem:[%s167 + $0x11e] sm:$0xff]
        %v2738 = vld [vmem:[%s167 + $0x126] sm:$0xff]
        %v2739 = vld [vmem:[%s167 + $0x12e] sm:$0xff]
        %v2740 = vld [vmem:[%s167 + $0x136] sm:$0xff]
        %v2741 = vld [vmem:[%s167 + $0x13e] sm:$0xff]
        %v2742 = vpack.c.bf16 %v2707, %v2706
        %v2743 = vpack.c.bf16 %v2709, %v2708
        %v2744 = vpack.c.bf16 %v2711, %v2710
        %v2745 = vpack.c.bf16 %v2713, %v2712
        %v2746 = vpack.c.bf16 %v2715, %v2714
        %v2747 = vpack.c.bf16 %v2717, %v2716
        %v2748 = vpack.c.bf16 %v2719, %v2718
        %v2749 = vpack.c.bf16 %v2721, %v2720
        %v2750 = vpack.c.bf16 %v2723, %v2722
        %v2751 = vpack.c.bf16 %v2725, %v2724
        %v2752 = vpack.c.bf16 %v2727, %v2726
        %v2753 = vpack.c.bf16 %v2729, %v2728
        %v2754 = vpack.c.bf16 %v2731, %v2730
        %v2755 = vpack.c.bf16 %v2733, %v2732
        %v2756 = vpack.c.bf16 %v2735, %v2734
        %v2757 = vpack.c.bf16 %v2737, %v2736
        %v2758 = vpack.c.bf16 %v2739, %v2738
        %v2759 = vpack.c.bf16 %v2741, %v2740
        %s2760 = scalar_lea.vmem %s1, 16
        %v2761 = vld [vmem:[%s2760] sm:$0x3]
        %v2763 = vsel %vm280, %v2742, 0
        %v2766 = vsel %vm280, %v2743, 0
        %v2769 = vsel %vm280, %v2744, 0
        %v2772 = vsel %vm280, %v2745, 0
        %v2775 = vsel %vm280, %v2746, 0
        %v2778 = vsel %vm280, %v2747, 0
        %v2781 = vsel %vm280, %v2748, 0
        %v2784 = vsel %vm280, %v2749, 0
        %v2787 = vsel %vm280, %v2750, 0
        %v2790 = vsel %vm280, %v2751, 0
        %v2793 = vsel %vm280, %v2752, 0
        %v2796 = vsel %vm280, %v2753, 0
        %v2799 = vsel %vm280, %v2754, 0
        %v2802 = vsel %vm280, %v2755, 0
        %v2805 = vsel %vm280, %v2756, 0
        %v2808 = vsel %vm280, %v2757, 0
        %v2811 = vsel %vm280, %v2758, 0
        %v2814 = vsel %vm280, %v2759, 0
        %v2817 = vsel %vm335, %v2761, 0
        %2819 = vmatprep.subr.bf16.mxu0 0
        %2820 = vmatpush1.bf16.msra.mxu0 %v2817
        %2821 = vmatprep.subr.bf16.mxu0 0
        %2822 = vmatpush1.bf16.msra.mxu0 0
        %2823 = vmatprep.subr.bf16.mxu0 0
        %2824 = vmatpush1.bf16.msra.mxu0 0
        %2825 = vmatprep.subr.bf16.mxu0 0
        %2826 = vmatpush1.bf16.msra.mxu0 0
        %2827 = vmatprep.subr.bf16.mxu0 0
        %2828 = vmatpush1.bf16.msra.mxu0 0
        %2829 = vmatprep.subr.bf16.mxu0 0
        %2830 = vmatpush1.bf16.msra.mxu0 0
        %2831 = vmatprep.subr.bf16.mxu0 0
        %2832 = vmatpush1.bf16.msra.mxu0 0
        %2833 = vmatprep.subr.bf16.mxu0 0
        %2834 = vmatpush1.bf16.msra.mxu0 0
        %2835 = vmatprep.subr.bf16.mxu0 0
        %2836 = vmatpush1.bf16.msra.mxu0 0
        %2837 = vmatprep.subr.bf16.mxu0 0
        %2838 = vmatpush1.bf16.msra.mxu0 0
        %2839 = vmatprep.subr.bf16.mxu0 0
        %2840 = vmatpush1.bf16.msra.mxu0 0
        %2841 = vmatprep.subr.bf16.mxu0 0
        %2842 = vmatpush1.bf16.msra.mxu0 0
        %2843 = vmatprep.subr.bf16.mxu0 0
        %2844 = vmatpush1.bf16.msra.mxu0 0
        %2845 = vmatprep.subr.bf16.mxu0 0
        %2846 = vmatpush1.bf16.msra.mxu0 0
        %2847 = vmatprep.subr.bf16.mxu0 0
        %2848 = vmatpush1.bf16.msra.mxu0 0
        %2849 = vmatprep.subr.bf16.mxu0 0
        %2850 = vmatpush1.bf16.msra.mxu0 0
        %2851 = vmatprep.mubr.bf16.mxu0 0
        %2852 = vmatmul.mubr.bf16.gmra.mrb[0].mxu0 %v2763
        %v2853 = vpop.f32.mrb[0].mxu0
        %v2854 = vadd.f32 0.0, %v2853
        %v2855 = vpop.f32.mrb[0].mxu0
        %v2856 = vpop.f32.mrb[0].mxu0
        %v2857 = vadd.f32 0.0, %v2856
        %v2858 = vpop.f32.mrb[0].mxu0
        %2859 = vmatprep.mubr.bf16.mxu0 0
        %2860 = vmatmul.mubr.bf16.gmra.mrb[0].mxu0 %v2766
        %v2861 = vpop.f32.mrb[0].mxu0
        %v2862 = vadd.f32 0.0, %v2861
        %v2863 = vpop.f32.mrb[0].mxu0
        %v2864 = vpop.f32.mrb[0].mxu0
        %v2865 = vadd.f32 0.0, %v2864
        %v2866 = vpop.f32.mrb[0].mxu0
        %2867 = vmatprep.mubr.bf16.mxu0 0
        %2868 = vmatmul.mubr.bf16.gmra.mrb[0].mxu0 %v2769
        %v2869 = vpop.f32.mrb[0].mxu0
        %v2870 = vadd.f32 0.0, %v2869
        %v2871 = vpop.f32.mrb[0].mxu0
        %v2872 = vpop.f32.mrb[0].mxu0
        %v2873 = vadd.f32 0.0, %v2872
        %v2874 = vpop.f32.mrb[0].mxu0
        %2875 = vmatprep.mubr.bf16.mxu0 0
        %2876 = vmatmul.mubr.bf16.gmra.mrb[0].mxu0 %v2772
        %v2877 = vpop.f32.mrb[0].mxu0
        %v2878 = vadd.f32 0.0, %v2877
        %v2879 = vpop.f32.mrb[0].mxu0
        %v2880 = vpop.f32.mrb[0].mxu0
        %v2881 = vadd.f32 0.0, %v2880
        %v2882 = vpop.f32.mrb[0].mxu0
        %2883 = vmatprep.mubr.bf16.mxu0 0
        %2884 = vmatmul.mubr.bf16.gmra.mrb[0].mxu0 %v2775
        %v2885 = vpop.f32.mrb[0].mxu0
        %v2886 = vadd.f32 0.0, %v2885
        %v2887 = vpop.f32.mrb[0].mxu0
        %v2888 = vpop.f32.mrb[0].mxu0
        %v2889 = vadd.f32 0.0, %v2888
        %v2890 = vpop.f32.mrb[0].mxu0
        %2891 = vmatprep.mubr.bf16.mxu0 0
        %2892 = vmatmul.mubr.bf16.gmra.mrb[0].mxu0 %v2778
        %v2893 = vpop.f32.mrb[0].mxu0
        %v2894 = vadd.f32 0.0, %v2893
        %v2895 = vpop.f32.mrb[0].mxu0
        %v2896 = vpop.f32.mrb[0].mxu0
        %v2897 = vadd.f32 0.0, %v2896
        %v2898 = vpop.f32.mrb[0].mxu0
        %2899 = vmatprep.mubr.bf16.mxu0 0
        %2900 = vmatmul.mubr.bf16.gmra.mrb[0].mxu0 %v2781
        %v2901 = vpop.f32.mrb[0].mxu0
        %v2902 = vadd.f32 0.0, %v2901
        %v2903 = vpop.f32.mrb[0].mxu0
        %v2904 = vpop.f32.mrb[0].mxu0
        %v2905 = vadd.f32 0.0, %v2904
        %v2906 = vpop.f32.mrb[0].mxu0
        %2907 = vmatprep.mubr.bf16.mxu0 0
        %2908 = vmatmul.mubr.bf16.gmra.mrb[0].mxu0 %v2784
        %v2909 = vpop.f32.mrb[0].mxu0
        %v2910 = vadd.f32 0.0, %v2909
        %v2911 = vpop.f32.mrb[0].mxu0
        %v2912 = vpop.f32.mrb[0].mxu0
        %v2913 = vadd.f32 0.0, %v2912
        %v2914 = vpop.f32.mrb[0].mxu0
        %2915 = vmatprep.mubr.bf16.mxu0 0
        %2916 = vmatmul.mubr.bf16.gmra.mrb[0].mxu0 %v2787
        %v2917 = vpop.f32.mrb[0].mxu0
        %v2918 = vadd.f32 0.0, %v2917
        %v2919 = vpop.f32.mrb[0].mxu0
        %v2920 = vpop.f32.mrb[0].mxu0
        %v2921 = vadd.f32 0.0, %v2920
        %v2922 = vpop.f32.mrb[0].mxu0
        %2923 = vmatprep.mubr.bf16.mxu0 0
        %2924 = vmatmul.mubr.bf16.gmra.mrb[0].mxu0 %v2790
        %v2925 = vpop.f32.mrb[0].mxu0
        %v2926 = vadd.f32 0.0, %v2925
        %v2927 = vpop.f32.mrb[0].mxu0
        %v2928 = vpop.f32.mrb[0].mxu0
        %v2929 = vadd.f32 0.0, %v2928
        %v2930 = vpop.f32.mrb[0].mxu0
        %2931 = vmatprep.mubr.bf16.mxu0 0
        %2932 = vmatmul.mubr.bf16.gmra.mrb[0].mxu0 %v2793
        %v2933 = vpop.f32.mrb[0].mxu0
        %v2934 = vadd.f32 0.0, %v2933
        %v2935 = vpop.f32.mrb[0].mxu0
        %v2936 = vpop.f32.mrb[0].mxu0
        %v2937 = vadd.f32 0.0, %v2936
        %v2938 = vpop.f32.mrb[0].mxu0
        %2939 = vmatprep.mubr.bf16.mxu0 0
        %2940 = vmatmul.mubr.bf16.gmra.mrb[0].mxu0 %v2796
        %v2941 = vpop.f32.mrb[0].mxu0
        %v2942 = vadd.f32 0.0, %v2941
        %v2943 = vpop.f32.mrb[0].mxu0
        %v2944 = vpop.f32.mrb[0].mxu0
        %v2945 = vadd.f32 0.0, %v2944
        %v2946 = vpop.f32.mrb[0].mxu0
        %2947 = vmatprep.mubr.bf16.mxu0 0
        %2948 = vmatmul.mubr.bf16.gmra.mrb[0].mxu0 %v2799
        %v2949 = vpop.f32.mrb[0].mxu0
        %v2950 = vadd.f32 0.0, %v2949
        %v2951 = vpop.f32.mrb[0].mxu0
        %v2952 = vpop.f32.mrb[0].mxu0
        %v2953 = vadd.f32 0.0, %v2952
        %v2954 = vpop.f32.mrb[0].mxu0
        %2955 = vmatprep.mubr.bf16.mxu0 0
        %2956 = vmatmul.mubr.bf16.gmra.mrb[0].mxu0 %v2802
        %v2957 = vpop.f32.mrb[0].mxu0
        %v2958 = vadd.f32 0.0, %v2957
        %v2959 = vpop.f32.mrb[0].mxu0
        %v2960 = vpop.f32.mrb[0].mxu0
        %v2961 = vadd.f32 0.0, %v2960
        %v2962 = vpop.f32.mrb[0].mxu0
        %2963 = vmatprep.mubr.bf16.mxu0 0
        %2964 = vmatmul.mubr.bf16.gmra.mrb[0].mxu0 %v2805
        %v2965 = vpop.f32.mrb[0].mxu0
        %v2966 = vadd.f32 0.0, %v2965
        %v2967 = vpop.f32.mrb[0].mxu0
        %v2968 = vpop.f32.mrb[0].mxu0
        %v2969 = vadd.f32 0.0, %v2968
        %v2970 = vpop.f32.mrb[0].mxu0
        %2971 = vmatprep.mubr.bf16.mxu0 0
        %2972 = vmatmul.mubr.bf16.gmra.mrb[0].mxu0 %v2808
        %v2973 = vpop.f32.mrb[0].mxu0
        %v2974 = vadd.f32 0.0, %v2973
        %v2975 = vpop.f32.mrb[0].mxu0
        %v2976 = vpop.f32.mrb[0].mxu0
        %v2977 = vadd.f32 0.0, %v2976
        %v2978 = vpop.f32.mrb[0].mxu0
        %2979 = vmatprep.mubr.bf16.mxu0 0
        %2980 = vmatmul.mubr.bf16.gmra.mrb[0].mxu0 %v2811
        %v2981 = vpop.f32.mrb[0].mxu0
        %v2982 = vadd.f32 0.0, %v2981
        %v2983 = vpop.f32.mrb[0].mxu0
        %v2984 = vpop.f32.mrb[0].mxu0
        %v2985 = vadd.f32 0.0, %v2984
        %v2986 = vpop.f32.mrb[0].mxu0
        %2987 = vmatprep.mubr.bf16.mxu0 0
        %2988 = vmatmul.mubr.bf16.gmra.mrb[0].mxu0 %v2814
        %v2989 = vpop.f32.mrb[0].mxu0
        %v2990 = vadd.f32 0.0, %v2989
        %v2991 = vpop.f32.mrb[0].mxu0
        %v2992 = vpop.f32.mrb[0].mxu0
        %v2993 = vadd.f32 0.0, %v2992
        %v2994 = vpop.f32.mrb[0].mxu0
        %2995 = vdwg.mxu0
        %v2996 = vadd.f32 %v2670, %v2854
        %v2997 = vadd.f32 %v2671, %v2857
        %v2998 = vadd.f32 %v2672, %v2862
        %v2999 = vadd.f32 %v2673, %v2865
        %v3000 = vadd.f32 %v2674, %v2870
        %v3001 = vadd.f32 %v2675, %v2873
        %v3002 = vadd.f32 %v2676, %v2878
        %v3003 = vadd.f32 %v2677, %v2881
        %v3004 = vadd.f32 %v2678, %v2886
        %v3005 = vadd.f32 %v2679, %v2889
        %v3006 = vadd.f32 %v2680, %v2894
        %v3007 = vadd.f32 %v2681, %v2897
        %v3008 = vadd.f32 %v2682, %v2902
        %v3009 = vadd.f32 %v2683, %v2905
        %v3010 = vadd.f32 %v2684, %v2910
        %v3011 = vadd.f32 %v2685, %v2913
        %v3012 = vadd.f32 %v2686, %v2918
        %v3013 = vadd.f32 %v2687, %v2921
        %v3014 = vadd.f32 %v2688, %v2926
        %v3015 = vadd.f32 %v2689, %v2929
        %v3016 = vadd.f32 %v2690, %v2934
        %v3017 = vadd.f32 %v2691, %v2937
        %v3018 = vadd.f32 %v2692, %v2942
        %v3019 = vadd.f32 %v2693, %v2945
        %v3020 = vadd.f32 %v2694, %v2950
        %v3021 = vadd.f32 %v2695, %v2953
        %v3022 = vadd.f32 %v2696, %v2958
        %v3023 = vadd.f32 %v2697, %v2961
        %v3024 = vadd.f32 %v2698, %v2966
        %v3025 = vadd.f32 %v2699, %v2969
        %v3026 = vadd.f32 %v2700, %v2974
        %v3027 = vadd.f32 %v2701, %v2977
        %v3028 = vadd.f32 %v2702, %v2982
        %v3029 = vadd.f32 %v2703, %v2985
        %v3030 = vadd.f32 %v2704, %v2990
        %v3031 = vadd.f32 %v2705, %v2993
        %v3032 = vld [vmem:[%s2] sm:$0x1]
        %v3034 = vlaneseq
        %v3035 = vshrl.u32 %v3034, 7
        %v3036 = vsub.s32 0, %v3035
        %v3037 = vrot.slane %v3032, %v3036
        %v3039 = vadd.f32 %v2996, %v3037
        %v3040 = vadd.f32 %v2997, %v3037
        %v3041 = vadd.f32 %v2998, %v3037
        %v3042 = vadd.f32 %v2999, %v3037
        %v3043 = vadd.f32 %v3000, %v3037
        %v3044 = vadd.f32 %v3001, %v3037
        %v3045 = vadd.f32 %v3002, %v3037
        %v3046 = vadd.f32 %v3003, %v3037
        %v3047 = vadd.f32 %v3004, %v3037
        %v3048 = vadd.f32 %v3005, %v3037
        %v3049 = vadd.f32 %v3006, %v3037
        %v3050 = vadd.f32 %v3007, %v3037
        %v3051 = vadd.f32 %v3008, %v3037
        %v3052 = vadd.f32 %v3009, %v3037
        %v3053 = vadd.f32 %v3010, %v3037
        %v3054 = vadd.f32 %v3011, %v3037
        %v3055 = vadd.f32 %v3012, %v3037
        %v3056 = vadd.f32 %v3013, %v3037
        %v3057 = vadd.f32 %v3014, %v3037
        %v3058 = vadd.f32 %v3015, %v3037
        %v3059 = vadd.f32 %v3016, %v3037
        %v3060 = vadd.f32 %v3017, %v3037
        %v3061 = vadd.f32 %v3018, %v3037
        %v3062 = vadd.f32 %v3019, %v3037
        %v3063 = vadd.f32 %v3020, %v3037
        %v3064 = vadd.f32 %v3021, %v3037
        %v3065 = vadd.f32 %v3022, %v3037
        %v3066 = vadd.f32 %v3023, %v3037
        %v3067 = vadd.f32 %v3024, %v3037
        %v3068 = vadd.f32 %v3025, %v3037
        %v3069 = vadd.f32 %v3026, %v3037
        %v3070 = vadd.f32 %v3027, %v3037
        %v3071 = vadd.f32 %v3028, %v3037
        %v3072 = vadd.f32 %v3029, %v3037
        %v3073 = vadd.f32 %v3030, %v3037
        %v3074 = vadd.f32 %v3031, %v3037
        %v3075 = vmax.f32 %v3039, 0.0
        %v3076 = vmax.f32 %v3040, 0.0
        %v3077 = vmax.f32 %v3041, 0.0
        %v3078 = vmax.f32 %v3042, 0.0
        %v3079 = vmax.f32 %v3043, 0.0
        %v3080 = vmax.f32 %v3044, 0.0
        %v3081 = vmax.f32 %v3045, 0.0
        %v3082 = vmax.f32 %v3046, 0.0
        %v3083 = vmax.f32 %v3047, 0.0
        %v3084 = vmax.f32 %v3048, 0.0
        %v3085 = vmax.f32 %v3049, 0.0
        %v3086 = vmax.f32 %v3050, 0.0
        %v3087 = vmax.f32 %v3051, 0.0
        %v3088 = vmax.f32 %v3052, 0.0
        %v3089 = vmax.f32 %v3053, 0.0
        %v3090 = vmax.f32 %v3054, 0.0
        %v3091 = vmax.f32 %v3055, 0.0
        %v3092 = vmax.f32 %v3056, 0.0
        %v3093 = vmax.f32 %v3057, 0.0
        %v3094 = vmax.f32 %v3058, 0.0
        %v3095 = vmax.f32 %v3059, 0.0
        %v3096 = vmax.f32 %v3060, 0.0
        %v3097 = vmax.f32 %v3061, 0.0
        %v3098 = vmax.f32 %v3062, 0.0
        %v3099 = vmax.f32 %v3063, 0.0
        %v3100 = vmax.f32 %v3064, 0.0
        %v3101 = vmax.f32 %v3065, 0.0
        %v3102 = vmax.f32 %v3066, 0.0
        %v3103 = vmax.f32 %v3067, 0.0
        %v3104 = vmax.f32 %v3068, 0.0
        %v3105 = vmax.f32 %v3069, 0.0
        %v3106 = vmax.f32 %v3070, 0.0
        %v3107 = vmax.f32 %v3071, 0.0
        %v3108 = vmax.f32 %v3072, 0.0
        %v3109 = vmax.f32 %v3073, 0.0
        %v3110 = vmax.f32 %v3074, 0.0
        %v3111 = vlaneseq
        %v3112 = vshrl.u32 %v3111, 7
        %v3113 = vadd.s32 %v3112, 8
        %v3114 = vadd.s32 %v3112, 16
        %v3115 = vadd.s32 %v3112, 24
        %v3116 = vadd.s32 %v3112, 32
        %v3117 = vadd.s32 %v3112, 40
        %v3118 = vadd.s32 %v3112, 48
        %v3119 = vadd.s32 %v3112, 56
        %v3120 = vadd.s32 %v3112, 64
        %v3121 = vadd.s32 %v3112, 72
        %v3122 = vadd.s32 %v3112, 80
        %v3123 = vadd.s32 %v3112, 88
        %v3124 = vadd.s32 %v3112, 96
        %v3125 = vadd.s32 %v3112, 104
        %v3126 = vadd.s32 %v3112, 112
        %v3127 = vadd.s32 %v3112, 120
        %v3128 = vadd.s32 %v3112, 128
        %v3129 = vadd.s32 %v3112, 136
        %v3130 = vadd.s32 %v3112, 144
        %v3131 = vadd.s32 %v3112, 152
        %v3132 = vadd.s32 %v3112, 160
        %v3133 = vadd.s32 %v3112, 168
        %v3134 = vadd.s32 %v3112, 176
        %v3135 = vadd.s32 %v3112, 184
        %v3136 = vadd.s32 %v3112, 192
        %v3137 = vadd.s32 %v3112, 200
        %v3138 = vadd.s32 %v3112, 208
        %v3139 = vadd.s32 %v3112, 216
        %v3140 = vadd.s32 %v3112, 224
        %v3141 = vadd.s32 %v3112, 232
        %v3142 = vadd.s32 %v3112, 240
        %v3143 = vadd.s32 %v3112, 248
        %v3144 = vadd.s32 %v3112, 256
        %v3145 = vadd.s32 %v3112, 264
        %v3146 = vadd.s32 %v3112, 272
        %v3147 = vadd.s32 %v3112, 280
        %vm3148 = vcmp.lt.s32.totalorder %v3112, 0
        %v3149 = vsub.s32 0, %v3112
        %v3150 = vsel %vm3148, %v3149, %v3112
        %v3151 = vmul.u32.u64.compose %v3150, 3817748708
        %v3152 = vextract.low.u32 %v3151
        %v3153 = vextract.high.u32 %v3151
        %v3154 = vshrl.u32 %v3153, 4
        %v3155 = vmul.u32 %v3154, 18
        %v3156 = vsub.s32 %v3150, %v3155
        %v3157 = vsub.s32 0, %v3156
        %v3158 = vsel %vm3148, %v3157, %v3156
        %vm3159 = vcmp.lt.s32.totalorder %v3113, 0
        %v3160 = vsub.s32 0, %v3113
        %v3161 = vsel %vm3159, %v3160, %v3113
        %v3162 = vmul.u32.u64.compose %v3161, 3817748708
        %v3163 = vextract.low.u32 %v3162
        %v3164 = vextract.high.u32 %v3162
        %v3165 = vshrl.u32 %v3164, 4
        %v3166 = vmul.u32 %v3165, 18
        %v3167 = vsub.s32 %v3161, %v3166
        %v3168 = vsub.s32 0, %v3167
        %v3169 = vsel %vm3159, %v3168, %v3167
        %vm3170 = vcmp.lt.s32.totalorder %v3114, 0
        %v3171 = vsub.s32 0, %v3114
        %v3172 = vsel %vm3170, %v3171, %v3114
        %v3173 = vmul.u32.u64.compose %v3172, 3817748708
        %v3174 = vextract.low.u32 %v3173
        %v3175 = vextract.high.u32 %v3173
        %v3176 = vshrl.u32 %v3175, 4
        %v3177 = vmul.u32 %v3176, 18
        %v3178 = vsub.s32 %v3172, %v3177
        %v3179 = vsub.s32 0, %v3178
        %v3180 = vsel %vm3170, %v3179, %v3178
        %vm3181 = vcmp.lt.s32.totalorder %v3115, 0
        %v3182 = vsub.s32 0, %v3115
        %v3183 = vsel %vm3181, %v3182, %v3115
        %v3184 = vmul.u32.u64.compose %v3183, 3817748708
        %v3185 = vextract.low.u32 %v3184
        %v3186 = vextract.high.u32 %v3184
        %v3187 = vshrl.u32 %v3186, 4
        %v3188 = vmul.u32 %v3187, 18
        %v3189 = vsub.s32 %v3183, %v3188
        %v3190 = vsub.s32 0, %v3189
        %v3191 = vsel %vm3181, %v3190, %v3189
        %vm3192 = vcmp.lt.s32.totalorder %v3116, 0
        %v3193 = vsub.s32 0, %v3116
        %v3194 = vsel %vm3192, %v3193, %v3116
        %v3195 = vmul.u32.u64.compose %v3194, 3817748708
        %v3196 = vextract.low.u32 %v3195
        %v3197 = vextract.high.u32 %v3195
        %v3198 = vshrl.u32 %v3197, 4
        %v3199 = vmul.u32 %v3198, 18
        %v3200 = vsub.s32 %v3194, %v3199
        %v3201 = vsub.s32 0, %v3200
        %v3202 = vsel %vm3192, %v3201, %v3200
        %vm3203 = vcmp.lt.s32.totalorder %v3117, 0
        %v3204 = vsub.s32 0, %v3117
        %v3205 = vsel %vm3203, %v3204, %v3117
        %v3206 = vmul.u32.u64.compose %v3205, 3817748708
        %v3207 = vextract.low.u32 %v3206
        %v3208 = vextract.high.u32 %v3206
        %v3209 = vshrl.u32 %v3208, 4
        %v3210 = vmul.u32 %v3209, 18
        %v3211 = vsub.s32 %v3205, %v3210
        %v3212 = vsub.s32 0, %v3211
        %v3213 = vsel %vm3203, %v3212, %v3211
        %vm3214 = vcmp.lt.s32.totalorder %v3118, 0
        %v3215 = vsub.s32 0, %v3118
        %v3216 = vsel %vm3214, %v3215, %v3118
        %v3217 = vmul.u32.u64.compose %v3216, 3817748708
        %v3218 = vextract.low.u32 %v3217
        %v3219 = vextract.high.u32 %v3217
        %v3220 = vshrl.u32 %v3219, 4
        %v3221 = vmul.u32 %v3220, 18
        %v3222 = vsub.s32 %v3216, %v3221
        %v3223 = vsub.s32 0, %v3222
        %v3224 = vsel %vm3214, %v3223, %v3222
        %vm3225 = vcmp.lt.s32.totalorder %v3119, 0
        %v3226 = vsub.s32 0, %v3119
        %v3227 = vsel %vm3225, %v3226, %v3119
        %v3228 = vmul.u32.u64.compose %v3227, 3817748708
        %v3229 = vextract.low.u32 %v3228
        %v3230 = vextract.high.u32 %v3228
        %v3231 = vshrl.u32 %v3230, 4
        %v3232 = vmul.u32 %v3231, 18
        %v3233 = vsub.s32 %v3227, %v3232
        %v3234 = vsub.s32 0, %v3233
        %v3235 = vsel %vm3225, %v3234, %v3233
        %vm3236 = vcmp.lt.s32.totalorder %v3120, 0
        %v3237 = vsub.s32 0, %v3120
        %v3238 = vsel %vm3236, %v3237, %v3120
        %v3239 = vmul.u32.u64.compose %v3238, 3817748708
        %v3240 = vextract.low.u32 %v3239
        %v3241 = vextract.high.u32 %v3239
        %v3242 = vshrl.u32 %v3241, 4
        %v3243 = vmul.u32 %v3242, 18
        %v3244 = vsub.s32 %v3238, %v3243
        %v3245 = vsub.s32 0, %v3244
        %v3246 = vsel %vm3236, %v3245, %v3244
        %vm3247 = vcmp.lt.s32.totalorder %v3121, 0
        %v3248 = vsub.s32 0, %v3121
        %v3249 = vsel %vm3247, %v3248, %v3121
        %v3250 = vmul.u32.u64.compose %v3249, 3817748708
        %v3251 = vextract.low.u32 %v3250
        %v3252 = vextract.high.u32 %v3250
        %v3253 = vshrl.u32 %v3252, 4
        %v3254 = vmul.u32 %v3253, 18
        %v3255 = vsub.s32 %v3249, %v3254
        %v3256 = vsub.s32 0, %v3255
        %v3257 = vsel %vm3247, %v3256, %v3255
        %vm3258 = vcmp.lt.s32.totalorder %v3122, 0
        %v3259 = vsub.s32 0, %v3122
        %v3260 = vsel %vm3258, %v3259, %v3122
        %v3261 = vmul.u32.u64.compose %v3260, 3817748708
        %v3262 = vextract.low.u32 %v3261
        %v3263 = vextract.high.u32 %v3261
        %v3264 = vshrl.u32 %v3263, 4
        %v3265 = vmul.u32 %v3264, 18
        %v3266 = vsub.s32 %v3260, %v3265
        %v3267 = vsub.s32 0, %v3266
        %v3268 = vsel %vm3258, %v3267, %v3266
        %vm3269 = vcmp.lt.s32.totalorder %v3123, 0
        %v3270 = vsub.s32 0, %v3123
        %v3271 = vsel %vm3269, %v3270, %v3123
        %v3272 = vmul.u32.u64.compose %v3271, 3817748708
        %v3273 = vextract.low.u32 %v3272
        %v3274 = vextract.high.u32 %v3272
        %v3275 = vshrl.u32 %v3274, 4
        %v3276 = vmul.u32 %v3275, 18
        %v3277 = vsub.s32 %v3271, %v3276
        %v3278 = vsub.s32 0, %v3277
        %v3279 = vsel %vm3269, %v3278, %v3277
        %vm3280 = vcmp.lt.s32.totalorder %v3124, 0
        %v3281 = vsub.s32 0, %v3124
        %v3282 = vsel %vm3280, %v3281, %v3124
        %v3283 = vmul.u32.u64.compose %v3282, 3817748708
        %v3284 = vextract.low.u32 %v3283
        %v3285 = vextract.high.u32 %v3283
        %v3286 = vshrl.u32 %v3285, 4
        %v3287 = vmul.u32 %v3286, 18
        %v3288 = vsub.s32 %v3282, %v3287
        %v3289 = vsub.s32 0, %v3288
        %v3290 = vsel %vm3280, %v3289, %v3288
        %vm3291 = vcmp.lt.s32.totalorder %v3125, 0
        %v3292 = vsub.s32 0, %v3125
        %v3293 = vsel %vm3291, %v3292, %v3125
        %v3294 = vmul.u32.u64.compose %v3293, 3817748708
        %v3295 = vextract.low.u32 %v3294
        %v3296 = vextract.high.u32 %v3294
        %v3297 = vshrl.u32 %v3296, 4
        %v3298 = vmul.u32 %v3297, 18
        %v3299 = vsub.s32 %v3293, %v3298
        %v3300 = vsub.s32 0, %v3299
        %v3301 = vsel %vm3291, %v3300, %v3299
        %vm3302 = vcmp.lt.s32.totalorder %v3126, 0
        %v3303 = vsub.s32 0, %v3126
        %v3304 = vsel %vm3302, %v3303, %v3126
        %v3305 = vmul.u32.u64.compose %v3304, 3817748708
        %v3306 = vextract.low.u32 %v3305
        %v3307 = vextract.high.u32 %v3305
        %v3308 = vshrl.u32 %v3307, 4
        %v3309 = vmul.u32 %v3308, 18
        %v3310 = vsub.s32 %v3304, %v3309
        %v3311 = vsub.s32 0, %v3310
        %v3312 = vsel %vm3302, %v3311, %v3310
        %vm3313 = vcmp.lt.s32.totalorder %v3127, 0
        %v3314 = vsub.s32 0, %v3127
        %v3315 = vsel %vm3313, %v3314, %v3127
        %v3316 = vmul.u32.u64.compose %v3315, 3817748708
        %v3317 = vextract.low.u32 %v3316
        %v3318 = vextract.high.u32 %v3316
        %v3319 = vshrl.u32 %v3318, 4
        %v3320 = vmul.u32 %v3319, 18
        %v3321 = vsub.s32 %v3315, %v3320
        %v3322 = vsub.s32 0, %v3321
        %v3323 = vsel %vm3313, %v3322, %v3321
        %vm3324 = vcmp.lt.s32.totalorder %v3128, 0
        %v3325 = vsub.s32 0, %v3128
        %v3326 = vsel %vm3324, %v3325, %v3128
        %v3327 = vmul.u32.u64.compose %v3326, 3817748708
        %v3328 = vextract.low.u32 %v3327
        %v3329 = vextract.high.u32 %v3327
        %v3330 = vshrl.u32 %v3329, 4
        %v3331 = vmul.u32 %v3330, 18
        %v3332 = vsub.s32 %v3326, %v3331
        %v3333 = vsub.s32 0, %v3332
        %v3334 = vsel %vm3324, %v3333, %v3332
        %vm3335 = vcmp.lt.s32.totalorder %v3129, 0
        %v3336 = vsub.s32 0, %v3129
        %v3337 = vsel %vm3335, %v3336, %v3129
        %v3338 = vmul.u32.u64.compose %v3337, 3817748708
        %v3339 = vextract.low.u32 %v3338
        %v3340 = vextract.high.u32 %v3338
        %v3341 = vshrl.u32 %v3340, 4
        %v3342 = vmul.u32 %v3341, 18
        %v3343 = vsub.s32 %v3337, %v3342
        %v3344 = vsub.s32 0, %v3343
        %v3345 = vsel %vm3335, %v3344, %v3343
        %vm3346 = vcmp.lt.s32.totalorder %v3130, 0
        %v3347 = vsub.s32 0, %v3130
        %v3348 = vsel %vm3346, %v3347, %v3130
        %v3349 = vmul.u32.u64.compose %v3348, 3817748708
        %v3350 = vextract.low.u32 %v3349
        %v3351 = vextract.high.u32 %v3349
        %v3352 = vshrl.u32 %v3351, 4
        %v3353 = vmul.u32 %v3352, 18
        %v3354 = vsub.s32 %v3348, %v3353
        %v3355 = vsub.s32 0, %v3354
        %v3356 = vsel %vm3346, %v3355, %v3354
        %vm3357 = vcmp.lt.s32.totalorder %v3131, 0
        %v3358 = vsub.s32 0, %v3131
        %v3359 = vsel %vm3357, %v3358, %v3131
        %v3360 = vmul.u32.u64.compose %v3359, 3817748708
        %v3361 = vextract.low.u32 %v3360
        %v3362 = vextract.high.u32 %v3360
        %v3363 = vshrl.u32 %v3362, 4
        %v3364 = vmul.u32 %v3363, 18
        %v3365 = vsub.s32 %v3359, %v3364
        %v3366 = vsub.s32 0, %v3365
        %v3367 = vsel %vm3357, %v3366, %v3365
        %vm3368 = vcmp.lt.s32.totalorder %v3132, 0
        %v3369 = vsub.s32 0, %v3132
        %v3370 = vsel %vm3368, %v3369, %v3132
        %v3371 = vmul.u32.u64.compose %v3370, 3817748708
        %v3372 = vextract.low.u32 %v3371
        %v3373 = vextract.high.u32 %v3371
        %v3374 = vshrl.u32 %v3373, 4
        %v3375 = vmul.u32 %v3374, 18
        %v3376 = vsub.s32 %v3370, %v3375
        %v3377 = vsub.s32 0, %v3376
        %v3378 = vsel %vm3368, %v3377, %v3376
        %vm3379 = vcmp.lt.s32.totalorder %v3133, 0
        %v3380 = vsub.s32 0, %v3133
        %v3381 = vsel %vm3379, %v3380, %v3133
        %v3382 = vmul.u32.u64.compose %v3381, 3817748708
        %v3383 = vextract.low.u32 %v3382
        %v3384 = vextract.high.u32 %v3382
        %v3385 = vshrl.u32 %v3384, 4
        %v3386 = vmul.u32 %v3385, 18
        %v3387 = vsub.s32 %v3381, %v3386
        %v3388 = vsub.s32 0, %v3387
        %v3389 = vsel %vm3379, %v3388, %v3387
        %vm3390 = vcmp.lt.s32.totalorder %v3134, 0
        %v3391 = vsub.s32 0, %v3134
        %v3392 = vsel %vm3390, %v3391, %v3134
        %v3393 = vmul.u32.u64.compose %v3392, 3817748708
        %v3394 = vextract.low.u32 %v3393
        %v3395 = vextract.high.u32 %v3393
        %v3396 = vshrl.u32 %v3395, 4
        %v3397 = vmul.u32 %v3396, 18
        %v3398 = vsub.s32 %v3392, %v3397
        %v3399 = vsub.s32 0, %v3398
        %v3400 = vsel %vm3390, %v3399, %v3398
        %vm3401 = vcmp.lt.s32.totalorder %v3135, 0
        %v3402 = vsub.s32 0, %v3135
        %v3403 = vsel %vm3401, %v3402, %v3135
        %v3404 = vmul.u32.u64.compose %v3403, 3817748708
        %v3405 = vextract.low.u32 %v3404
        %v3406 = vextract.high.u32 %v3404
        %v3407 = vshrl.u32 %v3406, 4
        %v3408 = vmul.u32 %v3407, 18
        %v3409 = vsub.s32 %v3403, %v3408
        %v3410 = vsub.s32 0, %v3409
        %v3411 = vsel %vm3401, %v3410, %v3409
        %vm3412 = vcmp.lt.s32.totalorder %v3136, 0
        %v3413 = vsub.s32 0, %v3136
        %v3414 = vsel %vm3412, %v3413, %v3136
        %v3415 = vmul.u32.u64.compose %v3414, 3817748708
        %v3416 = vextract.low.u32 %v3415
        %v3417 = vextract.high.u32 %v3415
        %v3418 = vshrl.u32 %v3417, 4
        %v3419 = vmul.u32 %v3418, 18
        %v3420 = vsub.s32 %v3414, %v3419
        %v3421 = vsub.s32 0, %v3420
        %v3422 = vsel %vm3412, %v3421, %v3420
        %vm3423 = vcmp.lt.s32.totalorder %v3137, 0
        %v3424 = vsub.s32 0, %v3137
        %v3425 = vsel %vm3423, %v3424, %v3137
        %v3426 = vmul.u32.u64.compose %v3425, 3817748708
        %v3427 = vextract.low.u32 %v3426
        %v3428 = vextract.high.u32 %v3426
        %v3429 = vshrl.u32 %v3428, 4
        %v3430 = vmul.u32 %v3429, 18
        %v3431 = vsub.s32 %v3425, %v3430
        %v3432 = vsub.s32 0, %v3431
        %v3433 = vsel %vm3423, %v3432, %v3431
        %vm3434 = vcmp.lt.s32.totalorder %v3138, 0
        %v3435 = vsub.s32 0, %v3138
        %v3436 = vsel %vm3434, %v3435, %v3138
        %v3437 = vmul.u32.u64.compose %v3436, 3817748708
        %v3438 = vextract.low.u32 %v3437
        %v3439 = vextract.high.u32 %v3437
        %v3440 = vshrl.u32 %v3439, 4
        %v3441 = vmul.u32 %v3440, 18
        %v3442 = vsub.s32 %v3436, %v3441
        %v3443 = vsub.s32 0, %v3442
        %v3444 = vsel %vm3434, %v3443, %v3442
        %vm3445 = vcmp.lt.s32.totalorder %v3139, 0
        %v3446 = vsub.s32 0, %v3139
        %v3447 = vsel %vm3445, %v3446, %v3139
        %v3448 = vmul.u32.u64.compose %v3447, 3817748708
        %v3449 = vextract.low.u32 %v3448
        %v3450 = vextract.high.u32 %v3448
        %v3451 = vshrl.u32 %v3450, 4
        %v3452 = vmul.u32 %v3451, 18
        %v3453 = vsub.s32 %v3447, %v3452
        %v3454 = vsub.s32 0, %v3453
        %v3455 = vsel %vm3445, %v3454, %v3453
        %vm3456 = vcmp.lt.s32.totalorder %v3140, 0
        %v3457 = vsub.s32 0, %v3140
        %v3458 = vsel %vm3456, %v3457, %v3140
        %v3459 = vmul.u32.u64.compose %v3458, 3817748708
        %v3460 = vextract.low.u32 %v3459
        %v3461 = vextract.high.u32 %v3459
        %v3462 = vshrl.u32 %v3461, 4
        %v3463 = vmul.u32 %v3462, 18
        %v3464 = vsub.s32 %v3458, %v3463
        %v3465 = vsub.s32 0, %v3464
        %v3466 = vsel %vm3456, %v3465, %v3464
        %vm3467 = vcmp.lt.s32.totalorder %v3141, 0
        %v3468 = vsub.s32 0, %v3141
        %v3469 = vsel %vm3467, %v3468, %v3141
        %v3470 = vmul.u32.u64.compose %v3469, 3817748708
        %v3471 = vextract.low.u32 %v3470
        %v3472 = vextract.high.u32 %v3470
        %v3473 = vshrl.u32 %v3472, 4
        %v3474 = vmul.u32 %v3473, 18
        %v3475 = vsub.s32 %v3469, %v3474
        %v3476 = vsub.s32 0, %v3475
        %v3477 = vsel %vm3467, %v3476, %v3475
        %vm3478 = vcmp.lt.s32.totalorder %v3142, 0
        %v3479 = vsub.s32 0, %v3142
        %v3480 = vsel %vm3478, %v3479, %v3142
        %v3481 = vmul.u32.u64.compose %v3480, 3817748708
        %v3482 = vextract.low.u32 %v3481
        %v3483 = vextract.high.u32 %v3481
        %v3484 = vshrl.u32 %v3483, 4
        %v3485 = vmul.u32 %v3484, 18
        %v3486 = vsub.s32 %v3480, %v3485
        %v3487 = vsub.s32 0, %v3486
        %v3488 = vsel %vm3478, %v3487, %v3486
        %vm3489 = vcmp.lt.s32.totalorder %v3143, 0
        %v3490 = vsub.s32 0, %v3143
        %v3491 = vsel %vm3489, %v3490, %v3143
        %v3492 = vmul.u32.u64.compose %v3491, 3817748708
        %v3493 = vextract.low.u32 %v3492
        %v3494 = vextract.high.u32 %v3492
        %v3495 = vshrl.u32 %v3494, 4
        %v3496 = vmul.u32 %v3495, 18
        %v3497 = vsub.s32 %v3491, %v3496
        %v3498 = vsub.s32 0, %v3497
        %v3499 = vsel %vm3489, %v3498, %v3497
        %vm3500 = vcmp.lt.s32.totalorder %v3144, 0
        %v3501 = vsub.s32 0, %v3144
        %v3502 = vsel %vm3500, %v3501, %v3144
        %v3503 = vmul.u32.u64.compose %v3502, 3817748708
        %v3504 = vextract.low.u32 %v3503
        %v3505 = vextract.high.u32 %v3503
        %v3506 = vshrl.u32 %v3505, 4
        %v3507 = vmul.u32 %v3506, 18
        %v3508 = vsub.s32 %v3502, %v3507
        %v3509 = vsub.s32 0, %v3508
        %v3510 = vsel %vm3500, %v3509, %v3508
        %vm3511 = vcmp.lt.s32.totalorder %v3145, 0
        %v3512 = vsub.s32 0, %v3145
        %v3513 = vsel %vm3511, %v3512, %v3145
        %v3514 = vmul.u32.u64.compose %v3513, 3817748708
        %v3515 = vextract.low.u32 %v3514
        %v3516 = vextract.high.u32 %v3514
        %v3517 = vshrl.u32 %v3516, 4
        %v3518 = vmul.u32 %v3517, 18
        %v3519 = vsub.s32 %v3513, %v3518
        %v3520 = vsub.s32 0, %v3519
        %v3521 = vsel %vm3511, %v3520, %v3519
        %vm3522 = vcmp.lt.s32.totalorder %v3146, 0
        %v3523 = vsub.s32 0, %v3146
        %v3524 = vsel %vm3522, %v3523, %v3146
        %v3525 = vmul.u32.u64.compose %v3524, 3817748708
        %v3526 = vextract.low.u32 %v3525
        %v3527 = vextract.high.u32 %v3525
        %v3528 = vshrl.u32 %v3527, 4
        %v3529 = vmul.u32 %v3528, 18
        %v3530 = vsub.s32 %v3524, %v3529
        %v3531 = vsub.s32 0, %v3530
        %v3532 = vsel %vm3522, %v3531, %v3530
        %vm3533 = vcmp.lt.s32.totalorder %v3147, 0
        %v3534 = vsub.s32 0, %v3147
        %v3535 = vsel %vm3533, %v3534, %v3147
        %v3536 = vmul.u32.u64.compose %v3535, 3817748708
        %v3537 = vextract.low.u32 %v3536
        %v3538 = vextract.high.u32 %v3536
        %v3539 = vshrl.u32 %v3538, 4
        %v3540 = vmul.u32 %v3539, 18
        %v3541 = vsub.s32 %v3535, %v3540
        %v3542 = vsub.s32 0, %v3541
        %v3543 = vsel %vm3533, %v3542, %v3541
        %vm3544 = vcmp.ne.s32.totalorder %v3158, 0
        %vm3545 = vcmp.ne.s32.totalorder %v3169, 0
        %vm3546 = vcmp.ne.s32.totalorder %v3180, 0
        %vm3547 = vcmp.ne.s32.totalorder %v3191, 0
        %vm3548 = vcmp.ne.s32.totalorder %v3202, 0
        %vm3549 = vcmp.ne.s32.totalorder %v3213, 0
        %vm3550 = vcmp.ne.s32.totalorder %v3224, 0
        %vm3551 = vcmp.ne.s32.totalorder %v3235, 0
        %vm3552 = vcmp.ne.s32.totalorder %v3246, 0
        %vm3553 = vcmp.ne.s32.totalorder %v3257, 0
        %vm3554 = vcmp.ne.s32.totalorder %v3268, 0
        %vm3555 = vcmp.ne.s32.totalorder %v3279, 0
        %vm3556 = vcmp.ne.s32.totalorder %v3290, 0
        %vm3557 = vcmp.ne.s32.totalorder %v3301, 0
        %vm3558 = vcmp.ne.s32.totalorder %v3312, 0
        %vm3559 = vcmp.ne.s32.totalorder %v3323, 0
        %vm3560 = vcmp.ne.s32.totalorder %v3334, 0
        %vm3561 = vcmp.ne.s32.totalorder %v3345, 0
        %vm3562 = vcmp.ne.s32.totalorder %v3356, 0
        %vm3563 = vcmp.ne.s32.totalorder %v3367, 0
        %vm3564 = vcmp.ne.s32.totalorder %v3378, 0
        %vm3565 = vcmp.ne.s32.totalorder %v3389, 0
        %vm3566 = vcmp.ne.s32.totalorder %v3400, 0
        %vm3567 = vcmp.ne.s32.totalorder %v3411, 0
        %vm3568 = vcmp.ne.s32.totalorder %v3422, 0
        %vm3569 = vcmp.ne.s32.totalorder %v3433, 0
        %vm3570 = vcmp.ne.s32.totalorder %v3444, 0
        %vm3571 = vcmp.ne.s32.totalorder %v3455, 0
        %vm3572 = vcmp.ne.s32.totalorder %v3466, 0
        %vm3573 = vcmp.ne.s32.totalorder %v3477, 0
        %vm3574 = vcmp.ne.s32.totalorder %v3488, 0
        %vm3575 = vcmp.ne.s32.totalorder %v3499, 0
        %vm3576 = vcmp.ne.s32.totalorder %v3510, 0
        %vm3577 = vcmp.ne.s32.totalorder %v3521, 0
        %vm3578 = vcmp.ne.s32.totalorder %v3532, 0
        %vm3579 = vcmp.ne.s32.totalorder %v3543, 0
        %vm3580 = vcmp.lt.s32.totalorder %v3158, 0
        %vm3581 = vcmp.lt.s32.totalorder %v3169, 0
        %vm3582 = vcmp.lt.s32.totalorder %v3180, 0
        %vm3583 = vcmp.lt.s32.totalorder %v3191, 0
        %vm3584 = vcmp.lt.s32.totalorder %v3202, 0
        %vm3585 = vcmp.lt.s32.totalorder %v3213, 0
        %vm3586 = vcmp.lt.s32.totalorder %v3224, 0
        %vm3587 = vcmp.lt.s32.totalorder %v3235, 0
        %vm3588 = vcmp.lt.s32.totalorder %v3246, 0
        %vm3589 = vcmp.lt.s32.totalorder %v3257, 0
        %vm3590 = vcmp.lt.s32.totalorder %v3268, 0
        %vm3591 = vcmp.lt.s32.totalorder %v3279, 0
        %vm3592 = vcmp.lt.s32.totalorder %v3290, 0
        %vm3593 = vcmp.lt.s32.totalorder %v3301, 0
        %vm3594 = vcmp.lt.s32.totalorder %v3312, 0
        %vm3595 = vcmp.lt.s32.totalorder %v3323, 0
        %vm3596 = vcmp.lt.s32.totalorder %v3334, 0
        %vm3597 = vcmp.lt.s32.totalorder %v3345, 0
        %vm3598 = vcmp.lt.s32.totalorder %v3356, 0
        %vm3599 = vcmp.lt.s32.totalorder %v3367, 0
        %vm3600 = vcmp.lt.s32.totalorder %v3378, 0
        %vm3601 = vcmp.lt.s32.totalorder %v3389, 0
        %vm3602 = vcmp.lt.s32.totalorder %v3400, 0
        %vm3603 = vcmp.lt.s32.totalorder %v3411, 0
        %vm3604 = vcmp.lt.s32.totalorder %v3422, 0
        %vm3605 = vcmp.lt.s32.totalorder %v3433, 0
        %vm3606 = vcmp.lt.s32.totalorder %v3444, 0
        %vm3607 = vcmp.lt.s32.totalorder %v3455, 0
        %vm3608 = vcmp.lt.s32.totalorder %v3466, 0
        %vm3609 = vcmp.lt.s32.totalorder %v3477, 0
        %vm3610 = vcmp.lt.s32.totalorder %v3488, 0
        %vm3611 = vcmp.lt.s32.totalorder %v3499, 0
        %vm3612 = vcmp.lt.s32.totalorder %v3510, 0
        %vm3613 = vcmp.lt.s32.totalorder %v3521, 0
        %vm3614 = vcmp.lt.s32.totalorder %v3532, 0
        %vm3615 = vcmp.lt.s32.totalorder %v3543, 0
        %vm3616 = vmand %vm3580, %vm3544
        %vm3617 = vmand %vm3581, %vm3545
        %vm3618 = vmand %vm3582, %vm3546
        %vm3619 = vmand %vm3583, %vm3547
        %vm3620 = vmand %vm3584, %vm3548
        %vm3621 = vmand %vm3585, %vm3549
        %vm3622 = vmand %vm3586, %vm3550
        %vm3623 = vmand %vm3587, %vm3551
        %vm3624 = vmand %vm3588, %vm3552
        %vm3625 = vmand %vm3589, %vm3553
        %vm3626 = vmand %vm3590, %vm3554
        %vm3627 = vmand %vm3591, %vm3555
        %vm3628 = vmand %vm3592, %vm3556
        %vm3629 = vmand %vm3593, %vm3557
        %vm3630 = vmand %vm3594, %vm3558
        %vm3631 = vmand %vm3595, %vm3559
        %vm3632 = vmand %vm3596, %vm3560
        %vm3633 = vmand %vm3597, %vm3561
        %vm3634 = vmand %vm3598, %vm3562
        %vm3635 = vmand %vm3599, %vm3563
        %vm3636 = vmand %vm3600, %vm3564
        %vm3637 = vmand %vm3601, %vm3565
        %vm3638 = vmand %vm3602, %vm3566
        %vm3639 = vmand %vm3603, %vm3567
        %vm3640 = vmand %vm3604, %vm3568
        %vm3641 = vmand %vm3605, %vm3569
        %vm3642 = vmand %vm3606, %vm3570
        %vm3643 = vmand %vm3607, %vm3571
        %vm3644 = vmand %vm3608, %vm3572
        %vm3645 = vmand %vm3609, %vm3573
        %vm3646 = vmand %vm3610, %vm3574
        %vm3647 = vmand %vm3611, %vm3575
        %vm3648 = vmand %vm3612, %vm3576
        %vm3649 = vmand %vm3613, %vm3577
        %vm3650 = vmand %vm3614, %vm3578
        %vm3651 = vmand %vm3615, %vm3579
        %v3652 = vadd.s32 %v3158, 18
        %v3653 = vadd.s32 %v3169, 18
        %v3654 = vadd.s32 %v3180, 18
        %v3655 = vadd.s32 %v3191, 18
        %v3656 = vadd.s32 %v3202, 18
        %v3657 = vadd.s32 %v3213, 18
        %v3658 = vadd.s32 %v3224, 18
        %v3659 = vadd.s32 %v3235, 18
        %v3660 = vadd.s32 %v3246, 18
        %v3661 = vadd.s32 %v3257, 18
        %v3662 = vadd.s32 %v3268, 18
        %v3663 = vadd.s32 %v3279, 18
        %v3664 = vadd.s32 %v3290, 18
        %v3665 = vadd.s32 %v3301, 18
        %v3666 = vadd.s32 %v3312, 18
        %v3667 = vadd.s32 %v3323, 18
        %v3668 = vadd.s32 %v3334, 18
        %v3669 = vadd.s32 %v3345, 18
        %v3670 = vadd.s32 %v3356, 18
        %v3671 = vadd.s32 %v3367, 18
        %v3672 = vadd.s32 %v3378, 18
        %v3673 = vadd.s32 %v3389, 18
        %v3674 = vadd.s32 %v3400, 18
        %v3675 = vadd.s32 %v3411, 18
        %v3676 = vadd.s32 %v3422, 18
        %v3677 = vadd.s32 %v3433, 18
        %v3678 = vadd.s32 %v3444, 18
        %v3679 = vadd.s32 %v3455, 18
        %v3680 = vadd.s32 %v3466, 18
        %v3681 = vadd.s32 %v3477, 18
        %v3682 = vadd.s32 %v3488, 18
        %v3683 = vadd.s32 %v3499, 18
        %v3684 = vadd.s32 %v3510, 18
        %v3685 = vadd.s32 %v3521, 18
        %v3686 = vadd.s32 %v3532, 18
        %v3687 = vadd.s32 %v3543, 18
        %v3688 = vsel %vm3616, %v3652, %v3158
        %v3689 = vsel %vm3617, %v3653, %v3169
        %v3690 = vsel %vm3618, %v3654, %v3180
        %v3691 = vsel %vm3619, %v3655, %v3191
        %v3692 = vsel %vm3620, %v3656, %v3202
        %v3693 = vsel %vm3621, %v3657, %v3213
        %v3694 = vsel %vm3622, %v3658, %v3224
        %v3695 = vsel %vm3623, %v3659, %v3235
        %v3696 = vsel %vm3624, %v3660, %v3246
        %v3697 = vsel %vm3625, %v3661, %v3257
        %v3698 = vsel %vm3626, %v3662, %v3268
        %v3699 = vsel %vm3627, %v3663, %v3279
        %v3700 = vsel %vm3628, %v3664, %v3290
        %v3701 = vsel %vm3629, %v3665, %v3301
        %v3702 = vsel %vm3630, %v3666, %v3312
        %v3703 = vsel %vm3631, %v3667, %v3323
        %v3704 = vsel %vm3632, %v3668, %v3334
        %v3705 = vsel %vm3633, %v3669, %v3345
        %v3706 = vsel %vm3634, %v3670, %v3356
        %v3707 = vsel %vm3635, %v3671, %v3367
        %v3708 = vsel %vm3636, %v3672, %v3378
        %v3709 = vsel %vm3637, %v3673, %v3389
        %v3710 = vsel %vm3638, %v3674, %v3400
        %v3711 = vsel %vm3639, %v3675, %v3411
        %v3712 = vsel %vm3640, %v3676, %v3422
        %v3713 = vsel %vm3641, %v3677, %v3433
        %v3714 = vsel %vm3642, %v3678, %v3444
        %v3715 = vsel %vm3643, %v3679, %v3455
        %v3716 = vsel %vm3644, %v3680, %v3466
        %v3717 = vsel %vm3645, %v3681, %v3477
        %v3718 = vsel %vm3646, %v3682, %v3488
        %v3719 = vsel %vm3647, %v3683, %v3499
        %v3720 = vsel %vm3648, %v3684, %v3510
        %v3721 = vsel %vm3649, %v3685, %v3521
        %v3722 = vsel %vm3650, %v3686, %v3532
        %v3723 = vsel %vm3651, %v3687, %v3543
        %vm3724 = vcmp.lt.s32.totalorder %v3688, 16
        %vm3725 = vcmp.lt.s32.totalorder %v3689, 16
        %vm3726 = vcmp.lt.s32.totalorder %v3690, 16
        %vm3727 = vcmp.lt.s32.totalorder %v3691, 16
        %vm3728 = vcmp.lt.s32.totalorder %v3692, 16
        %vm3729 = vcmp.lt.s32.totalorder %v3693, 16
        %vm3730 = vcmp.lt.s32.totalorder %v3694, 16
        %vm3731 = vcmp.lt.s32.totalorder %v3695, 16
        %vm3732 = vcmp.lt.s32.totalorder %v3696, 16
        %vm3733 = vcmp.lt.s32.totalorder %v3697, 16
        %vm3734 = vcmp.lt.s32.totalorder %v3698, 16
        %vm3735 = vcmp.lt.s32.totalorder %v3699, 16
        %vm3736 = vcmp.lt.s32.totalorder %v3700, 16
        %vm3737 = vcmp.lt.s32.totalorder %v3701, 16
        %vm3738 = vcmp.lt.s32.totalorder %v3702, 16
        %vm3739 = vcmp.lt.s32.totalorder %v3703, 16
        %vm3740 = vcmp.lt.s32.totalorder %v3704, 16
        %vm3741 = vcmp.lt.s32.totalorder %v3705, 16
        %vm3742 = vcmp.lt.s32.totalorder %v3706, 16
        %vm3743 = vcmp.lt.s32.totalorder %v3707, 16
        %vm3744 = vcmp.lt.s32.totalorder %v3708, 16
        %vm3745 = vcmp.lt.s32.totalorder %v3709, 16
        %vm3746 = vcmp.lt.s32.totalorder %v3710, 16
        %vm3747 = vcmp.lt.s32.totalorder %v3711, 16
        %vm3748 = vcmp.lt.s32.totalorder %v3712, 16
        %vm3749 = vcmp.lt.s32.totalorder %v3713, 16
        %vm3750 = vcmp.lt.s32.totalorder %v3714, 16
        %vm3751 = vcmp.lt.s32.totalorder %v3715, 16
        %vm3752 = vcmp.lt.s32.totalorder %v3716, 16
        %vm3753 = vcmp.lt.s32.totalorder %v3717, 16
        %vm3754 = vcmp.lt.s32.totalorder %v3718, 16
        %vm3755 = vcmp.lt.s32.totalorder %v3719, 16
        %vm3756 = vcmp.lt.s32.totalorder %v3720, 16
        %vm3757 = vcmp.lt.s32.totalorder %v3721, 16
        %vm3758 = vcmp.lt.s32.totalorder %v3722, 16
        %vm3759 = vcmp.lt.s32.totalorder %v3723, 16
        %v3760 = vsel %vm3724, %v3075, 0.0
        %v3761 = vsel %vm3725, %v3076, 0.0
        %v3762 = vsel %vm3726, %v3077, 0.0
        %v3763 = vsel %vm3727, %v3078, 0.0
        %v3764 = vsel %vm3728, %v3079, 0.0
        %v3765 = vsel %vm3729, %v3080, 0.0
        %v3766 = vsel %vm3730, %v3081, 0.0
        %v3767 = vsel %vm3731, %v3082, 0.0
        %v3768 = vsel %vm3732, %v3083, 0.0
        %v3769 = vsel %vm3733, %v3084, 0.0
        %v3770 = vsel %vm3734, %v3085, 0.0
        %v3771 = vsel %vm3735, %v3086, 0.0
        %v3772 = vsel %vm3736, %v3087, 0.0
        %v3773 = vsel %vm3737, %v3088, 0.0
        %v3774 = vsel %vm3738, %v3089, 0.0
        %v3775 = vsel %vm3739, %v3090, 0.0
        %v3776 = vsel %vm3740, %v3091, 0.0
        %v3777 = vsel %vm3741, %v3092, 0.0
        %v3778 = vsel %vm3742, %v3093, 0.0
        %v3779 = vsel %vm3743, %v3094, 0.0
        %v3780 = vsel %vm3744, %v3095, 0.0
        %v3781 = vsel %vm3745, %v3096, 0.0
        %v3782 = vsel %vm3746, %v3097, 0.0
        %v3783 = vsel %vm3747, %v3098, 0.0
        %v3784 = vsel %vm3748, %v3099, 0.0
        %v3785 = vsel %vm3749, %v3100, 0.0
        %v3786 = vsel %vm3750, %v3101, 0.0
        %v3787 = vsel %vm3751, %v3102, 0.0
        %v3788 = vsel %vm3752, %v3103, 0.0
        %v3789 = vsel %vm3753, %v3104, 0.0
        %v3790 = vsel %vm3754, %v3105, 0.0
        %v3791 = vsel %vm3755, %v3106, 0.0
        %v3792 = vsel %vm3756, %v3107, 0.0
        %v3793 = vsel %vm3757, %v3108, 0.0
        %v3794 = vsel %vm3758, %v3109, 0.0
        %v3795 = vsel %vm3759, %v3110, 0.0
        %v3796 = vadd.f32 %v3760, %v3761
        %v3797 = vadd.f32 %v3796, %v3762
        %v3798 = vadd.f32 %v3797, %v3763
        %v3799 = vadd.f32 %v3798, %v3764
        %v3800 = vadd.f32 %v3799, %v3765
        %v3801 = vadd.f32 %v3800, %v3766
        %v3802 = vadd.f32 %v3801, %v3767
        %v3803 = vadd.f32 %v3802, %v3768
        %v3804 = vadd.f32 %v3803, %v3769
        %v3805 = vadd.f32 %v3804, %v3770
        %v3806 = vadd.f32 %v3805, %v3771
        %v3807 = vadd.f32 %v3806, %v3772
        %v3808 = vadd.f32 %v3807, %v3773
        %v3809 = vadd.f32 %v3808, %v3774
        %v3810 = vadd.f32 %v3809, %v3775
        %v3811 = vadd.f32 %v3810, %v3776
        %v3812 = vadd.f32 %v3811, %v3777
        %v3813 = vadd.f32 %v3812, %v3778
        %v3814 = vadd.f32 %v3813, %v3779
        %v3815 = vadd.f32 %v3814, %v3780
        %v3816 = vadd.f32 %v3815, %v3781
        %v3817 = vadd.f32 %v3816, %v3782
        %v3818 = vadd.f32 %v3817, %v3783
        %v3819 = vadd.f32 %v3818, %v3784
        %v3820 = vadd.f32 %v3819, %v3785
        %v3821 = vadd.f32 %v3820, %v3786
        %v3822 = vadd.f32 %v3821, %v3787
        %v3823 = vadd.f32 %v3822, %v3788
        %v3824 = vadd.f32 %v3823, %v3789
        %v3825 = vadd.f32 %v3824, %v3790
        %v3826 = vadd.f32 %v3825, %v3791
        %v3827 = vadd.f32 %v3826, %v3792
        %v3828 = vadd.f32 %v3827, %v3793
        %v3829 = vadd.f32 %v3828, %v3794
        %v3830 = vadd.f32 %v3829, %v3795
        %v3831 = vrot.slane %v3830, 4
        %v3832 = vadd.f32 %v3830, %v3831
        %v3833 = vrot.slane %v3832, 2
        %v3834 = vadd.f32 %v3832, %v3833
        %v3835 = vrot.slane %v3834, 1
        %v3836 = vadd.f32 %v3834, %v3835
        %v3837 = vmul.f32 %v3836, 0.00390625
        %3838 = vst [vmem:[%s162] sm:$0x1] %v3837
        %s3839 = sand.u32 %s93, 1
        %s3840 = scalar_lea.sflag [#allocation3], %s3839
        %s3841 = sand.u32 %s93, 1
        %s3842 = scalar_lea.vmem [#allocation2], %s3841
        // Predicated region
        $region33: #{feature_model_forward.1} parent=31 // pred_check
          %p3843 = pneg %p103
        $region34: #{feature_model_forward.1} parent=31 // pred_check_branch
          %3845 = sbr.rel (%p3843) target = $region36
        $region35: #{feature_model_forward.1} parent=31 // pred_region
          %s3847 = ssub.s32 16, 16
          %3848 = vsyncadd %s3840, %s3847
          %s3849 = smul.addr %s17, 16
          %s3850 = scalar_lea.hbm %s3, %s3849
          %s3852 = sshll.u32 %s3842, 4
          %s3853 = int_to_ptr.vmem [resolvable:$true] %s3852
          %3855 = dma.vmem_to_hbm [thread:$0]  %s3853, 16, %s3850, %s3840
        $region36: #{feature_model_forward.1} parent=31 // pred_fallthru
          _
      $region32: #{feature_model_forward.1} parent=5 // pred_fallthru
        _
      %p3856 = scmp.le.s32.totalorder 2, %s12
      // Predicated region
      $region37: #{feature_model_forward.1} parent=5 // pred_check
        %p3857 = pneg %p3856
      $region38: #{feature_model_forward.1} parent=5 // pred_check_branch
        %3859 = sbr.rel (%p3857) target = $region40
      $region39: #{feature_model_forward.1} parent=5 // pred_region
        %s3860 = ssub.s32 %s12, 2
        // Predicated region
        $region41: #{feature_model_forward.1} parent=39 // pred_check
          %p3861 = pneg %p109
        $region42: #{feature_model_forward.1} parent=39 // pred_check_branch
          %3863 = sbr.rel (%p3861) target = $region44
        $region43: #{feature_model_forward.1} parent=39 // pred_region
          %s3864 = sand.u32 %s94, 1
          %s3865 = scalar_lea.sflag [#allocation3], %s3864
          %s3866 = sand.u32 %s94, 1
          %s3867 = scalar_lea.vmem [#allocation2], %s3866
          %3868 = dma.done %s3865, 16
        $region44: #{feature_model_forward.1} parent=39 // pred_fallthru
          _
      $region40: #{feature_model_forward.1} parent=5 // pred_fallthru
        _
    $region6: #{feature_model_forward.1} parent=1 // loop_footer
      %s16 = sadd.s32 1, %s12
    $region7: #{feature_model_forward.1} parent=1 // loop_footer_branch
      %11 = sbr.rel target = $region3
    $region8: #{feature_model_forward.1} parent=1 // loop_exit
      _
    %3869 = vsyncpa [#allocation3], 1
    %s3870 = scalar_lea.sflag [#allocation3], 1
    %3871 = vsyncpa %s3870, 1

</llo_original>
